<compile_context>
chip_gen: v5e
topology: v5e:2x2
jax: 0.10.0
libtpu: 0.0.40
codegen_flags: <defaults>
</compile_context>

<pallas_src>
import jax
import jax.numpy as jnp
import numpy as np
from jax.experimental import pallas as pl
from jax.experimental.pallas import tpu as pltpu

# ----- hyperparameters (small, consistent with the module's forward) -----
IN_CHANNELS     = 4          # in_channels
OUT_CHANNELS    = 32         # out_channels == LSTM hidden size H
INPUT_TIME_LEN  = 8          # time_len T
OUTPUT_TIME_LEN = 6          # output_time_len
WEATHER_DIM     = 10         # embedding table size (unused in forward)
NUM_LAYERS      = 4

B, N, FEAT = 2, 4, 6         # batch, num_nodes, raw feature dim (>= IN_CHANNELS)


def tarpml_kernel(x_ref,
                  wih0_ref, wihr_ref, whh_ref, lstmb_ref,
                  w1_ref, b1_ref, w2_ref, b2_ref, w3_ref, b3_ref,
                  wend_ref, bend_ref,
                  out_ref):
    M = out_ref.shape[0]
    TM = x_ref.shape[0]
    T = TM // M
    L = whh_ref.shape[0]
    H = whh_ref.shape[1]

    # Loop-invariant weight loads hoisted once (VMEM -> values).
    whh  = [whh_ref[l] for l in range(L)]            # each (H, 4H)
    wihr = [wihr_ref[l] for l in range(L - 1)]       # each (H, 4H)
    bias = [lstmb_ref[l] for l in range(L)]          # each (1, 4H) (bih + bhh folded)

    # Layer-0 input projection for ALL timesteps in one batched MXU matmul (bias folded in).
    zx0 = jnp.dot(x_ref[...], wih0_ref[...],
                  preferred_element_type=jnp.float32) + bias[0]        # (T*M, 4H)

    def cell(z, c_prev):
        # PyTorch LSTM cell, gate order (i, f, g, o).
        # Two full-width EUP passes over the whole (M, 4H) vreg instead of four
        # quarter-width ones; gates are sliced from the shared results.
        sig = jax.nn.sigmoid(z)
        th = jnp.tanh(z)
        i_g = sig[:, 0 * H:1 * H]
        f_g = sig[:, 1 * H:2 * H]
        o_g = sig[:, 3 * H:4 * H]
        g_g = th[:, 2 * H:3 * H]
        c_new = f_g * c_prev + i_g * g_g
        h_new = o_g * jnp.tanh(c_new)
        # TODO(synk): the three gate slices live at lane offsets H/2H/3H and still cost
        # ~3 XLU lane realignments per cell; fully removing them needs per-gate matmuls
        # or full-width carried c/h with zero-padded Whh rows (similar rotate count).
        return h_new, c_new

    h = [jnp.zeros((M, H), jnp.float32) for _ in range(L)]
    c = [jnp.zeros((M, H), jnp.float32) for _ in range(L)]
    h_last = []

    # Wavefront over diagonals d = t + l.  Iterate l DESCENDING within a diagonal so that
    # h[l-1] still holds step t = d - l when layer l consumes it.
    for d in range(T + L - 1):
        for l in reversed(range(L)):
            t = d - l
            if t < 0 or t >= T:
                continue
            if l == 0:
                z = zx0[t * M:(t + 1) * M, :] + jnp.dot(
                    h[0], whh[0], preferred_element_type=jnp.float32)
            else:
                z = (jnp.dot(h[l - 1], wihr[l - 1], preferred_element_type=jnp.float32)
                     + jnp.dot(h[l], whh[l], preferred_element_type=jnp.float32)
                     + bias[l])
            h[l], c[l] = cell(z, c[l])
            if l == L - 1:
                h_last.append(h[l])

    # Lane-dense (M, T*H) slab of the top layer's outputs; column block t = timestep t.
    seq = jnp.concatenate(h_last, axis=1)

    # MLP with block-diagonal (per-timestep replicated) weights: everything stays a
    # lane-dense (M, T*2H) slab, one MXU matmul per linear.
    h1 = jnp.maximum(jnp.dot(seq, w1_ref[...],
                             preferred_element_type=jnp.float32) + b1_ref[...], 0.0)
    h2 = jnp.maximum(jnp.dot(h1, w2_ref[...],
                             preferred_element_type=jnp.float32) + b2_ref[...], 0.0)
    h3 = jnp.maximum(jnp.dot(h2, w3_ref[...],
                             preferred_element_type=jnp.float32) + b3_ref[...], 0.0)

    # endconv (time-flatten linear) fused with endConv2 (Linear(1,3)) as a single
    # K = T*2H contraction; lane-dense (M, Tout*3) output.
    out_ref[...] = jnp.dot(h3, wend_ref[...],
                           preferred_element_type=jnp.float32) + bend_ref[...]


def init_params(key):
    H = OUT_CHANNELS
    k = 1.0 / np.sqrt(H)
    keys = jax.random.split(key, 16)
    u = lambda kk, shape: jax.random.uniform(kk, shape, jnp.float32, -k, k)
    p = {}
    p['wih0_T'] = u(keys[0], (IN_CHANNELS, 4 * H))            # layer-0 input weights^T
    p['wihr_T'] = u(keys[1], (NUM_LAYERS - 1, H, 4 * H))      # layers 1..3 input weights^T
    p['whh_T']  = u(keys[2], (NUM_LAYERS, H, 4 * H))          # hidden weights^T
    bih = u(keys[3], (NUM_LAYERS, 1, 4 * H))
    bhh = u(keys[4], (NUM_LAYERS, 1, 4 * H))
    p['lstm_b'] = bih + bhh                                   # combined gate bias
    p['fc1w_T'] = u(keys[5], (H, 2 * H));      p['fc1b'] = u(keys[6], (1, 2 * H))
    p['fc2w_T'] = u(keys[7], (2 * H, 2 * H));  p['fc2b'] = u(keys[8], (1, 2 * H))
    p['fc3w_T'] = u(keys[9], (2 * H, 2 * H));  p['fc3b'] = u(keys[10], (1, 2 * H))
    p['endw_T'] = u(keys[11], (2 * H * INPUT_TIME_LEN, OUTPUT_TIME_LEN))
    p['endb']   = u(keys[12], (1, OUTPUT_TIME_LEN))
    p['end2w']  = u(keys[13], (1, 1, 3))
    p['end2b']  = u(keys[14], (1, 1, 3))
    # TODO(synk): start_conv and embedding exist in __init__ but are unused in forward.
    return p


def _block_diag(w, reps):
    """(kin, kout) -> (reps*kin, reps*kout) block-diagonal replication (host-side)."""
    kin, kout = w.shape
    out = jnp.zeros((reps * kin, reps * kout), w.dtype)
    for t in range(reps):
        out = out.at[t * kin:(t + 1) * kin, t * kout:(t + 1) * kout].set(w)
    return out


def _prep_weights(p):
    """Block-diagonal MLP weights + folded endconv x endConv2 weights (host-side)."""
    T = INPUT_TIME_LEN
    Tout = OUTPUT_TIME_LEN
    w1 = _block_diag(p['fc1w_T'], T); b1 = jnp.tile(p['fc1b'], (1, T))   # (T*H, T*2H)
    w2 = _block_diag(p['fc2w_T'], T); b2 = jnp.tile(p['fc2b'], (1, T))   # (T*2H, T*2H)
    w3 = _block_diag(p['fc3w_T'], T); b3 = jnp.tile(p['fc3b'], (1, T))   # (T*2H, T*2H)
    w2e = p['end2w'].reshape(3)
    b2e = p['end2b'].reshape(3)
    # out[m, to*3+k] = sum_r h3[m, r] * endw_T[r, to] * w2e[k] + endb[to]*w2e[k] + b2e[k]
    wend = (p['endw_T'][:, :, None] * w2e).reshape(-1, Tout * 3)         # (T*2H, Tout*3)
    bend = (p['endb'].reshape(Tout, 1) * w2e[None, :]
            + b2e[None, :]).reshape(1, Tout * 3)                         # (1, Tout*3)
    return w1, b1, w2, b2, w3, b3, wend, bend


def tarpml_forward(x, p):
    Bn, Nn, T, _ = x.shape
    M = Bn * Nn
    # time-major (T*M, Cin): per-timestep rows are sublane-tile-aligned in the kernel
    x_in = (x[..., :IN_CHANNELS].astype(jnp.float32)
            .reshape(M, T, IN_CHANNELS).transpose(1, 0, 2).reshape(T * M, IN_CHANNELS))
    w1, b1, w2, b2, w3, b3, wend, bend = _prep_weights(p)

    args = (x_in,
            p['wih0_T'], p['wihr_T'], p['whh_T'], p['lstm_b'],
            w1, b1, w2, b2, w3, b3,
            wend, bend)

    vmem_spec = pl.BlockSpec(memory_space=pltpu.MemorySpace.VMEM)
    out = pl.pallas_call(
        tarpml_kernel,
        out_shape=jax.ShapeDtypeStruct((M, OUTPUT_TIME_LEN * 3), jnp.float32),
        in_specs=[vmem_spec] * len(args),
        out_specs=vmem_spec,
    )(*args)
    # TODO(synk): when batch*num_nodes grows, add a leading "parallel" grid axis over row
    # blocks (256 rows + bf16 matmuls on v6e/v7x, 128 rows f32 on v5e) so v7x's 2 TCs split
    # the work; at the current ~3 MiB working set a single grid point is optimal.
    return out.reshape(Bn, Nn, OUTPUT_TIME_LEN, 3)


def tarpml_reference(x, p):
    """Pure-JAX reference mirroring the PyTorch forward."""
    Bn, Nn, T, _ = x.shape
    M = Bn * Nn
    H = OUT_CHANNELS
    seq = x[..., :IN_CHANNELS].reshape(M, T, IN_CHANNELS).astype(jnp.float32)
    for l in range(NUM_LAYERS):
        wihT = p['wih0_T'] if l == 0 else p['wihr_T'][l - 1]
        whhT = p['whh_T'][l]
        b = p['lstm_b'][l, 0]
        h = jnp.zeros((M, H), jnp.float32)
        c = jnp.zeros((M, H), jnp.float32)
        outs = []
        for t in range(T):
            z = seq[:, t, :] @ wihT + h @ whhT + b
            i = jax.nn.sigmoid(z[:, :H]); f = jax.nn.sigmoid(z[:, H:2 * H])
            g = jnp.tanh(z[:, 2 * H:3 * H]); o = jax.nn.sigmoid(z[:, 3 * H:])
            c = f * c + i * g
            h = o * jnp.tanh(c)
            outs.append(h)
        seq = jnp.stack(outs, axis=1)
    h1 = jax.nn.relu(seq @ p['fc1w_T'] + p['fc1b'][0])
    h2 = jax.nn.relu(h1 @ p['fc2w_T'] + p['fc2b'][0])
    h3 = jax.nn.relu(h2 @ p['fc3w_T'] + p['fc3b'][0])
    flat = h3.reshape(M, T * 2 * H)
    e = flat @ p['endw_T'] + p['endb'][0]
    out = e[:, :, None] * p['end2w'] + p['end2b']
    return out.reshape(Bn, Nn, OUTPUT_TIME_LEN, 3)


if __name__ == "__main__":
    key = jax.random.PRNGKey(0)
    kx, kp = jax.random.split(key)
    x = jax.random.normal(kx, (B, N, INPUT_TIME_LEN, FEAT), jnp.float32)
    params = init_params(kp)

    out = tarpml_forward(x, params)
    out = jax.block_until_ready(out)

    ref = jax.block_until_ready(tarpml_reference(x, params))
    assert out.shape == (B, N, OUTPUT_TIME_LEN, 3), out.shape
    np.testing.assert_allclose(np.asarray(out), np.asarray(ref), rtol=1e-3, atol=1e-3)
    print("KERNEL_OK")
</pallas_src>

<mosaic_0001>
module attributes {stable_mosaic.version = 11 : i64} {
  func.func @tarpml_kernel(%arg0: memref<64x4xf32, #tpu.memory_space<vmem>>, %arg1: memref<4x128xf32, #tpu.memory_space<vmem>>, %arg2: memref<3x32x128xf32, #tpu.memory_space<vmem>>, %arg3: memref<4x32x128xf32, #tpu.memory_space<vmem>>, %arg4: memref<4x1x128xf32, #tpu.memory_space<vmem>>, %arg5: memref<256x512xf32, #tpu.memory_space<vmem>>, %arg6: memref<1x512xf32, #tpu.memory_space<vmem>>, %arg7: memref<512x512xf32, #tpu.memory_space<vmem>>, %arg8: memref<1x512xf32, #tpu.memory_space<vmem>>, %arg9: memref<512x512xf32, #tpu.memory_space<vmem>>, %arg10: memref<1x512xf32, #tpu.memory_space<vmem>>, %arg11: memref<512x18xf32, #tpu.memory_space<vmem>>, %arg12: memref<1x18xf32, #tpu.memory_space<vmem>>, %arg13: memref<8x18xf32, #tpu.memory_space<vmem>>) attributes {dimension_semantics = [], scalar_prefetch = 0 : i64, scratch_operands = 0 : i64, tpu.core_type = #tpu.core_type<tc>} {
    %c0 = arith.constant 0 : index
    %c0_0 = arith.constant 0 : index
    %c0_1 = arith.constant 0 : index
    %0 = vector.load %arg3[%c0, %c0_0, %c0_1] : memref<4x32x128xf32, #tpu.memory_space<vmem>>, vector<1x32x128xf32>
    %1 = vector.shape_cast %0 : vector<1x32x128xf32> to vector<32x128xf32>
    %c1 = arith.constant 1 : index
    %c0_2 = arith.constant 0 : index
    %c0_3 = arith.constant 0 : index
    %2 = vector.load %arg3[%c1, %c0_2, %c0_3] : memref<4x32x128xf32, #tpu.memory_space<vmem>>, vector<1x32x128xf32>
    %3 = vector.shape_cast %2 : vector<1x32x128xf32> to vector<32x128xf32>
    %c2 = arith.constant 2 : index
    %c0_4 = arith.constant 0 : index
    %c0_5 = arith.constant 0 : index
    %4 = vector.load %arg3[%c2, %c0_4, %c0_5] : memref<4x32x128xf32, #tpu.memory_space<vmem>>, vector<1x32x128xf32>
    %5 = vector.shape_cast %4 : vector<1x32x128xf32> to vector<32x128xf32>
    %c3 = arith.constant 3 : index
    %c0_6 = arith.constant 0 : index
    %c0_7 = arith.constant 0 : index
    %6 = vector.load %arg3[%c3, %c0_6, %c0_7] : memref<4x32x128xf32, #tpu.memory_space<vmem>>, vector<1x32x128xf32>
    %7 = vector.shape_cast %6 : vector<1x32x128xf32> to vector<32x128xf32>
    %c0_8 = arith.constant 0 : index
    %c0_9 = arith.constant 0 : index
    %c0_10 = arith.constant 0 : index
    %8 = vector.load %arg2[%c0_8, %c0_9, %c0_10] : memref<3x32x128xf32, #tpu.memory_space<vmem>>, vector<1x32x128xf32>
    %9 = vector.shape_cast %8 : vector<1x32x128xf32> to vector<32x128xf32>
    %c1_11 = arith.constant 1 : index
    %c0_12 = arith.constant 0 : index
    %c0_13 = arith.constant 0 : index
    %10 = vector.load %arg2[%c1_11, %c0_12, %c0_13] : memref<3x32x128xf32, #tpu.memory_space<vmem>>, vector<1x32x128xf32>
    %11 = vector.shape_cast %10 : vector<1x32x128xf32> to vector<32x128xf32>
    %c2_14 = arith.constant 2 : index
    %c0_15 = arith.constant 0 : index
    %c0_16 = arith.constant 0 : index
    %12 = vector.load %arg2[%c2_14, %c0_15, %c0_16] : memref<3x32x128xf32, #tpu.memory_space<vmem>>, vector<1x32x128xf32>
    %13 = vector.shape_cast %12 : vector<1x32x128xf32> to vector<32x128xf32>
    %c0_17 = arith.constant 0 : index
    %c0_18 = arith.constant 0 : index
    %c0_19 = arith.constant 0 : index
    %14 = vector.load %arg4[%c0_17, %c0_18, %c0_19] : memref<4x1x128xf32, #tpu.memory_space<vmem>>, vector<1x1x128xf32>
    %15 = vector.shape_cast %14 : vector<1x1x128xf32> to vector<1x128xf32>
    %c1_20 = arith.constant 1 : index
    %c0_21 = arith.constant 0 : index
    %c0_22 = arith.constant 0 : index
    %16 = vector.load %arg4[%c1_20, %c0_21, %c0_22] : memref<4x1x128xf32, #tpu.memory_space<vmem>>, vector<1x1x128xf32>
    %17 = vector.shape_cast %16 : vector<1x1x128xf32> to vector<1x128xf32>
    %c2_23 = arith.constant 2 : index
    %c0_24 = arith.constant 0 : index
    %c0_25 = arith.constant 0 : index
    %18 = vector.load %arg4[%c2_23, %c0_24, %c0_25] : memref<4x1x128xf32, #tpu.memory_space<vmem>>, vector<1x1x128xf32>
    %19 = vector.shape_cast %18 : vector<1x1x128xf32> to vector<1x128xf32>
    %c3_26 = arith.constant 3 : index
    %c0_27 = arith.constant 0 : index
    %c0_28 = arith.constant 0 : index
    %20 = vector.load %arg4[%c3_26, %c0_27, %c0_28] : memref<4x1x128xf32, #tpu.memory_space<vmem>>, vector<1x1x128xf32>
    %21 = vector.shape_cast %20 : vector<1x1x128xf32> to vector<1x128xf32>
    %c0_29 = arith.constant 0 : index
    %c0_30 = arith.constant 0 : index
    %22 = vector.load %arg0[%c0_29, %c0_30] : memref<64x4xf32, #tpu.memory_space<vmem>>, vector<64x4xf32>
    %c0_31 = arith.constant 0 : index
    %c0_32 = arith.constant 0 : index
    %23 = vector.load %arg1[%c0_31, %c0_32] : memref<4x128xf32, #tpu.memory_space<vmem>>, vector<4x128xf32>
    %cst = arith.constant dense<0.000000e+00> : vector<64x128xf32>
    %24 = tpu.matmul %22, %23, %cst {dimension_numbers = #tpu.dot_dimension_numbers<[1], [0], [0], [1], [0, 0, 1, 1], [], []>} : vector<64x4xf32>, vector<4x128xf32>, vector<64x128xf32> -> vector<64x128xf32>
    %25 = vector.broadcast %15 : vector<1x128xf32> to vector<64x128xf32>
    %26 = arith.addf %24, %25 : vector<64x128xf32>
    %cst_33 = arith.constant 0.000000e+00 : f32
    %27 = vector.broadcast %cst_33 : f32 to vector<8x32xf32>
    %cst_34 = arith.constant 0.000000e+00 : f32
    %28 = vector.broadcast %cst_34 : f32 to vector<8x32xf32>
    %cst_35 = arith.constant 0.000000e+00 : f32
    %29 = vector.broadcast %cst_35 : f32 to vector<8x32xf32>
    %cst_36 = arith.constant 0.000000e+00 : f32
    %30 = vector.broadcast %cst_36 : f32 to vector<8x32xf32>
    %cst_37 = arith.constant 0.000000e+00 : f32
    %31 = vector.broadcast %cst_37 : f32 to vector<8x32xf32>
    %cst_38 = arith.constant 0.000000e+00 : f32
    %32 = vector.broadcast %cst_38 : f32 to vector<8x32xf32>
    %cst_39 = arith.constant 0.000000e+00 : f32
    %33 = vector.broadcast %cst_39 : f32 to vector<8x32xf32>
    %cst_40 = arith.constant 0.000000e+00 : f32
    %34 = vector.broadcast %cst_40 : f32 to vector<8x32xf32>
    %35 = vector.extract_strided_slice %26 {offsets = [0, 0], sizes = [8, 128], strides = [1, 1]} : vector<64x128xf32> to vector<8x128xf32>
    %cst_41 = arith.constant dense<0.000000e+00> : vector<8x128xf32>
    %36 = tpu.matmul %27, %1, %cst_41 {dimension_numbers = #tpu.dot_dimension_numbers<[1], [0], [0], [1], [0, 0, 1, 1], [], []>} : vector<8x32xf32>, vector<32x128xf32>, vector<8x128xf32> -> vector<8x128xf32>
    %37 = arith.addf %35, %36 : vector<8x128xf32>
    %38 = arith.negf %37 : vector<8x128xf32>
    %39 = math.exp %38 : vector<8x128xf32>
    %cst_42 = arith.constant 1.000000e+00 : f32
    %40 = vector.broadcast %cst_42 : f32 to vector<8x128xf32>
    %41 = arith.addf %40, %39 : vector<8x128xf32>
    %42 = arith.divf %40, %41 : vector<8x128xf32>
    %43 = math.tanh %37 : vector<8x128xf32>
    %44 = vector.extract_strided_slice %42 {offsets = [0, 0], sizes = [8, 32], strides = [1, 1]} : vector<8x128xf32> to vector<8x32xf32>
    %45 = vector.extract_strided_slice %42 {offsets = [0, 32], sizes = [8, 32], strides = [1, 1]} : vector<8x128xf32> to vector<8x32xf32>
    %46 = vector.extract_strided_slice %42 {offsets = [0, 96], sizes = [8, 32], strides = [1, 1]} : vector<8x128xf32> to vector<8x32xf32>
    %47 = vector.extract_strided_slice %43 {offsets = [0, 64], sizes = [8, 32], strides = [1, 1]} : vector<8x128xf32> to vector<8x32xf32>
    %48 = arith.mulf %45, %31 : vector<8x32xf32>
    %49 = arith.mulf %44, %47 : vector<8x32xf32>
    %50 = arith.addf %48, %49 : vector<8x32xf32>
    %51 = math.tanh %50 : vector<8x32xf32>
    %52 = arith.mulf %46, %51 : vector<8x32xf32>
    %cst_43 = arith.constant dense<0.000000e+00> : vector<8x128xf32>
    %53 = tpu.matmul %52, %9, %cst_43 {dimension_numbers = #tpu.dot_dimension_numbers<[1], [0], [0], [1], [0, 0, 1, 1], [], []>} : vector<8x32xf32>, vector<32x128xf32>, vector<8x128xf32> -> vector<8x128xf32>
    %cst_44 = arith.constant dense<0.000000e+00> : vector<8x128xf32>
    %54 = tpu.matmul %28, %3, %cst_44 {dimension_numbers = #tpu.dot_dimension_numbers<[1], [0], [0], [1], [0, 0, 1, 1], [], []>} : vector<8x32xf32>, vector<32x128xf32>, vector<8x128xf32> -> vector<8x128xf32>
    %55 = arith.addf %53, %54 : vector<8x128xf32>
    %56 = vector.broadcast %17 : vector<1x128xf32> to vector<8x128xf32>
    %57 = arith.addf %55, %56 : vector<8x128xf32>
    %58 = arith.negf %57 : vector<8x128xf32>
    %59 = math.exp %58 : vector<8x128xf32>
    %cst_45 = arith.constant 1.000000e+00 : f32
    %60 = vector.broadcast %cst_45 : f32 to vector<8x128xf32>
    %61 = arith.addf %60, %59 : vector<8x128xf32>
    %62 = arith.divf %60, %61 : vector<8x128xf32>
    %63 = math.tanh %57 : vector<8x128xf32>
    %64 = vector.extract_strided_slice %62 {offsets = [0, 0], sizes = [8, 32], strides = [1, 1]} : vector<8x128xf32> to vector<8x32xf32>
    %65 = vector.extract_strided_slice %62 {offsets = [0, 32], sizes = [8, 32], strides = [1, 1]} : vector<8x128xf32> to vector<8x32xf32>
    %66 = vector.extract_strided_slice %62 {offsets = [0, 96], sizes = [8, 32], strides = [1, 1]} : vector<8x128xf32> to vector<8x32xf32>
    %67 = vector.extract_strided_slice %63 {offsets = [0, 64], sizes = [8, 32], strides = [1, 1]} : vector<8x128xf32> to vector<8x32xf32>
    %68 = arith.mulf %65, %32 : vector<8x32xf32>
    %69 = arith.mulf %64, %67 : vector<8x32xf32>
    %70 = arith.addf %68, %69 : vector<8x32xf32>
    %71 = math.tanh %70 : vector<8x32xf32>
    %72 = arith.mulf %66, %71 : vector<8x32xf32>
    %73 = vector.extract_strided_slice %26 {offsets = [8, 0], sizes = [8, 128], strides = [1, 1]} : vector<64x128xf32> to vector<8x128xf32>
    %cst_46 = arith.constant dense<0.000000e+00> : vector<8x128xf32>
    %74 = tpu.matmul %52, %1, %cst_46 {dimension_numbers = #tpu.dot_dimension_numbers<[1], [0], [0], [1], [0, 0, 1, 1], [], []>} : vector<8x32xf32>, vector<32x128xf32>, vector<8x128xf32> -> vector<8x128xf32>
    %75 = arith.addf %73, %74 : vector<8x128xf32>
    %76 = arith.negf %75 : vector<8x128xf32>
    %77 = math.exp %76 : vector<8x128xf32>
    %cst_47 = arith.constant 1.000000e+00 : f32
    %78 = vector.broadcast %cst_47 : f32 to vector<8x128xf32>
    %79 = arith.addf %78, %77 : vector<8x128xf32>
    %80 = arith.divf %78, %79 : vector<8x128xf32>
    %81 = math.tanh %75 : vector<8x128xf32>
    %82 = vector.extract_strided_slice %80 {offsets = [0, 0], sizes = [8, 32], strides = [1, 1]} : vector<8x128xf32> to vector<8x32xf32>
    %83 = vector.extract_strided_slice %80 {offsets = [0, 32], sizes = [8, 32], strides = [1, 1]} : vector<8x128xf32> to vector<8x32xf32>
    %84 = vector.extract_strided_slice %80 {offsets = [0, 96], sizes = [8, 32], strides = [1, 1]} : vector<8x128xf32> to vector<8x32xf32>
    %85 = vector.extract_strided_slice %81 {offsets = [0, 64], sizes = [8, 32], strides = [1, 1]} : vector<8x128xf32> to vector<8x32xf32>
    %86 = arith.mulf %83, %50 : vector<8x32xf32>
    %87 = arith.mulf %82, %85 : vector<8x32xf32>
    %88 = arith.addf %86, %87 : vector<8x32xf32>
    %89 = math.tanh %88 : vector<8x32xf32>
    %90 = arith.mulf %84, %89 : vector<8x32xf32>
    %cst_48 = arith.constant dense<0.000000e+00> : vector<8x128xf32>
    %91 = tpu.matmul %72, %11, %cst_48 {dimension_numbers = #tpu.dot_dimension_numbers<[1], [0], [0], [1], [0, 0, 1, 1], [], []>} : vector<8x32xf32>, vector<32x128xf32>, vector<8x128xf32> -> vector<8x128xf32>
    %cst_49 = arith.constant dense<0.000000e+00> : vector<8x128xf32>
    %92 = tpu.matmul %29, %5, %cst_49 {dimension_numbers = #tpu.dot_dimension_numbers<[1], [0], [0], [1], [0, 0, 1, 1], [], []>} : vector<8x32xf32>, vector<32x128xf32>, vector<8x128xf32> -> vector<8x128xf32>
    %93 = arith.addf %91, %92 : vector<8x128xf32>
    %94 = vector.broadcast %19 : vector<1x128xf32> to vector<8x128xf32>
    %95 = arith.addf %93, %94 : vector<8x128xf32>
    %96 = arith.negf %95 : vector<8x128xf32>
    %97 = math.exp %96 : vector<8x128xf32>
    %cst_50 = arith.constant 1.000000e+00 : f32
    %98 = vector.broadcast %cst_50 : f32 to vector<8x128xf32>
    %99 = arith.addf %98, %97 : vector<8x128xf32>
    %100 = arith.divf %98, %99 : vector<8x128xf32>
    %101 = math.tanh %95 : vector<8x128xf32>
    %102 = vector.extract_strided_slice %100 {offsets = [0, 0], sizes = [8, 32], strides = [1, 1]} : vector<8x128xf32> to vector<8x32xf32>
    %103 = vector.extract_strided_slice %100 {offsets = [0, 32], sizes = [8, 32], strides = [1, 1]} : vector<8x128xf32> to vector<8x32xf32>
    %104 = vector.extract_strided_slice %100 {offsets = [0, 96], sizes = [8, 32], strides = [1, 1]} : vector<8x128xf32> to vector<8x32xf32>
    %105 = vector.extract_strided_slice %101 {offsets = [0, 64], sizes = [8, 32], strides = [1, 1]} : vector<8x128xf32> to vector<8x32xf32>
    %106 = arith.mulf %103, %33 : vector<8x32xf32>
    %107 = arith.mulf %102, %105 : vector<8x32xf32>
    %108 = arith.addf %106, %107 : vector<8x32xf32>
    %109 = math.tanh %108 : vector<8x32xf32>
    %110 = arith.mulf %104, %109 : vector<8x32xf32>
    %cst_51 = arith.constant dense<0.000000e+00> : vector<8x128xf32>
    %111 = tpu.matmul %90, %9, %cst_51 {dimension_numbers = #tpu.dot_dimension_numbers<[1], [0], [0], [1], [0, 0, 1, 1], [], []>} : vector<8x32xf32>, vector<32x128xf32>, vector<8x128xf32> -> vector<8x128xf32>
    %cst_52 = arith.constant dense<0.000000e+00> : vector<8x128xf32>
    %112 = tpu.matmul %72, %3, %cst_52 {dimension_numbers = #tpu.dot_dimension_numbers<[1], [0], [0], [1], [0, 0, 1, 1], [], []>} : vector<8x32xf32>, vector<32x128xf32>, vector<8x128xf32> -> vector<8x128xf32>
    %113 = arith.addf %111, %112 : vector<8x128xf32>
    %114 = vector.broadcast %17 : vector<1x128xf32> to vector<8x128xf32>
    %115 = arith.addf %113, %114 : vector<8x128xf32>
    %116 = arith.negf %115 : vector<8x128xf32>
    %117 = math.exp %116 : vector<8x128xf32>
    %cst_53 = arith.constant 1.000000e+00 : f32
    %118 = vector.broadcast %cst_53 : f32 to vector<8x128xf32>
    %119 = arith.addf %118, %117 : vector<8x128xf32>
    %120 = arith.divf %118, %119 : vector<8x128xf32>
    %121 = math.tanh %115 : vector<8x128xf32>
    %122 = vector.extract_strided_slice %120 {offsets = [0, 0], sizes = [8, 32], strides = [1, 1]} : vector<8x128xf32> to vector<8x32xf32>
    %123 = vector.extract_strided_slice %120 {offsets = [0, 32], sizes = [8, 32], strides = [1, 1]} : vector<8x128xf32> to vector<8x32xf32>
    %124 = vector.extract_strided_slice %120 {offsets = [0, 96], sizes = [8, 32], strides = [1, 1]} : vector<8x128xf32> to vector<8x32xf32>
    %125 = vector.extract_strided_slice %121 {offsets = [0, 64], sizes = [8, 32], strides = [1, 1]} : vector<8x128xf32> to vector<8x32xf32>
    %126 = arith.mulf %123, %70 : vector<8x32xf32>
    %127 = arith.mulf %122, %125 : vector<8x32xf32>
    %128 = arith.addf %126, %127 : vector<8x32xf32>
    %129 = math.tanh %128 : vector<8x32xf32>
    %130 = arith.mulf %124, %129 : vector<8x32xf32>
    %131 = vector.extract_strided_slice %26 {offsets = [16, 0], sizes = [8, 128], strides = [1, 1]} : vector<64x128xf32> to vector<8x128xf32>
    %cst_54 = arith.constant dense<0.000000e+00> : vector<8x128xf32>
    %132 = tpu.matmul %90, %1, %cst_54 {dimension_numbers = #tpu.dot_dimension_numbers<[1], [0], [0], [1], [0, 0, 1, 1], [], []>} : vector<8x32xf32>, vector<32x128xf32>, vector<8x128xf32> -> vector<8x128xf32>
    %133 = arith.addf %131, %132 : vector<8x128xf32>
    %134 = arith.negf %133 : vector<8x128xf32>
    %135 = math.exp %134 : vector<8x128xf32>
    %cst_55 = arith.constant 1.000000e+00 : f32
    %136 = vector.broadcast %cst_55 : f32 to vector<8x128xf32>
    %137 = arith.addf %136, %135 : vector<8x128xf32>
    %138 = arith.divf %136, %137 : vector<8x128xf32>
    %139 = math.tanh %133 : vector<8x128xf32>
    %140 = vector.extract_strided_slice %138 {offsets = [0, 0], sizes = [8, 32], strides = [1, 1]} : vector<8x128xf32> to vector<8x32xf32>
    %141 = vector.extract_strided_slice %138 {offsets = [0, 32], sizes = [8, 32], strides = [1, 1]} : vector<8x128xf32> to vector<8x32xf32>
    %142 = vector.extract_strided_slice %138 {offsets = [0, 96], sizes = [8, 32], strides = [1, 1]} : vector<8x128xf32> to vector<8x32xf32>
    %143 = vector.extract_strided_slice %139 {offsets = [0, 64], sizes = [8, 32], strides = [1, 1]} : vector<8x128xf32> to vector<8x32xf32>
    %144 = arith.mulf %141, %88 : vector<8x32xf32>
    %145 = arith.mulf %140, %143 : vector<8x32xf32>
    %146 = arith.addf %144, %145 : vector<8x32xf32>
    %147 = math.tanh %146 : vector<8x32xf32>
    %148 = arith.mulf %142, %147 : vector<8x32xf32>
    %cst_56 = arith.constant dense<0.000000e+00> : vector<8x128xf32>
    %149 = tpu.matmul %110, %13, %cst_56 {dimension_numbers = #tpu.dot_dimension_numbers<[1], [0], [0], [1], [0, 0, 1, 1], [], []>} : vector<8x32xf32>, vector<32x128xf32>, vector<8x128xf32> -> vector<8x128xf32>
    %cst_57 = arith.constant dense<0.000000e+00> : vector<8x128xf32>
    %150 = tpu.matmul %30, %7, %cst_57 {dimension_numbers = #tpu.dot_dimension_numbers<[1], [0], [0], [1], [0, 0, 1, 1], [], []>} : vector<8x32xf32>, vector<32x128xf32>, vector<8x128xf32> -> vector<8x128xf32>
    %151 = arith.addf %149, %150 : vector<8x128xf32>
    %152 = vector.broadcast %21 : vector<1x128xf32> to vector<8x128xf32>
    %153 = arith.addf %151, %152 : vector<8x128xf32>
    %154 = arith.negf %153 : vector<8x128xf32>
    %155 = math.exp %154 : vector<8x128xf32>
    %cst_58 = arith.constant 1.000000e+00 : f32
    %156 = vector.broadcast %cst_58 : f32 to vector<8x128xf32>
    %157 = arith.addf %156, %155 : vector<8x128xf32>
    %158 = arith.divf %156, %157 : vector<8x128xf32>
    %159 = math.tanh %153 : vector<8x128xf32>
    %160 = vector.extract_strided_slice %158 {offsets = [0, 0], sizes = [8, 32], strides = [1, 1]} : vector<8x128xf32> to vector<8x32xf32>
    %161 = vector.extract_strided_slice %158 {offsets = [0, 32], sizes = [8, 32], strides = [1, 1]} : vector<8x128xf32> to vector<8x32xf32>
    %162 = vector.extract_strided_slice %158 {offsets = [0, 96], sizes = [8, 32], strides = [1, 1]} : vector<8x128xf32> to vector<8x32xf32>
    %163 = vector.extract_strided_slice %159 {offsets = [0, 64], sizes = [8, 32], strides = [1, 1]} : vector<8x128xf32> to vector<8x32xf32>
    %164 = arith.mulf %161, %34 : vector<8x32xf32>
    %165 = arith.mulf %160, %163 : vector<8x32xf32>
    %166 = arith.addf %164, %165 : vector<8x32xf32>
    %167 = math.tanh %166 : vector<8x32xf32>
    %168 = arith.mulf %162, %167 : vector<8x32xf32>
    %cst_59 = arith.constant dense<0.000000e+00> : vector<8x128xf32>
    %169 = tpu.matmul %130, %11, %cst_59 {dimension_numbers = #tpu.dot_dimension_numbers<[1], [0], [0], [1], [0, 0, 1, 1], [], []>} : vector<8x32xf32>, vector<32x128xf32>, vector<8x128xf32> -> vector<8x128xf32>
    %cst_60 = arith.constant dense<0.000000e+00> : vector<8x128xf32>
    %170 = tpu.matmul %110, %5, %cst_60 {dimension_numbers = #tpu.dot_dimension_numbers<[1], [0], [0], [1], [0, 0, 1, 1], [], []>} : vector<8x32xf32>, vector<32x128xf32>, vector<8x128xf32> -> vector<8x128xf32>
    %171 = arith.addf %169, %170 : vector<8x128xf32>
    %172 = vector.broadcast %19 : vector<1x128xf32> to vector<8x128xf32>
    %173 = arith.addf %171, %172 : vector<8x128xf32>
    %174 = arith.negf %173 : vector<8x128xf32>
    %175 = math.exp %174 : vector<8x128xf32>
    %cst_61 = arith.constant 1.000000e+00 : f32
    %176 = vector.broadcast %cst_61 : f32 to vector<8x128xf32>
    %177 = arith.addf %176, %175 : vector<8x128xf32>
    %178 = arith.divf %176, %177 : vector<8x128xf32>
    %179 = math.tanh %173 : vector<8x128xf32>
    %180 = vector.extract_strided_slice %178 {offsets = [0, 0], sizes = [8, 32], strides = [1, 1]} : vector<8x128xf32> to vector<8x32xf32>
    %181 = vector.extract_strided_slice %178 {offsets = [0, 32], sizes = [8, 32], strides = [1, 1]} : vector<8x128xf32> to vector<8x32xf32>
    %182 = vector.extract_strided_slice %178 {offsets = [0, 96], sizes = [8, 32], strides = [1, 1]} : vector<8x128xf32> to vector<8x32xf32>
    %183 = vector.extract_strided_slice %179 {offsets = [0, 64], sizes = [8, 32], strides = [1, 1]} : vector<8x128xf32> to vector<8x32xf32>
    %184 = arith.mulf %181, %108 : vector<8x32xf32>
    %185 = arith.mulf %180, %183 : vector<8x32xf32>
    %186 = arith.addf %184, %185 : vector<8x32xf32>
    %187 = math.tanh %186 : vector<8x32xf32>
    %188 = arith.mulf %182, %187 : vector<8x32xf32>
    %cst_62 = arith.constant dense<0.000000e+00> : vector<8x128xf32>
    %189 = tpu.matmul %148, %9, %cst_62 {dimension_numbers = #tpu.dot_dimension_numbers<[1], [0], [0], [1], [0, 0, 1, 1], [], []>} : vector<8x32xf32>, vector<32x128xf32>, vector<8x128xf32> -> vector<8x128xf32>
    %cst_63 = arith.constant dense<0.000000e+00> : vector<8x128xf32>
    %190 = tpu.matmul %130, %3, %cst_63 {dimension_numbers = #tpu.dot_dimension_numbers<[1], [0], [0], [1], [0, 0, 1, 1], [], []>} : vector<8x32xf32>, vector<32x128xf32>, vector<8x128xf32> -> vector<8x128xf32>
    %191 = arith.addf %189, %190 : vector<8x128xf32>
    %192 = vector.broadcast %17 : vector<1x128xf32> to vector<8x128xf32>
    %193 = arith.addf %191, %192 : vector<8x128xf32>
    %194 = arith.negf %193 : vector<8x128xf32>
    %195 = math.exp %194 : vector<8x128xf32>
    %cst_64 = arith.constant 1.000000e+00 : f32
    %196 = vector.broadcast %cst_64 : f32 to vector<8x128xf32>
    %197 = arith.addf %196, %195 : vector<8x128xf32>
    %198 = arith.divf %196, %197 : vector<8x128xf32>
    %199 = math.tanh %193 : vector<8x128xf32>
    %200 = vector.extract_strided_slice %198 {offsets = [0, 0], sizes = [8, 32], strides = [1, 1]} : vector<8x128xf32> to vector<8x32xf32>
    %201 = vector.extract_strided_slice %198 {offsets = [0, 32], sizes = [8, 32], strides = [1, 1]} : vector<8x128xf32> to vector<8x32xf32>
    %202 = vector.extract_strided_slice %198 {offsets = [0, 96], sizes = [8, 32], strides = [1, 1]} : vector<8x128xf32> to vector<8x32xf32>
    %203 = vector.extract_strided_slice %199 {offsets = [0, 64], sizes = [8, 32], strides = [1, 1]} : vector<8x128xf32> to vector<8x32xf32>
    %204 = arith.mulf %201, %128 : vector<8x32xf32>
    %205 = arith.mulf %200, %203 : vector<8x32xf32>
    %206 = arith.addf %204, %205 : vector<8x32xf32>
    %207 = math.tanh %206 : vector<8x32xf32>
    %208 = arith.mulf %202, %207 : vector<8x32xf32>
    %209 = vector.extract_strided_slice %26 {offsets = [24, 0], sizes = [8, 128], strides = [1, 1]} : vector<64x128xf32> to vector<8x128xf32>
    %cst_65 = arith.constant dense<0.000000e+00> : vector<8x128xf32>
    %210 = tpu.matmul %148, %1, %cst_65 {dimension_numbers = #tpu.dot_dimension_numbers<[1], [0], [0], [1], [0, 0, 1, 1], [], []>} : vector<8x32xf32>, vector<32x128xf32>, vector<8x128xf32> -> vector<8x128xf32>
    %211 = arith.addf %209, %210 : vector<8x128xf32>
    %212 = arith.negf %211 : vector<8x128xf32>
    %213 = math.exp %212 : vector<8x128xf32>
    %cst_66 = arith.constant 1.000000e+00 : f32
    %214 = vector.broadcast %cst_66 : f32 to vector<8x128xf32>
    %215 = arith.addf %214, %213 : vector<8x128xf32>
    %216 = arith.divf %214, %215 : vector<8x128xf32>
    %217 = math.tanh %211 : vector<8x128xf32>
    %218 = vector.extract_strided_slice %216 {offsets = [0, 0], sizes = [8, 32], strides = [1, 1]} : vector<8x128xf32> to vector<8x32xf32>
    %219 = vector.extract_strided_slice %216 {offsets = [0, 32], sizes = [8, 32], strides = [1, 1]} : vector<8x128xf32> to vector<8x32xf32>
    %220 = vector.extract_strided_slice %216 {offsets = [0, 96], sizes = [8, 32], strides = [1, 1]} : vector<8x128xf32> to vector<8x32xf32>
    %221 = vector.extract_strided_slice %217 {offsets = [0, 64], sizes = [8, 32], strides = [1, 1]} : vector<8x128xf32> to vector<8x32xf32>
    %222 = arith.mulf %219, %146 : vector<8x32xf32>
    %223 = arith.mulf %218, %221 : vector<8x32xf32>
    %224 = arith.addf %222, %223 : vector<8x32xf32>
    %225 = math.tanh %224 : vector<8x32xf32>
    %226 = arith.mulf %220, %225 : vector<8x32xf32>
    %cst_67 = arith.constant dense<0.000000e+00> : vector<8x128xf32>
    %227 = tpu.matmul %188, %13, %cst_67 {dimension_numbers = #tpu.dot_dimension_numbers<[1], [0], [0], [1], [0, 0, 1, 1], [], []>} : vector<8x32xf32>, vector<32x128xf32>, vector<8x128xf32> -> vector<8x128xf32>
    %cst_68 = arith.constant dense<0.000000e+00> : vector<8x128xf32>
    %228 = tpu.matmul %168, %7, %cst_68 {dimension_numbers = #tpu.dot_dimension_numbers<[1], [0], [0], [1], [0, 0, 1, 1], [], []>} : vector<8x32xf32>, vector<32x128xf32>, vector<8x128xf32> -> vector<8x128xf32>
    %229 = arith.addf %227, %228 : vector<8x128xf32>
    %230 = vector.broadcast %21 : vector<1x128xf32> to vector<8x128xf32>
    %231 = arith.addf %229, %230 : vector<8x128xf32>
    %232 = arith.negf %231 : vector<8x128xf32>
    %233 = math.exp %232 : vector<8x128xf32>
    %cst_69 = arith.constant 1.000000e+00 : f32
    %234 = vector.broadcast %cst_69 : f32 to vector<8x128xf32>
    %235 = arith.addf %234, %233 : vector<8x128xf32>
    %236 = arith.divf %234, %235 : vector<8x128xf32>
    %237 = math.tanh %231 : vector<8x128xf32>
    %238 = vector.extract_strided_slice %236 {offsets = [0, 0], sizes = [8, 32], strides = [1, 1]} : vector<8x128xf32> to vector<8x32xf32>
    %239 = vector.extract_strided_slice %236 {offsets = [0, 32], sizes = [8, 32], strides = [1, 1]} : vector<8x128xf32> to vector<8x32xf32>
    %240 = vector.extract_strided_slice %236 {offsets = [0, 96], sizes = [8, 32], strides = [1, 1]} : vector<8x128xf32> to vector<8x32xf32>
    %241 = vector.extract_strided_slice %237 {offsets = [0, 64], sizes = [8, 32], strides = [1, 1]} : vector<8x128xf32> to vector<8x32xf32>
    %242 = arith.mulf %239, %166 : vector<8x32xf32>
    %243 = arith.mulf %238, %241 : vector<8x32xf32>
    %244 = arith.addf %242, %243 : vector<8x32xf32>
    %245 = math.tanh %244 : vector<8x32xf32>
    %246 = arith.mulf %240, %245 : vector<8x32xf32>
    %cst_70 = arith.constant dense<0.000000e+00> : vector<8x128xf32>
    %247 = tpu.matmul %208, %11, %cst_70 {dimension_numbers = #tpu.dot_dimension_numbers<[1], [0], [0], [1], [0, 0, 1, 1], [], []>} : vector<8x32xf32>, vector<32x128xf32>, vector<8x128xf32> -> vector<8x128xf32>
    %cst_71 = arith.constant dense<0.000000e+00> : vector<8x128xf32>
    %248 = tpu.matmul %188, %5, %cst_71 {dimension_numbers = #tpu.dot_dimension_numbers<[1], [0], [0], [1], [0, 0, 1, 1], [], []>} : vector<8x32xf32>, vector<32x128xf32>, vector<8x128xf32> -> vector<8x128xf32>
    %249 = arith.addf %247, %248 : vector<8x128xf32>
    %250 = vector.broadcast %19 : vector<1x128xf32> to vector<8x128xf32>
    %251 = arith.addf %249, %250 : vector<8x128xf32>
    %252 = arith.negf %251 : vector<8x128xf32>
    %253 = math.exp %252 : vector<8x128xf32>
    %cst_72 = arith.constant 1.000000e+00 : f32
    %254 = vector.broadcast %cst_72 : f32 to vector<8x128xf32>
    %255 = arith.addf %254, %253 : vector<8x128xf32>
    %256 = arith.divf %254, %255 : vector<8x128xf32>
    %257 = math.tanh %251 : vector<8x128xf32>
    %258 = vector.extract_strided_slice %256 {offsets = [0, 0], sizes = [8, 32], strides = [1, 1]} : vector<8x128xf32> to vector<8x32xf32>
    %259 = vector.extract_strided_slice %256 {offsets = [0, 32], sizes = [8, 32], strides = [1, 1]} : vector<8x128xf32> to vector<8x32xf32>
    %260 = vector.extract_strided_slice %256 {offsets = [0, 96], sizes = [8, 32], strides = [1, 1]} : vector<8x128xf32> to vector<8x32xf32>
    %261 = vector.extract_strided_slice %257 {offsets = [0, 64], sizes = [8, 32], strides = [1, 1]} : vector<8x128xf32> to vector<8x32xf32>
    %262 = arith.mulf %259, %186 : vector<8x32xf32>
    %263 = arith.mulf %258, %261 : vector<8x32xf32>
    %264 = arith.addf %262, %263 : vector<8x32xf32>
    %265 = math.tanh %264 : vector<8x32xf32>
    %266 = arith.mulf %260, %265 : vector<8x32xf32>
    %cst_73 = arith.constant dense<0.000000e+00> : vector<8x128xf32>
    %267 = tpu.matmul %226, %9, %cst_73 {dimension_numbers = #tpu.dot_dimension_numbers<[1], [0], [0], [1], [0, 0, 1, 1], [], []>} : vector<8x32xf32>, vector<32x128xf32>, vector<8x128xf32> -> vector<8x128xf32>
    %cst_74 = arith.constant dense<0.000000e+00> : vector<8x128xf32>
    %268 = tpu.matmul %208, %3, %cst_74 {dimension_numbers = #tpu.dot_dimension_numbers<[1], [0], [0], [1], [0, 0, 1, 1], [], []>} : vector<8x32xf32>, vector<32x128xf32>, vector<8x128xf32> -> vector<8x128xf32>
    %269 = arith.addf %267, %268 : vector<8x128xf32>
    %270 = vector.broadcast %17 : vector<1x128xf32> to vector<8x128xf32>
    %271 = arith.addf %269, %270 : vector<8x128xf32>
    %272 = arith.negf %271 : vector<8x128xf32>
    %273 = math.exp %272 : vector<8x128xf32>
    %cst_75 = arith.constant 1.000000e+00 : f32
    %274 = vector.broadcast %cst_75 : f32 to vector<8x128xf32>
    %275 = arith.addf %274, %273 : vector<8x128xf32>
    %276 = arith.divf %274, %275 : vector<8x128xf32>
    %277 = math.tanh %271 : vector<8x128xf32>
    %278 = vector.extract_strided_slice %276 {offsets = [0, 0], sizes = [8, 32], strides = [1, 1]} : vector<8x128xf32> to vector<8x32xf32>
    %279 = vector.extract_strided_slice %276 {offsets = [0, 32], sizes = [8, 32], strides = [1, 1]} : vector<8x128xf32> to vector<8x32xf32>
    %280 = vector.extract_strided_slice %276 {offsets = [0, 96], sizes = [8, 32], strides = [1, 1]} : vector<8x128xf32> to vector<8x32xf32>
    %281 = vector.extract_strided_slice %277 {offsets = [0, 64], sizes = [8, 32], strides = [1, 1]} : vector<8x128xf32> to vector<8x32xf32>
    %282 = arith.mulf %279, %206 : vector<8x32xf32>
    %283 = arith.mulf %278, %281 : vector<8x32xf32>
    %284 = arith.addf %282, %283 : vector<8x32xf32>
    %285 = math.tanh %284 : vector<8x32xf32>
    %286 = arith.mulf %280, %285 : vector<8x32xf32>
    %287 = vector.extract_strided_slice %26 {offsets = [32, 0], sizes = [8, 128], strides = [1, 1]} : vector<64x128xf32> to vector<8x128xf32>
    %cst_76 = arith.constant dense<0.000000e+00> : vector<8x128xf32>
    %288 = tpu.matmul %226, %1, %cst_76 {dimension_numbers = #tpu.dot_dimension_numbers<[1], [0], [0], [1], [0, 0, 1, 1], [], []>} : vector<8x32xf32>, vector<32x128xf32>, vector<8x128xf32> -> vector<8x128xf32>
    %289 = arith.addf %287, %288 : vector<8x128xf32>
    %290 = arith.negf %289 : vector<8x128xf32>
    %291 = math.exp %290 : vector<8x128xf32>
    %cst_77 = arith.constant 1.000000e+00 : f32
    %292 = vector.broadcast %cst_77 : f32 to vector<8x128xf32>
    %293 = arith.addf %292, %291 : vector<8x128xf32>
    %294 = arith.divf %292, %293 : vector<8x128xf32>
    %295 = math.tanh %289 : vector<8x128xf32>
    %296 = vector.extract_strided_slice %294 {offsets = [0, 0], sizes = [8, 32], strides = [1, 1]} : vector<8x128xf32> to vector<8x32xf32>
    %297 = vector.extract_strided_slice %294 {offsets = [0, 32], sizes = [8, 32], strides = [1, 1]} : vector<8x128xf32> to vector<8x32xf32>
    %298 = vector.extract_strided_slice %294 {offsets = [0, 96], sizes = [8, 32], strides = [1, 1]} : vector<8x128xf32> to vector<8x32xf32>
    %299 = vector.extract_strided_slice %295 {offsets = [0, 64], sizes = [8, 32], strides = [1, 1]} : vector<8x128xf32> to vector<8x32xf32>
    %300 = arith.mulf %297, %224 : vector<8x32xf32>
    %301 = arith.mulf %296, %299 : vector<8x32xf32>
    %302 = arith.addf %300, %301 : vector<8x32xf32>
    %303 = math.tanh %302 : vector<8x32xf32>
    %304 = arith.mulf %298, %303 : vector<8x32xf32>
    %cst_78 = arith.constant dense<0.000000e+00> : vector<8x128xf32>
    %305 = tpu.matmul %266, %13, %cst_78 {dimension_numbers = #tpu.dot_dimension_numbers<[1], [0], [0], [1], [0, 0, 1, 1], [], []>} : vector<8x32xf32>, vector<32x128xf32>, vector<8x128xf32> -> vector<8x128xf32>
    %cst_79 = arith.constant dense<0.000000e+00> : vector<8x128xf32>
    %306 = tpu.matmul %246, %7, %cst_79 {dimension_numbers = #tpu.dot_dimension_numbers<[1], [0], [0], [1], [0, 0, 1, 1], [], []>} : vector<8x32xf32>, vector<32x128xf32>, vector<8x128xf32> -> vector<8x128xf32>
    %307 = arith.addf %305, %306 : vector<8x128xf32>
    %308 = vector.broadcast %21 : vector<1x128xf32> to vector<8x128xf32>
    %309 = arith.addf %307, %308 : vector<8x128xf32>
    %310 = arith.negf %309 : vector<8x128xf32>
    %311 = math.exp %310 : vector<8x128xf32>
    %cst_80 = arith.constant 1.000000e+00 : f32
    %312 = vector.broadcast %cst_80 : f32 to vector<8x128xf32>
    %313 = arith.addf %312, %311 : vector<8x128xf32>
    %314 = arith.divf %312, %313 : vector<8x128xf32>
    %315 = math.tanh %309 : vector<8x128xf32>
    %316 = vector.extract_strided_slice %314 {offsets = [0, 0], sizes = [8, 32], strides = [1, 1]} : vector<8x128xf32> to vector<8x32xf32>
    %317 = vector.extract_strided_slice %314 {offsets = [0, 32], sizes = [8, 32], strides = [1, 1]} : vector<8x128xf32> to vector<8x32xf32>
    %318 = vector.extract_strided_slice %314 {offsets = [0, 96], sizes = [8, 32], strides = [1, 1]} : vector<8x128xf32> to vector<8x32xf32>
    %319 = vector.extract_strided_slice %315 {offsets = [0, 64], sizes = [8, 32], strides = [1, 1]} : vector<8x128xf32> to vector<8x32xf32>
    %320 = arith.mulf %317, %244 : vector<8x32xf32>
    %321 = arith.mulf %316, %319 : vector<8x32xf32>
    %322 = arith.addf %320, %321 : vector<8x32xf32>
    %323 = math.tanh %322 : vector<8x32xf32>
    %324 = arith.mulf %318, %323 : vector<8x32xf32>
    %cst_81 = arith.constant dense<0.000000e+00> : vector<8x128xf32>
    %325 = tpu.matmul %286, %11, %cst_81 {dimension_numbers = #tpu.dot_dimension_numbers<[1], [0], [0], [1], [0, 0, 1, 1], [], []>} : vector<8x32xf32>, vector<32x128xf32>, vector<8x128xf32> -> vector<8x128xf32>
    %cst_82 = arith.constant dense<0.000000e+00> : vector<8x128xf32>
    %326 = tpu.matmul %266, %5, %cst_82 {dimension_numbers = #tpu.dot_dimension_numbers<[1], [0], [0], [1], [0, 0, 1, 1], [], []>} : vector<8x32xf32>, vector<32x128xf32>, vector<8x128xf32> -> vector<8x128xf32>
    %327 = arith.addf %325, %326 : vector<8x128xf32>
    %328 = vector.broadcast %19 : vector<1x128xf32> to vector<8x128xf32>
    %329 = arith.addf %327, %328 : vector<8x128xf32>
    %330 = arith.negf %329 : vector<8x128xf32>
    %331 = math.exp %330 : vector<8x128xf32>
    %cst_83 = arith.constant 1.000000e+00 : f32
    %332 = vector.broadcast %cst_83 : f32 to vector<8x128xf32>
    %333 = arith.addf %332, %331 : vector<8x128xf32>
    %334 = arith.divf %332, %333 : vector<8x128xf32>
    %335 = math.tanh %329 : vector<8x128xf32>
    %336 = vector.extract_strided_slice %334 {offsets = [0, 0], sizes = [8, 32], strides = [1, 1]} : vector<8x128xf32> to vector<8x32xf32>
    %337 = vector.extract_strided_slice %334 {offsets = [0, 32], sizes = [8, 32], strides = [1, 1]} : vector<8x128xf32> to vector<8x32xf32>
    %338 = vector.extract_strided_slice %334 {offsets = [0, 96], sizes = [8, 32], strides = [1, 1]} : vector<8x128xf32> to vector<8x32xf32>
    %339 = vector.extract_strided_slice %335 {offsets = [0, 64], sizes = [8, 32], strides = [1, 1]} : vector<8x128xf32> to vector<8x32xf32>
    %340 = arith.mulf %337, %264 : vector<8x32xf32>
    %341 = arith.mulf %336, %339 : vector<8x32xf32>
    %342 = arith.addf %340, %341 : vector<8x32xf32>
    %343 = math.tanh %342 : vector<8x32xf32>
    %344 = arith.mulf %338, %343 : vector<8x32xf32>
    %cst_84 = arith.constant dense<0.000000e+00> : vector<8x128xf32>
    %345 = tpu.matmul %304, %9, %cst_84 {dimension_numbers = #tpu.dot_dimension_numbers<[1], [0], [0], [1], [0, 0, 1, 1], [], []>} : vector<8x32xf32>, vector<32x128xf32>, vector<8x128xf32> -> vector<8x128xf32>
    %cst_85 = arith.constant dense<0.000000e+00> : vector<8x128xf32>
    %346 = tpu.matmul %286, %3, %cst_85 {dimension_numbers = #tpu.dot_dimension_numbers<[1], [0], [0], [1], [0, 0, 1, 1], [], []>} : vector<8x32xf32>, vector<32x128xf32>, vector<8x128xf32> -> vector<8x128xf32>
    %347 = arith.addf %345, %346 : vector<8x128xf32>
    %348 = vector.broadcast %17 : vector<1x128xf32> to vector<8x128xf32>
    %349 = arith.addf %347, %348 : vector<8x128xf32>
    %350 = arith.negf %349 : vector<8x128xf32>
    %351 = math.exp %350 : vector<8x128xf32>
    %cst_86 = arith.constant 1.000000e+00 : f32
    %352 = vector.broadcast %cst_86 : f32 to vector<8x128xf32>
    %353 = arith.addf %352, %351 : vector<8x128xf32>
    %354 = arith.divf %352, %353 : vector<8x128xf32>
    %355 = math.tanh %349 : vector<8x128xf32>
    %356 = vector.extract_strided_slice %354 {offsets = [0, 0], sizes = [8, 32], strides = [1, 1]} : vector<8x128xf32> to vector<8x32xf32>
    %357 = vector.extract_strided_slice %354 {offsets = [0, 32], sizes = [8, 32], strides = [1, 1]} : vector<8x128xf32> to vector<8x32xf32>
    %358 = vector.extract_strided_slice %354 {offsets = [0, 96], sizes = [8, 32], strides = [1, 1]} : vector<8x128xf32> to vector<8x32xf32>
    %359 = vector.extract_strided_slice %355 {offsets = [0, 64], sizes = [8, 32], strides = [1, 1]} : vector<8x128xf32> to vector<8x32xf32>
    %360 = arith.mulf %357, %284 : vector<8x32xf32>
    %361 = arith.mulf %356, %359 : vector<8x32xf32>
    %362 = arith.addf %360, %361 : vector<8x32xf32>
    %363 = math.tanh %362 : vector<8x32xf32>
    %364 = arith.mulf %358, %363 : vector<8x32xf32>
    %365 = vector.extract_strided_slice %26 {offsets = [40, 0], sizes = [8, 128], strides = [1, 1]} : vector<64x128xf32> to vector<8x128xf32>
    %cst_87 = arith.constant dense<0.000000e+00> : vector<8x128xf32>
    %366 = tpu.matmul %304, %1, %cst_87 {dimension_numbers = #tpu.dot_dimension_numbers<[1], [0], [0], [1], [0, 0, 1, 1], [], []>} : vector<8x32xf32>, vector<32x128xf32>, vector<8x128xf32> -> vector<8x128xf32>
    %367 = arith.addf %365, %366 : vector<8x128xf32>
    %368 = arith.negf %367 : vector<8x128xf32>
    %369 = math.exp %368 : vector<8x128xf32>
    %cst_88 = arith.constant 1.000000e+00 : f32
    %370 = vector.broadcast %cst_88 : f32 to vector<8x128xf32>
    %371 = arith.addf %370, %369 : vector<8x128xf32>
    %372 = arith.divf %370, %371 : vector<8x128xf32>
    %373 = math.tanh %367 : vector<8x128xf32>
    %374 = vector.extract_strided_slice %372 {offsets = [0, 0], sizes = [8, 32], strides = [1, 1]} : vector<8x128xf32> to vector<8x32xf32>
    %375 = vector.extract_strided_slice %372 {offsets = [0, 32], sizes = [8, 32], strides = [1, 1]} : vector<8x128xf32> to vector<8x32xf32>
    %376 = vector.extract_strided_slice %372 {offsets = [0, 96], sizes = [8, 32], strides = [1, 1]} : vector<8x128xf32> to vector<8x32xf32>
    %377 = vector.extract_strided_slice %373 {offsets = [0, 64], sizes = [8, 32], strides = [1, 1]} : vector<8x128xf32> to vector<8x32xf32>
    %378 = arith.mulf %375, %302 : vector<8x32xf32>
    %379 = arith.mulf %374, %377 : vector<8x32xf32>
    %380 = arith.addf %378, %379 : vector<8x32xf32>
    %381 = math.tanh %380 : vector<8x32xf32>
    %382 = arith.mulf %376, %381 : vector<8x32xf32>
    %cst_89 = arith.constant dense<0.000000e+00> : vector<8x128xf32>
    %383 = tpu.matmul %344, %13, %cst_89 {dimension_numbers = #tpu.dot_dimension_numbers<[1], [0], [0], [1], [0, 0, 1, 1], [], []>} : vector<8x32xf32>, vector<32x128xf32>, vector<8x128xf32> -> vector<8x128xf32>
    %cst_90 = arith.constant dense<0.000000e+00> : vector<8x128xf32>
    %384 = tpu.matmul %324, %7, %cst_90 {dimension_numbers = #tpu.dot_dimension_numbers<[1], [0], [0], [1], [0, 0, 1, 1], [], []>} : vector<8x32xf32>, vector<32x128xf32>, vector<8x128xf32> -> vector<8x128xf32>
    %385 = arith.addf %383, %384 : vector<8x128xf32>
    %386 = vector.broadcast %21 : vector<1x128xf32> to vector<8x128xf32>
    %387 = arith.addf %385, %386 : vector<8x128xf32>
    %388 = arith.negf %387 : vector<8x128xf32>
    %389 = math.exp %388 : vector<8x128xf32>
    %cst_91 = arith.constant 1.000000e+00 : f32
    %390 = vector.broadcast %cst_91 : f32 to vector<8x128xf32>
    %391 = arith.addf %390, %389 : vector<8x128xf32>
    %392 = arith.divf %390, %391 : vector<8x128xf32>
    %393 = math.tanh %387 : vector<8x128xf32>
    %394 = vector.extract_strided_slice %392 {offsets = [0, 0], sizes = [8, 32], strides = [1, 1]} : vector<8x128xf32> to vector<8x32xf32>
    %395 = vector.extract_strided_slice %392 {offsets = [0, 32], sizes = [8, 32], strides = [1, 1]} : vector<8x128xf32> to vector<8x32xf32>
    %396 = vector.extract_strided_slice %392 {offsets = [0, 96], sizes = [8, 32], strides = [1, 1]} : vector<8x128xf32> to vector<8x32xf32>
    %397 = vector.extract_strided_slice %393 {offsets = [0, 64], sizes = [8, 32], strides = [1, 1]} : vector<8x128xf32> to vector<8x32xf32>
    %398 = arith.mulf %395, %322 : vector<8x32xf32>
    %399 = arith.mulf %394, %397 : vector<8x32xf32>
    %400 = arith.addf %398, %399 : vector<8x32xf32>
    %401 = math.tanh %400 : vector<8x32xf32>
    %402 = arith.mulf %396, %401 : vector<8x32xf32>
    %cst_92 = arith.constant dense<0.000000e+00> : vector<8x128xf32>
    %403 = tpu.matmul %364, %11, %cst_92 {dimension_numbers = #tpu.dot_dimension_numbers<[1], [0], [0], [1], [0, 0, 1, 1], [], []>} : vector<8x32xf32>, vector<32x128xf32>, vector<8x128xf32> -> vector<8x128xf32>
    %cst_93 = arith.constant dense<0.000000e+00> : vector<8x128xf32>
    %404 = tpu.matmul %344, %5, %cst_93 {dimension_numbers = #tpu.dot_dimension_numbers<[1], [0], [0], [1], [0, 0, 1, 1], [], []>} : vector<8x32xf32>, vector<32x128xf32>, vector<8x128xf32> -> vector<8x128xf32>
    %405 = arith.addf %403, %404 : vector<8x128xf32>
    %406 = vector.broadcast %19 : vector<1x128xf32> to vector<8x128xf32>
    %407 = arith.addf %405, %406 : vector<8x128xf32>
    %408 = arith.negf %407 : vector<8x128xf32>
    %409 = math.exp %408 : vector<8x128xf32>
    %cst_94 = arith.constant 1.000000e+00 : f32
    %410 = vector.broadcast %cst_94 : f32 to vector<8x128xf32>
    %411 = arith.addf %410, %409 : vector<8x128xf32>
    %412 = arith.divf %410, %411 : vector<8x128xf32>
    %413 = math.tanh %407 : vector<8x128xf32>
    %414 = vector.extract_strided_slice %412 {offsets = [0, 0], sizes = [8, 32], strides = [1, 1]} : vector<8x128xf32> to vector<8x32xf32>
    %415 = vector.extract_strided_slice %412 {offsets = [0, 32], sizes = [8, 32], strides = [1, 1]} : vector<8x128xf32> to vector<8x32xf32>
    %416 = vector.extract_strided_slice %412 {offsets = [0, 96], sizes = [8, 32], strides = [1, 1]} : vector<8x128xf32> to vector<8x32xf32>
    %417 = vector.extract_strided_slice %413 {offsets = [0, 64], sizes = [8, 32], strides = [1, 1]} : vector<8x128xf32> to vector<8x32xf32>
    %418 = arith.mulf %415, %342 : vector<8x32xf32>
    %419 = arith.mulf %414, %417 : vector<8x32xf32>
    %420 = arith.addf %418, %419 : vector<8x32xf32>
    %421 = math.tanh %420 : vector<8x32xf32>
    %422 = arith.mulf %416, %421 : vector<8x32xf32>
    %cst_95 = arith.constant dense<0.000000e+00> : vector<8x128xf32>
    %423 = tpu.matmul %382, %9, %cst_95 {dimension_numbers = #tpu.dot_dimension_numbers<[1], [0], [0], [1], [0, 0, 1, 1], [], []>} : vector<8x32xf32>, vector<32x128xf32>, vector<8x128xf32> -> vector<8x128xf32>
    %cst_96 = arith.constant dense<0.000000e+00> : vector<8x128xf32>
    %424 = tpu.matmul %364, %3, %cst_96 {dimension_numbers = #tpu.dot_dimension_numbers<[1], [0], [0], [1], [0, 0, 1, 1], [], []>} : vector<8x32xf32>, vector<32x128xf32>, vector<8x128xf32> -> vector<8x128xf32>
    %425 = arith.addf %423, %424 : vector<8x128xf32>
    %426 = vector.broadcast %17 : vector<1x128xf32> to vector<8x128xf32>
    %427 = arith.addf %425, %426 : vector<8x128xf32>
    %428 = arith.negf %427 : vector<8x128xf32>
    %429 = math.exp %428 : vector<8x128xf32>
    %cst_97 = arith.constant 1.000000e+00 : f32
    %430 = vector.broadcast %cst_97 : f32 to vector<8x128xf32>
    %431 = arith.addf %430, %429 : vector<8x128xf32>
    %432 = arith.divf %430, %431 : vector<8x128xf32>
    %433 = math.tanh %427 : vector<8x128xf32>
    %434 = vector.extract_strided_slice %432 {offsets = [0, 0], sizes = [8, 32], strides = [1, 1]} : vector<8x128xf32> to vector<8x32xf32>
    %435 = vector.extract_strided_slice %432 {offsets = [0, 32], sizes = [8, 32], strides = [1, 1]} : vector<8x128xf32> to vector<8x32xf32>
    %436 = vector.extract_strided_slice %432 {offsets = [0, 96], sizes = [8, 32], strides = [1, 1]} : vector<8x128xf32> to vector<8x32xf32>
    %437 = vector.extract_strided_slice %433 {offsets = [0, 64], sizes = [8, 32], strides = [1, 1]} : vector<8x128xf32> to vector<8x32xf32>
    %438 = arith.mulf %435, %362 : vector<8x32xf32>
    %439 = arith.mulf %434, %437 : vector<8x32xf32>
    %440 = arith.addf %438, %439 : vector<8x32xf32>
    %441 = math.tanh %440 : vector<8x32xf32>
    %442 = arith.mulf %436, %441 : vector<8x32xf32>
    %443 = vector.extract_strided_slice %26 {offsets = [48, 0], sizes = [8, 128], strides = [1, 1]} : vector<64x128xf32> to vector<8x128xf32>
    %cst_98 = arith.constant dense<0.000000e+00> : vector<8x128xf32>
    %444 = tpu.matmul %382, %1, %cst_98 {dimension_numbers = #tpu.dot_dimension_numbers<[1], [0], [0], [1], [0, 0, 1, 1], [], []>} : vector<8x32xf32>, vector<32x128xf32>, vector<8x128xf32> -> vector<8x128xf32>
    %445 = arith.addf %443, %444 : vector<8x128xf32>
    %446 = arith.negf %445 : vector<8x128xf32>
    %447 = math.exp %446 : vector<8x128xf32>
    %cst_99 = arith.constant 1.000000e+00 : f32
    %448 = vector.broadcast %cst_99 : f32 to vector<8x128xf32>
    %449 = arith.addf %448, %447 : vector<8x128xf32>
    %450 = arith.divf %448, %449 : vector<8x128xf32>
    %451 = math.tanh %445 : vector<8x128xf32>
    %452 = vector.extract_strided_slice %450 {offsets = [0, 0], sizes = [8, 32], strides = [1, 1]} : vector<8x128xf32> to vector<8x32xf32>
    %453 = vector.extract_strided_slice %450 {offsets = [0, 32], sizes = [8, 32], strides = [1, 1]} : vector<8x128xf32> to vector<8x32xf32>
    %454 = vector.extract_strided_slice %450 {offsets = [0, 96], sizes = [8, 32], strides = [1, 1]} : vector<8x128xf32> to vector<8x32xf32>
    %455 = vector.extract_strided_slice %451 {offsets = [0, 64], sizes = [8, 32], strides = [1, 1]} : vector<8x128xf32> to vector<8x32xf32>
    %456 = arith.mulf %453, %380 : vector<8x32xf32>
    %457 = arith.mulf %452, %455 : vector<8x32xf32>
    %458 = arith.addf %456, %457 : vector<8x32xf32>
    %459 = math.tanh %458 : vector<8x32xf32>
    %460 = arith.mulf %454, %459 : vector<8x32xf32>
    %cst_100 = arith.constant dense<0.000000e+00> : vector<8x128xf32>
    %461 = tpu.matmul %422, %13, %cst_100 {dimension_numbers = #tpu.dot_dimension_numbers<[1], [0], [0], [1], [0, 0, 1, 1], [], []>} : vector<8x32xf32>, vector<32x128xf32>, vector<8x128xf32> -> vector<8x128xf32>
    %cst_101 = arith.constant dense<0.000000e+00> : vector<8x128xf32>
    %462 = tpu.matmul %402, %7, %cst_101 {dimension_numbers = #tpu.dot_dimension_numbers<[1], [0], [0], [1], [0, 0, 1, 1], [], []>} : vector<8x32xf32>, vector<32x128xf32>, vector<8x128xf32> -> vector<8x128xf32>
    %463 = arith.addf %461, %462 : vector<8x128xf32>
    %464 = vector.broadcast %21 : vector<1x128xf32> to vector<8x128xf32>
    %465 = arith.addf %463, %464 : vector<8x128xf32>
    %466 = arith.negf %465 : vector<8x128xf32>
    %467 = math.exp %466 : vector<8x128xf32>
    %cst_102 = arith.constant 1.000000e+00 : f32
    %468 = vector.broadcast %cst_102 : f32 to vector<8x128xf32>
    %469 = arith.addf %468, %467 : vector<8x128xf32>
    %470 = arith.divf %468, %469 : vector<8x128xf32>
    %471 = math.tanh %465 : vector<8x128xf32>
    %472 = vector.extract_strided_slice %470 {offsets = [0, 0], sizes = [8, 32], strides = [1, 1]} : vector<8x128xf32> to vector<8x32xf32>
    %473 = vector.extract_strided_slice %470 {offsets = [0, 32], sizes = [8, 32], strides = [1, 1]} : vector<8x128xf32> to vector<8x32xf32>
    %474 = vector.extract_strided_slice %470 {offsets = [0, 96], sizes = [8, 32], strides = [1, 1]} : vector<8x128xf32> to vector<8x32xf32>
    %475 = vector.extract_strided_slice %471 {offsets = [0, 64], sizes = [8, 32], strides = [1, 1]} : vector<8x128xf32> to vector<8x32xf32>
    %476 = arith.mulf %473, %400 : vector<8x32xf32>
    %477 = arith.mulf %472, %475 : vector<8x32xf32>
    %478 = arith.addf %476, %477 : vector<8x32xf32>
    %479 = math.tanh %478 : vector<8x32xf32>
    %480 = arith.mulf %474, %479 : vector<8x32xf32>
    %cst_103 = arith.constant dense<0.000000e+00> : vector<8x128xf32>
    %481 = tpu.matmul %442, %11, %cst_103 {dimension_numbers = #tpu.dot_dimension_numbers<[1], [0], [0], [1], [0, 0, 1, 1], [], []>} : vector<8x32xf32>, vector<32x128xf32>, vector<8x128xf32> -> vector<8x128xf32>
    %cst_104 = arith.constant dense<0.000000e+00> : vector<8x128xf32>
    %482 = tpu.matmul %422, %5, %cst_104 {dimension_numbers = #tpu.dot_dimension_numbers<[1], [0], [0], [1], [0, 0, 1, 1], [], []>} : vector<8x32xf32>, vector<32x128xf32>, vector<8x128xf32> -> vector<8x128xf32>
    %483 = arith.addf %481, %482 : vector<8x128xf32>
    %484 = vector.broadcast %19 : vector<1x128xf32> to vector<8x128xf32>
    %485 = arith.addf %483, %484 : vector<8x128xf32>
    %486 = arith.negf %485 : vector<8x128xf32>
    %487 = math.exp %486 : vector<8x128xf32>
    %cst_105 = arith.constant 1.000000e+00 : f32
    %488 = vector.broadcast %cst_105 : f32 to vector<8x128xf32>
    %489 = arith.addf %488, %487 : vector<8x128xf32>
    %490 = arith.divf %488, %489 : vector<8x128xf32>
    %491 = math.tanh %485 : vector<8x128xf32>
    %492 = vector.extract_strided_slice %490 {offsets = [0, 0], sizes = [8, 32], strides = [1, 1]} : vector<8x128xf32> to vector<8x32xf32>
    %493 = vector.extract_strided_slice %490 {offsets = [0, 32], sizes = [8, 32], strides = [1, 1]} : vector<8x128xf32> to vector<8x32xf32>
    %494 = vector.extract_strided_slice %490 {offsets = [0, 96], sizes = [8, 32], strides = [1, 1]} : vector<8x128xf32> to vector<8x32xf32>
    %495 = vector.extract_strided_slice %491 {offsets = [0, 64], sizes = [8, 32], strides = [1, 1]} : vector<8x128xf32> to vector<8x32xf32>
    %496 = arith.mulf %493, %420 : vector<8x32xf32>
    %497 = arith.mulf %492, %495 : vector<8x32xf32>
    %498 = arith.addf %496, %497 : vector<8x32xf32>
    %499 = math.tanh %498 : vector<8x32xf32>
    %500 = arith.mulf %494, %499 : vector<8x32xf32>
    %cst_106 = arith.constant dense<0.000000e+00> : vector<8x128xf32>
    %501 = tpu.matmul %460, %9, %cst_106 {dimension_numbers = #tpu.dot_dimension_numbers<[1], [0], [0], [1], [0, 0, 1, 1], [], []>} : vector<8x32xf32>, vector<32x128xf32>, vector<8x128xf32> -> vector<8x128xf32>
    %cst_107 = arith.constant dense<0.000000e+00> : vector<8x128xf32>
    %502 = tpu.matmul %442, %3, %cst_107 {dimension_numbers = #tpu.dot_dimension_numbers<[1], [0], [0], [1], [0, 0, 1, 1], [], []>} : vector<8x32xf32>, vector<32x128xf32>, vector<8x128xf32> -> vector<8x128xf32>
    %503 = arith.addf %501, %502 : vector<8x128xf32>
    %504 = vector.broadcast %17 : vector<1x128xf32> to vector<8x128xf32>
    %505 = arith.addf %503, %504 : vector<8x128xf32>
    %506 = arith.negf %505 : vector<8x128xf32>
    %507 = math.exp %506 : vector<8x128xf32>
    %cst_108 = arith.constant 1.000000e+00 : f32
    %508 = vector.broadcast %cst_108 : f32 to vector<8x128xf32>
    %509 = arith.addf %508, %507 : vector<8x128xf32>
    %510 = arith.divf %508, %509 : vector<8x128xf32>
    %511 = math.tanh %505 : vector<8x128xf32>
    %512 = vector.extract_strided_slice %510 {offsets = [0, 0], sizes = [8, 32], strides = [1, 1]} : vector<8x128xf32> to vector<8x32xf32>
    %513 = vector.extract_strided_slice %510 {offsets = [0, 32], sizes = [8, 32], strides = [1, 1]} : vector<8x128xf32> to vector<8x32xf32>
    %514 = vector.extract_strided_slice %510 {offsets = [0, 96], sizes = [8, 32], strides = [1, 1]} : vector<8x128xf32> to vector<8x32xf32>
    %515 = vector.extract_strided_slice %511 {offsets = [0, 64], sizes = [8, 32], strides = [1, 1]} : vector<8x128xf32> to vector<8x32xf32>
    %516 = arith.mulf %513, %440 : vector<8x32xf32>
    %517 = arith.mulf %512, %515 : vector<8x32xf32>
    %518 = arith.addf %516, %517 : vector<8x32xf32>
    %519 = math.tanh %518 : vector<8x32xf32>
    %520 = arith.mulf %514, %519 : vector<8x32xf32>
    %521 = vector.extract_strided_slice %26 {offsets = [56, 0], sizes = [8, 128], strides = [1, 1]} : vector<64x128xf32> to vector<8x128xf32>
    %cst_109 = arith.constant dense<0.000000e+00> : vector<8x128xf32>
    %522 = tpu.matmul %460, %1, %cst_109 {dimension_numbers = #tpu.dot_dimension_numbers<[1], [0], [0], [1], [0, 0, 1, 1], [], []>} : vector<8x32xf32>, vector<32x128xf32>, vector<8x128xf32> -> vector<8x128xf32>
    %523 = arith.addf %521, %522 : vector<8x128xf32>
    %524 = arith.negf %523 : vector<8x128xf32>
    %525 = math.exp %524 : vector<8x128xf32>
    %cst_110 = arith.constant 1.000000e+00 : f32
    %526 = vector.broadcast %cst_110 : f32 to vector<8x128xf32>
    %527 = arith.addf %526, %525 : vector<8x128xf32>
    %528 = arith.divf %526, %527 : vector<8x128xf32>
    %529 = math.tanh %523 : vector<8x128xf32>
    %530 = vector.extract_strided_slice %528 {offsets = [0, 0], sizes = [8, 32], strides = [1, 1]} : vector<8x128xf32> to vector<8x32xf32>
    %531 = vector.extract_strided_slice %528 {offsets = [0, 32], sizes = [8, 32], strides = [1, 1]} : vector<8x128xf32> to vector<8x32xf32>
    %532 = vector.extract_strided_slice %528 {offsets = [0, 96], sizes = [8, 32], strides = [1, 1]} : vector<8x128xf32> to vector<8x32xf32>
    %533 = vector.extract_strided_slice %529 {offsets = [0, 64], sizes = [8, 32], strides = [1, 1]} : vector<8x128xf32> to vector<8x32xf32>
    %534 = arith.mulf %531, %458 : vector<8x32xf32>
    %535 = arith.mulf %530, %533 : vector<8x32xf32>
    %536 = arith.addf %534, %535 : vector<8x32xf32>
    %537 = math.tanh %536 : vector<8x32xf32>
    %538 = arith.mulf %532, %537 : vector<8x32xf32>
    %cst_111 = arith.constant dense<0.000000e+00> : vector<8x128xf32>
    %539 = tpu.matmul %500, %13, %cst_111 {dimension_numbers = #tpu.dot_dimension_numbers<[1], [0], [0], [1], [0, 0, 1, 1], [], []>} : vector<8x32xf32>, vector<32x128xf32>, vector<8x128xf32> -> vector<8x128xf32>
    %cst_112 = arith.constant dense<0.000000e+00> : vector<8x128xf32>
    %540 = tpu.matmul %480, %7, %cst_112 {dimension_numbers = #tpu.dot_dimension_numbers<[1], [0], [0], [1], [0, 0, 1, 1], [], []>} : vector<8x32xf32>, vector<32x128xf32>, vector<8x128xf32> -> vector<8x128xf32>
    %541 = arith.addf %539, %540 : vector<8x128xf32>
    %542 = vector.broadcast %21 : vector<1x128xf32> to vector<8x128xf32>
    %543 = arith.addf %541, %542 : vector<8x128xf32>
    %544 = arith.negf %543 : vector<8x128xf32>
    %545 = math.exp %544 : vector<8x128xf32>
    %cst_113 = arith.constant 1.000000e+00 : f32
    %546 = vector.broadcast %cst_113 : f32 to vector<8x128xf32>
    %547 = arith.addf %546, %545 : vector<8x128xf32>
    %548 = arith.divf %546, %547 : vector<8x128xf32>
    %549 = math.tanh %543 : vector<8x128xf32>
    %550 = vector.extract_strided_slice %548 {offsets = [0, 0], sizes = [8, 32], strides = [1, 1]} : vector<8x128xf32> to vector<8x32xf32>
    %551 = vector.extract_strided_slice %548 {offsets = [0, 32], sizes = [8, 32], strides = [1, 1]} : vector<8x128xf32> to vector<8x32xf32>
    %552 = vector.extract_strided_slice %548 {offsets = [0, 96], sizes = [8, 32], strides = [1, 1]} : vector<8x128xf32> to vector<8x32xf32>
    %553 = vector.extract_strided_slice %549 {offsets = [0, 64], sizes = [8, 32], strides = [1, 1]} : vector<8x128xf32> to vector<8x32xf32>
    %554 = arith.mulf %551, %478 : vector<8x32xf32>
    %555 = arith.mulf %550, %553 : vector<8x32xf32>
    %556 = arith.addf %554, %555 : vector<8x32xf32>
    %557 = math.tanh %556 : vector<8x32xf32>
    %558 = arith.mulf %552, %557 : vector<8x32xf32>
    %cst_114 = arith.constant dense<0.000000e+00> : vector<8x128xf32>
    %559 = tpu.matmul %520, %11, %cst_114 {dimension_numbers = #tpu.dot_dimension_numbers<[1], [0], [0], [1], [0, 0, 1, 1], [], []>} : vector<8x32xf32>, vector<32x128xf32>, vector<8x128xf32> -> vector<8x128xf32>
    %cst_115 = arith.constant dense<0.000000e+00> : vector<8x128xf32>
    %560 = tpu.matmul %500, %5, %cst_115 {dimension_numbers = #tpu.dot_dimension_numbers<[1], [0], [0], [1], [0, 0, 1, 1], [], []>} : vector<8x32xf32>, vector<32x128xf32>, vector<8x128xf32> -> vector<8x128xf32>
    %561 = arith.addf %559, %560 : vector<8x128xf32>
    %562 = vector.broadcast %19 : vector<1x128xf32> to vector<8x128xf32>
    %563 = arith.addf %561, %562 : vector<8x128xf32>
    %564 = arith.negf %563 : vector<8x128xf32>
    %565 = math.exp %564 : vector<8x128xf32>
    %cst_116 = arith.constant 1.000000e+00 : f32
    %566 = vector.broadcast %cst_116 : f32 to vector<8x128xf32>
    %567 = arith.addf %566, %565 : vector<8x128xf32>
    %568 = arith.divf %566, %567 : vector<8x128xf32>
    %569 = math.tanh %563 : vector<8x128xf32>
    %570 = vector.extract_strided_slice %568 {offsets = [0, 0], sizes = [8, 32], strides = [1, 1]} : vector<8x128xf32> to vector<8x32xf32>
    %571 = vector.extract_strided_slice %568 {offsets = [0, 32], sizes = [8, 32], strides = [1, 1]} : vector<8x128xf32> to vector<8x32xf32>
    %572 = vector.extract_strided_slice %568 {offsets = [0, 96], sizes = [8, 32], strides = [1, 1]} : vector<8x128xf32> to vector<8x32xf32>
    %573 = vector.extract_strided_slice %569 {offsets = [0, 64], sizes = [8, 32], strides = [1, 1]} : vector<8x128xf32> to vector<8x32xf32>
    %574 = arith.mulf %571, %498 : vector<8x32xf32>
    %575 = arith.mulf %570, %573 : vector<8x32xf32>
    %576 = arith.addf %574, %575 : vector<8x32xf32>
    %577 = math.tanh %576 : vector<8x32xf32>
    %578 = arith.mulf %572, %577 : vector<8x32xf32>
    %cst_117 = arith.constant dense<0.000000e+00> : vector<8x128xf32>
    %579 = tpu.matmul %538, %9, %cst_117 {dimension_numbers = #tpu.dot_dimension_numbers<[1], [0], [0], [1], [0, 0, 1, 1], [], []>} : vector<8x32xf32>, vector<32x128xf32>, vector<8x128xf32> -> vector<8x128xf32>
    %cst_118 = arith.constant dense<0.000000e+00> : vector<8x128xf32>
    %580 = tpu.matmul %520, %3, %cst_118 {dimension_numbers = #tpu.dot_dimension_numbers<[1], [0], [0], [1], [0, 0, 1, 1], [], []>} : vector<8x32xf32>, vector<32x128xf32>, vector<8x128xf32> -> vector<8x128xf32>
    %581 = arith.addf %579, %580 : vector<8x128xf32>
    %582 = vector.broadcast %17 : vector<1x128xf32> to vector<8x128xf32>
    %583 = arith.addf %581, %582 : vector<8x128xf32>
    %584 = arith.negf %583 : vector<8x128xf32>
    %585 = math.exp %584 : vector<8x128xf32>
    %cst_119 = arith.constant 1.000000e+00 : f32
    %586 = vector.broadcast %cst_119 : f32 to vector<8x128xf32>
    %587 = arith.addf %586, %585 : vector<8x128xf32>
    %588 = arith.divf %586, %587 : vector<8x128xf32>
    %589 = math.tanh %583 : vector<8x128xf32>
    %590 = vector.extract_strided_slice %588 {offsets = [0, 0], sizes = [8, 32], strides = [1, 1]} : vector<8x128xf32> to vector<8x32xf32>
    %591 = vector.extract_strided_slice %588 {offsets = [0, 32], sizes = [8, 32], strides = [1, 1]} : vector<8x128xf32> to vector<8x32xf32>
    %592 = vector.extract_strided_slice %588 {offsets = [0, 96], sizes = [8, 32], strides = [1, 1]} : vector<8x128xf32> to vector<8x32xf32>
    %593 = vector.extract_strided_slice %589 {offsets = [0, 64], sizes = [8, 32], strides = [1, 1]} : vector<8x128xf32> to vector<8x32xf32>
    %594 = arith.mulf %591, %518 : vector<8x32xf32>
    %595 = arith.mulf %590, %593 : vector<8x32xf32>
    %596 = arith.addf %594, %595 : vector<8x32xf32>
    %597 = math.tanh %596 : vector<8x32xf32>
    %598 = arith.mulf %592, %597 : vector<8x32xf32>
    %cst_120 = arith.constant dense<0.000000e+00> : vector<8x128xf32>
    %599 = tpu.matmul %578, %13, %cst_120 {dimension_numbers = #tpu.dot_dimension_numbers<[1], [0], [0], [1], [0, 0, 1, 1], [], []>} : vector<8x32xf32>, vector<32x128xf32>, vector<8x128xf32> -> vector<8x128xf32>
    %cst_121 = arith.constant dense<0.000000e+00> : vector<8x128xf32>
    %600 = tpu.matmul %558, %7, %cst_121 {dimension_numbers = #tpu.dot_dimension_numbers<[1], [0], [0], [1], [0, 0, 1, 1], [], []>} : vector<8x32xf32>, vector<32x128xf32>, vector<8x128xf32> -> vector<8x128xf32>
    %601 = arith.addf %599, %600 : vector<8x128xf32>
    %602 = vector.broadcast %21 : vector<1x128xf32> to vector<8x128xf32>
    %603 = arith.addf %601, %602 : vector<8x128xf32>
    %604 = arith.negf %603 : vector<8x128xf32>
    %605 = math.exp %604 : vector<8x128xf32>
    %cst_122 = arith.constant 1.000000e+00 : f32
    %606 = vector.broadcast %cst_122 : f32 to vector<8x128xf32>
    %607 = arith.addf %606, %605 : vector<8x128xf32>
    %608 = arith.divf %606, %607 : vector<8x128xf32>
    %609 = math.tanh %603 : vector<8x128xf32>
    %610 = vector.extract_strided_slice %608 {offsets = [0, 0], sizes = [8, 32], strides = [1, 1]} : vector<8x128xf32> to vector<8x32xf32>
    %611 = vector.extract_strided_slice %608 {offsets = [0, 32], sizes = [8, 32], strides = [1, 1]} : vector<8x128xf32> to vector<8x32xf32>
    %612 = vector.extract_strided_slice %608 {offsets = [0, 96], sizes = [8, 32], strides = [1, 1]} : vector<8x128xf32> to vector<8x32xf32>
    %613 = vector.extract_strided_slice %609 {offsets = [0, 64], sizes = [8, 32], strides = [1, 1]} : vector<8x128xf32> to vector<8x32xf32>
    %614 = arith.mulf %611, %556 : vector<8x32xf32>
    %615 = arith.mulf %610, %613 : vector<8x32xf32>
    %616 = arith.addf %614, %615 : vector<8x32xf32>
    %617 = math.tanh %616 : vector<8x32xf32>
    %618 = arith.mulf %612, %617 : vector<8x32xf32>
    %cst_123 = arith.constant dense<0.000000e+00> : vector<8x128xf32>
    %619 = tpu.matmul %598, %11, %cst_123 {dimension_numbers = #tpu.dot_dimension_numbers<[1], [0], [0], [1], [0, 0, 1, 1], [], []>} : vector<8x32xf32>, vector<32x128xf32>, vector<8x128xf32> -> vector<8x128xf32>
    %cst_124 = arith.constant dense<0.000000e+00> : vector<8x128xf32>
    %620 = tpu.matmul %578, %5, %cst_124 {dimension_numbers = #tpu.dot_dimension_numbers<[1], [0], [0], [1], [0, 0, 1, 1], [], []>} : vector<8x32xf32>, vector<32x128xf32>, vector<8x128xf32> -> vector<8x128xf32>
    %621 = arith.addf %619, %620 : vector<8x128xf32>
    %622 = vector.broadcast %19 : vector<1x128xf32> to vector<8x128xf32>
    %623 = arith.addf %621, %622 : vector<8x128xf32>
    %624 = arith.negf %623 : vector<8x128xf32>
    %625 = math.exp %624 : vector<8x128xf32>
    %cst_125 = arith.constant 1.000000e+00 : f32
    %626 = vector.broadcast %cst_125 : f32 to vector<8x128xf32>
    %627 = arith.addf %626, %625 : vector<8x128xf32>
    %628 = arith.divf %626, %627 : vector<8x128xf32>
    %629 = math.tanh %623 : vector<8x128xf32>
    %630 = vector.extract_strided_slice %628 {offsets = [0, 0], sizes = [8, 32], strides = [1, 1]} : vector<8x128xf32> to vector<8x32xf32>
    %631 = vector.extract_strided_slice %628 {offsets = [0, 32], sizes = [8, 32], strides = [1, 1]} : vector<8x128xf32> to vector<8x32xf32>
    %632 = vector.extract_strided_slice %628 {offsets = [0, 96], sizes = [8, 32], strides = [1, 1]} : vector<8x128xf32> to vector<8x32xf32>
    %633 = vector.extract_strided_slice %629 {offsets = [0, 64], sizes = [8, 32], strides = [1, 1]} : vector<8x128xf32> to vector<8x32xf32>
    %634 = arith.mulf %631, %576 : vector<8x32xf32>
    %635 = arith.mulf %630, %633 : vector<8x32xf32>
    %636 = arith.addf %634, %635 : vector<8x32xf32>
    %637 = math.tanh %636 : vector<8x32xf32>
    %638 = arith.mulf %632, %637 : vector<8x32xf32>
    %cst_126 = arith.constant dense<0.000000e+00> : vector<8x128xf32>
    %639 = tpu.matmul %638, %13, %cst_126 {dimension_numbers = #tpu.dot_dimension_numbers<[1], [0], [0], [1], [0, 0, 1, 1], [], []>} : vector<8x32xf32>, vector<32x128xf32>, vector<8x128xf32> -> vector<8x128xf32>
    %cst_127 = arith.constant dense<0.000000e+00> : vector<8x128xf32>
    %640 = tpu.matmul %618, %7, %cst_127 {dimension_numbers = #tpu.dot_dimension_numbers<[1], [0], [0], [1], [0, 0, 1, 1], [], []>} : vector<8x32xf32>, vector<32x128xf32>, vector<8x128xf32> -> vector<8x128xf32>
    %641 = arith.addf %639, %640 : vector<8x128xf32>
    %642 = vector.broadcast %21 : vector<1x128xf32> to vector<8x128xf32>
    %643 = arith.addf %641, %642 : vector<8x128xf32>
    %644 = arith.negf %643 : vector<8x128xf32>
    %645 = math.exp %644 : vector<8x128xf32>
    %cst_128 = arith.constant 1.000000e+00 : f32
    %646 = vector.broadcast %cst_128 : f32 to vector<8x128xf32>
    %647 = arith.addf %646, %645 : vector<8x128xf32>
    %648 = arith.divf %646, %647 : vector<8x128xf32>
    %649 = math.tanh %643 : vector<8x128xf32>
    %650 = vector.extract_strided_slice %648 {offsets = [0, 0], sizes = [8, 32], strides = [1, 1]} : vector<8x128xf32> to vector<8x32xf32>
    %651 = vector.extract_strided_slice %648 {offsets = [0, 32], sizes = [8, 32], strides = [1, 1]} : vector<8x128xf32> to vector<8x32xf32>
    %652 = vector.extract_strided_slice %648 {offsets = [0, 96], sizes = [8, 32], strides = [1, 1]} : vector<8x128xf32> to vector<8x32xf32>
    %653 = vector.extract_strided_slice %649 {offsets = [0, 64], sizes = [8, 32], strides = [1, 1]} : vector<8x128xf32> to vector<8x32xf32>
    %654 = arith.mulf %651, %616 : vector<8x32xf32>
    %655 = arith.mulf %650, %653 : vector<8x32xf32>
    %656 = arith.addf %654, %655 : vector<8x32xf32>
    %657 = math.tanh %656 : vector<8x32xf32>
    %658 = arith.mulf %652, %657 : vector<8x32xf32>
    %659 = tpu.concatenate %168, %246, %324, %402, %480, %558, %618, %658 in 1 : vector<8x32xf32>, vector<8x32xf32>, vector<8x32xf32>, vector<8x32xf32>, vector<8x32xf32>, vector<8x32xf32>, vector<8x32xf32>, vector<8x32xf32> -> vector<8x256xf32>
    %c0_129 = arith.constant 0 : index
    %c0_130 = arith.constant 0 : index
    %660 = vector.load %arg5[%c0_129, %c0_130] : memref<256x512xf32, #tpu.memory_space<vmem>>, vector<256x512xf32>
    %cst_131 = arith.constant dense<0.000000e+00> : vector<8x512xf32>
    %661 = tpu.matmul %659, %660, %cst_131 {dimension_numbers = #tpu.dot_dimension_numbers<[1], [0], [0], [1], [0, 0, 1, 1], [], []>} : vector<8x256xf32>, vector<256x512xf32>, vector<8x512xf32> -> vector<8x512xf32>
    %c0_132 = arith.constant 0 : index
    %c0_133 = arith.constant 0 : index
    %662 = vector.load %arg6[%c0_132, %c0_133] : memref<1x512xf32, #tpu.memory_space<vmem>>, vector<1x512xf32>
    %663 = vector.broadcast %662 : vector<1x512xf32> to vector<8x512xf32>
    %664 = arith.addf %661, %663 : vector<8x512xf32>
    %cst_134 = arith.constant 0.000000e+00 : f32
    %665 = vector.broadcast %cst_134 : f32 to vector<8x512xf32>
    %666 = arith.maximumf %664, %665 : vector<8x512xf32>
    %c0_135 = arith.constant 0 : index
    %c0_136 = arith.constant 0 : index
    %667 = vector.load %arg7[%c0_135, %c0_136] : memref<512x512xf32, #tpu.memory_space<vmem>>, vector<512x512xf32>
    %cst_137 = arith.constant dense<0.000000e+00> : vector<8x512xf32>
    %668 = tpu.matmul %666, %667, %cst_137 {dimension_numbers = #tpu.dot_dimension_numbers<[1], [0], [0], [1], [0, 0, 1, 1], [], []>} : vector<8x512xf32>, vector<512x512xf32>, vector<8x512xf32> -> vector<8x512xf32>
    %c0_138 = arith.constant 0 : index
    %c0_139 = arith.constant 0 : index
    %669 = vector.load %arg8[%c0_138, %c0_139] : memref<1x512xf32, #tpu.memory_space<vmem>>, vector<1x512xf32>
    %670 = vector.broadcast %669 : vector<1x512xf32> to vector<8x512xf32>
    %671 = arith.addf %668, %670 : vector<8x512xf32>
    %cst_140 = arith.constant 0.000000e+00 : f32
    %672 = vector.broadcast %cst_140 : f32 to vector<8x512xf32>
    %673 = arith.maximumf %671, %672 : vector<8x512xf32>
    %c0_141 = arith.constant 0 : index
    %c0_142 = arith.constant 0 : index
    %674 = vector.load %arg9[%c0_141, %c0_142] : memref<512x512xf32, #tpu.memory_space<vmem>>, vector<512x512xf32>
    %cst_143 = arith.constant dense<0.000000e+00> : vector<8x512xf32>
    %675 = tpu.matmul %673, %674, %cst_143 {dimension_numbers = #tpu.dot_dimension_numbers<[1], [0], [0], [1], [0, 0, 1, 1], [], []>} : vector<8x512xf32>, vector<512x512xf32>, vector<8x512xf32> -> vector<8x512xf32>
    %c0_144 = arith.constant 0 : index
    %c0_145 = arith.constant 0 : index
    %676 = vector.load %arg10[%c0_144, %c0_145] : memref<1x512xf32, #tpu.memory_space<vmem>>, vector<1x512xf32>
    %677 = vector.broadcast %676 : vector<1x512xf32> to vector<8x512xf32>
    %678 = arith.addf %675, %677 : vector<8x512xf32>
    %cst_146 = arith.constant 0.000000e+00 : f32
    %679 = vector.broadcast %cst_146 : f32 to vector<8x512xf32>
    %680 = arith.maximumf %678, %679 : vector<8x512xf32>
    %c0_147 = arith.constant 0 : index
    %c0_148 = arith.constant 0 : index
    %681 = vector.load %arg11[%c0_147, %c0_148] : memref<512x18xf32, #tpu.memory_space<vmem>>, vector<512x18xf32>
    %cst_149 = arith.constant dense<0.000000e+00> : vector<8x18xf32>
    %682 = tpu.matmul %680, %681, %cst_149 {dimension_numbers = #tpu.dot_dimension_numbers<[1], [0], [0], [1], [0, 0, 1, 1], [], []>} : vector<8x512xf32>, vector<512x18xf32>, vector<8x18xf32> -> vector<8x18xf32>
    %c0_150 = arith.constant 0 : index
    %c0_151 = arith.constant 0 : index
    %683 = vector.load %arg12[%c0_150, %c0_151] : memref<1x18xf32, #tpu.memory_space<vmem>>, vector<1x18xf32>
    %684 = vector.broadcast %683 : vector<1x18xf32> to vector<8x18xf32>
    %685 = arith.addf %682, %684 : vector<8x18xf32>
    %c0_152 = arith.constant 0 : index
    %c0_153 = arith.constant 0 : index
    %686 = vector.load %arg13[%c0_152, %c0_153] : memref<8x18xf32, #tpu.memory_space<vmem>>, vector<8x18xf32>
    tpu.vector_store %arg13[%c0_152, %c0_153], %685 {strides = array<i32>} : memref<8x18xf32, #tpu.memory_space<vmem>>, vector<8x18xf32>,
    return
  }
}

</mosaic_0001>

<llo_original>
// kernel: tpu_custom_call.1
$region0: #{tpu_custom_call.1}
  #allocation0 [shape = 'u32[]', space=smem, size = 0x4, offset = 0x4, fixed_abs, tag = 'smem constant byte address 0x4 - core index']
  #allocation1 [shape = 'u32[72,128]{1,0:T(1,128)}', space=vmem, size = 0x9000, scoped, tag = 'internal scratch']
  %s0 = inlined_call_operand.vmem [shape: f32[64,4], index: 0, kind: input, shape index: {}]
  %s1 = inlined_call_operand.vmem [shape: f32[4,128], index: 1, kind: input, shape index: {}]
  %s2 = inlined_call_operand.vmem [shape: f32[3,32,128], index: 2, kind: input, shape index: {}]
  %s3 = inlined_call_operand.vmem [shape: f32[4,32,128], index: 3, kind: input, shape index: {}]
  %s4 = inlined_call_operand.vmem [shape: f32[4,1,128], index: 4, kind: input, shape index: {}]
  %s5 = inlined_call_operand.hbm [shape: f32[256,512], index: 5, kind: input, shape index: {}]
  %s6 = inlined_call_operand.vmem [shape: f32[1,512], index: 6, kind: input, shape index: {}]
  %s7 = inlined_call_operand.hbm [shape: f32[512,512], index: 7, kind: input, shape index: {}]
  %s8 = inlined_call_operand.vmem [shape: f32[1,512], index: 8, kind: input, shape index: {}]
  %s9 = inlined_call_operand.hbm [shape: f32[512,512], index: 9, kind: input, shape index: {}]
  %s10 = inlined_call_operand.vmem [shape: f32[1,512], index: 10, kind: input, shape index: {}]
  %s11 = inlined_call_operand.vmem [shape: f32[512,18], index: 11, kind: input, shape index: {}]
  %s12 = inlined_call_operand.vmem [shape: f32[1,18], index: 12, kind: input, shape index: {}]
  %s13 = inlined_call_operand.hbm [shape: f32[8,18], index: 13, kind: output, shape index: {}]
  %s14 = sld [smem:[#allocation0]]
  $region74: #{tpu_custom_call.1} parent=0
    _
  %s16 = ssub.s32 1, %s14
  %s17 = scalar_select 0, %s16, %s14
  $region1: #{tpu_custom_call.1} parent=0
    #allocation2 [shape = 'u8[524288]{0}', space=vmem, size = 0x80000, scoped, tag = 'input window, operand 5, single buffered']
    #allocation3 [shape = 's32[1]{0}', space=sflag, size = 0x4, scoped, tag = 'scoped memory for tpu_custom_call.1']
    #allocation4 [shape = 's32[1]{0}', space=sflag, size = 0x4, scoped, tag = 'scoped memory for tpu_custom_call.1']
    #allocation5 [shape = 'u8[1048576]{0}', space=vmem, size = 0x100000, scoped, tag = 'input window, operand 7, single buffered']
    #allocation6 [shape = 's32[1]{0}', space=sflag, size = 0x4, scoped, tag = 'scoped memory for tpu_custom_call.1']
    #allocation7 [shape = 'u8[1048576]{0}', space=vmem, size = 0x100000, scoped, tag = 'input window, operand 9, single buffered']
    #allocation8 [shape = 'u8[4096]{0}', space=vmem, size = 0x1000, scoped, tag = 'output window, operand 0, single buffered']
    %18 = vsyncpa [#allocation3], 0
    %19 = vsyncpa [#allocation6], 0
    %20 = vsyncpa [#allocation4], 0
    // Predicated region
    $region2: #{tpu_custom_call.1} parent=1 // pred_check
      _
    $region3: #{tpu_custom_call.1} parent=1 // pred_check_branch
      %22 = sbr.rel (0) target = $region5
    $region4: #{tpu_custom_call.1} parent=1 // pred_region
      _
    $region5: #{tpu_custom_call.1} parent=1 // pred_fallthru
      _
    // Predicated region
    $region6: #{tpu_custom_call.1} parent=1 // pred_check
      _
    $region7: #{tpu_custom_call.1} parent=1 // pred_check_branch
      %24 = sbr.rel (0) target = $region9
    $region8: #{tpu_custom_call.1} parent=1 // pred_region
      _
    $region9: #{tpu_custom_call.1} parent=1 // pred_fallthru
      _
    // Predicated region
    $region10: #{tpu_custom_call.1} parent=1 // pred_check
      _
    $region11: #{tpu_custom_call.1} parent=1 // pred_check_branch
      %26 = sbr.rel (0) target = $region13
    $region12: #{tpu_custom_call.1} parent=1 // pred_region
      _
    $region13: #{tpu_custom_call.1} parent=1 // pred_fallthru
      _
    // Predicated region
    $region14: #{tpu_custom_call.1} parent=1 // pred_check
      _
    $region15: #{tpu_custom_call.1} parent=1 // pred_check_branch
      %28 = sbr.rel (0) target = $region17
    $region16: #{tpu_custom_call.1} parent=1 // pred_region
      _
    $region17: #{tpu_custom_call.1} parent=1 // pred_fallthru
      _
    // Predicated region
    $region18: #{tpu_custom_call.1} parent=1 // pred_check
      _
    $region19: #{tpu_custom_call.1} parent=1 // pred_check_branch
      %30 = sbr.rel (0) target = $region21
    $region20: #{tpu_custom_call.1} parent=1 // pred_region
      _
    $region21: #{tpu_custom_call.1} parent=1 // pred_fallthru
      _
    // Predicated region
    $region22: #{tpu_custom_call.1} parent=1 // pred_check
      _
    $region23: #{tpu_custom_call.1} parent=1 // pred_check_branch
      %32 = sbr.rel (0) target = $region25
    $region24: #{tpu_custom_call.1} parent=1 // pred_region
      %34 = vsyncadd [#allocation3], 0
      %s35 = sshll.u32 %s5, 4
      %s36 = int_to_ptr.hbm [resolvable:$true] %s35
      %s37 = sshll.u32 [#allocation2], 4
      %s38 = int_to_ptr.vmem [resolvable:$true] %s37
      %43 = dma.hbm_to_vmem [thread:$0]  %s36, 16384, %s38, [#allocation3], 512, 512, 32
    $region25: #{tpu_custom_call.1} parent=1 // pred_fallthru
      _
    // Predicated region
    $region26: #{tpu_custom_call.1} parent=1 // pred_check
      _
    $region27: #{tpu_custom_call.1} parent=1 // pred_check_branch
      %45 = sbr.rel (0) target = $region29
    $region28: #{tpu_custom_call.1} parent=1 // pred_region
      _
    $region29: #{tpu_custom_call.1} parent=1 // pred_fallthru
      _
    // Predicated region
    $region30: #{tpu_custom_call.1} parent=1 // pred_check
      _
    $region31: #{tpu_custom_call.1} parent=1 // pred_check_branch
      %47 = sbr.rel (0) target = $region33
    $region32: #{tpu_custom_call.1} parent=1 // pred_region
      %49 = vsyncadd [#allocation6], 0
      %s50 = sshll.u32 %s7, 4
      %s51 = int_to_ptr.hbm [resolvable:$true] %s50
      %s52 = sshll.u32 [#allocation5], 4
      %s53 = int_to_ptr.vmem [resolvable:$true] %s52
      %58 = dma.hbm_to_vmem [thread:$0]  %s51, 32768, %s53, [#allocation6], 512, 512, 32
    $region33: #{tpu_custom_call.1} parent=1 // pred_fallthru
      _
    // Predicated region
    $region34: #{tpu_custom_call.1} parent=1 // pred_check
      _
    $region35: #{tpu_custom_call.1} parent=1 // pred_check_branch
      %60 = sbr.rel (0) target = $region37
    $region36: #{tpu_custom_call.1} parent=1 // pred_region
      _
    $region37: #{tpu_custom_call.1} parent=1 // pred_fallthru
      _
    // Predicated region
    $region38: #{tpu_custom_call.1} parent=1 // pred_check
      _
    $region39: #{tpu_custom_call.1} parent=1 // pred_check_branch
      %62 = sbr.rel (0) target = $region41
    $region40: #{tpu_custom_call.1} parent=1 // pred_region
      %64 = vsyncadd [#allocation6], 0
      %s65 = sshll.u32 %s9, 4
      %s66 = int_to_ptr.hbm [resolvable:$true] %s65
      %s67 = sshll.u32 [#allocation7], 4
      %s68 = int_to_ptr.vmem [resolvable:$true] %s67
      %73 = dma.hbm_to_vmem [thread:$0]  %s66, 32768, %s68, [#allocation6], 512, 512, 32
    $region41: #{tpu_custom_call.1} parent=1 // pred_fallthru
      _
    // Predicated region
    $region42: #{tpu_custom_call.1} parent=1 // pred_check
      _
    $region43: #{tpu_custom_call.1} parent=1 // pred_check_branch
      %75 = sbr.rel (0) target = $region45
    $region44: #{tpu_custom_call.1} parent=1 // pred_region
      _
    $region45: #{tpu_custom_call.1} parent=1 // pred_fallthru
      _
    // Predicated region
    $region46: #{tpu_custom_call.1} parent=1 // pred_check
      _
    $region47: #{tpu_custom_call.1} parent=1 // pred_check_branch
      %77 = sbr.rel (0) target = $region49
    $region48: #{tpu_custom_call.1} parent=1 // pred_region
      _
    $region49: #{tpu_custom_call.1} parent=1 // pred_fallthru
      _
    // Predicated region
    $region50: #{tpu_custom_call.1} parent=1 // pred_check
      _
    $region51: #{tpu_custom_call.1} parent=1 // pred_check_branch
      %79 = sbr.rel (0) target = $region53
    $region52: #{tpu_custom_call.1} parent=1 // pred_region
      _
    $region53: #{tpu_custom_call.1} parent=1 // pred_fallthru
      _
    // Predicated region
    $region54: #{tpu_custom_call.1} parent=1 // pred_check
      _
    $region55: #{tpu_custom_call.1} parent=1 // pred_check_branch
      %81 = sbr.rel (0) target = $region57
    $region56: #{tpu_custom_call.1} parent=1 // pred_region
      %83 = dma.done [#allocation3], 16384
    $region57: #{tpu_custom_call.1} parent=1 // pred_fallthru
      _
    // Predicated region
    $region58: #{tpu_custom_call.1} parent=1 // pred_check
      _
    $region59: #{tpu_custom_call.1} parent=1 // pred_check_branch
      %85 = sbr.rel (0) target = $region61
    $region60: #{tpu_custom_call.1} parent=1 // pred_region
      %87 = dma.done [#allocation6], 32768
    $region61: #{tpu_custom_call.1} parent=1 // pred_fallthru
      _
    // Predicated region
    $region62: #{tpu_custom_call.1} parent=1 // pred_check
      _
    $region63: #{tpu_custom_call.1} parent=1 // pred_check_branch
      %89 = sbr.rel (0) target = $region65
    $region64: #{tpu_custom_call.1} parent=1 // pred_region
      %91 = dma.done [#allocation6], 32768
    $region65: #{tpu_custom_call.1} parent=1 // pred_fallthru
      _
    %v92 = vld [vmem:[%s3] sm:$0xff]
    %v93 = vld [vmem:[%s3 + $0x8] sm:$0xff]
    %v94 = vld [vmem:[%s3 + $0x10] sm:$0xff]
    %v95 = vld [vmem:[%s3 + $0x18] sm:$0xff]
    %s96 = scalar_lea.vmem %s3, 32
    %v97 = vld [vmem:[%s96] sm:$0xff]
    %v98 = vld [vmem:[%s96 + $0x8] sm:$0xff]
    %v99 = vld [vmem:[%s96 + $0x10] sm:$0xff]
    %v100 = vld [vmem:[%s96 + $0x18] sm:$0xff]
    %s101 = scalar_lea.vmem %s3, 64
    %v102 = vld [vmem:[%s101] sm:$0xff]
    %v103 = vld [vmem:[%s101 + $0x8] sm:$0xff]
    %v104 = vld [vmem:[%s101 + $0x10] sm:$0xff]
    %v105 = vld [vmem:[%s101 + $0x18] sm:$0xff]
    %s106 = scalar_lea.vmem %s3, 96
    %v107 = vld [vmem:[%s106] sm:$0xff]
    %v108 = vld [vmem:[%s106 + $0x8] sm:$0xff]
    %v109 = vld [vmem:[%s106 + $0x10] sm:$0xff]
    %v110 = vld [vmem:[%s106 + $0x18] sm:$0xff]
    %v111 = vld [vmem:[%s2] sm:$0xff]
    %v112 = vld [vmem:[%s2 + $0x8] sm:$0xff]
    %v113 = vld [vmem:[%s2 + $0x10] sm:$0xff]
    %v114 = vld [vmem:[%s2 + $0x18] sm:$0xff]
    %s115 = scalar_lea.vmem %s2, 32
    %v116 = vld [vmem:[%s115] sm:$0xff]
    %v117 = vld [vmem:[%s115 + $0x8] sm:$0xff]
    %v118 = vld [vmem:[%s115 + $0x10] sm:$0xff]
    %v119 = vld [vmem:[%s115 + $0x18] sm:$0xff]
    %s120 = scalar_lea.vmem %s2, 64
    %v121 = vld [vmem:[%s120] sm:$0xff]
    %v122 = vld [vmem:[%s120 + $0x8] sm:$0xff]
    %v123 = vld [vmem:[%s120 + $0x10] sm:$0xff]
    %v124 = vld [vmem:[%s120 + $0x18] sm:$0xff]
    %v125 = vld [vmem:[%s4] sm:$0x1]
    %s126 = scalar_lea.vmem %s4, 1
    %v127 = vld [vmem:[%s126] sm:$0x1]
    %s128 = scalar_lea.vmem %s4, 2
    %v129 = vld [vmem:[%s128] sm:$0x1]
    %s130 = scalar_lea.vmem %s4, 3
    %v131 = vld [vmem:[%s130] sm:$0x1]
    %v132 = vld [vmem:[%s0] sm:$0xff]
    %v133 = vld [vmem:[%s0 + $0x8] sm:$0xff]
    %v134 = vld [vmem:[%s0 + $0x10] sm:$0xff]
    %v135 = vld [vmem:[%s0 + $0x18] sm:$0xff]
    %v136 = vld [vmem:[%s0 + $0x20] sm:$0xff]
    %v137 = vld [vmem:[%s0 + $0x28] sm:$0xff]
    %v138 = vld [vmem:[%s0 + $0x30] sm:$0xff]
    %v139 = vld [vmem:[%s0 + $0x38] sm:$0xff]
    %v140 = vld [vmem:[%s1] sm:$0xf]
    %v142 = vperm.slane %v125, 0
    %vm144 = vcmask 31744
    %v146 = vsel %vm144, %v132, 0
    %v149 = vsel %vm144, %v133, 0
    %v152 = vsel %vm144, %v134, 0
    %v155 = vsel %vm144, %v135, 0
    %v158 = vsel %vm144, %v136, 0
    %v161 = vsel %vm144, %v137, 0
    %v164 = vsel %vm144, %v138, 0
    %v167 = vsel %vm144, %v139, 0
    %vm169 = vcmask 1043456
    %v171 = vsel %vm169, %v140, 0
    %173 = vmatpush.msra.mxu0 0.0
    %174 = vmatpush.msra.mxu0 0.0
    %175 = vmatpush.msra.mxu0 0.0
    %176 = vmatpush.msra.mxu0 0.0
    %177 = vmatpush.msra.mxu0 0.0
    %178 = vmatpush.msra.mxu0 0.0
    %179 = vmatpush.msra.mxu0 0.0
    %180 = vmatpush.msra.mxu0 0.0
    %181 = vmatpush.msra.mxu0 0.0
    %182 = vmatpush.msra.mxu0 0.0
    %183 = vmatpush.msra.mxu0 0.0
    %184 = vmatpush.msra.mxu0 0.0
    %185 = vmatpush.msra.mxu0 0.0
    %186 = vmatpush.msra.mxu0 0.0
    %187 = vmatpush.msra.mxu0 0.0
    %188 = vmatpush.msra.mxu0 %v171
    %189 = vmatmul.f32.gmra.mxu0 %v146
    %v190 = vpop.f32.mrf.mxu0
    %v191 = vadd.f32 %v142, %v190
    %192 = vmatmul.f32.gmra.mxu0 %v149
    %v193 = vpop.f32.mrf.mxu0
    %v194 = vadd.f32 %v142, %v193
    %195 = vmatmul.f32.gmra.mxu0 %v152
    %v196 = vpop.f32.mrf.mxu0
    %v197 = vadd.f32 %v142, %v196
    %198 = vmatmul.f32.gmra.mxu0 %v155
    %v199 = vpop.f32.mrf.mxu0
    %v200 = vadd.f32 %v142, %v199
    %201 = vmatmul.f32.gmra.mxu0 %v158
    %v202 = vpop.f32.mrf.mxu0
    %v203 = vadd.f32 %v142, %v202
    %204 = vmatmul.f32.gmra.mxu0 %v161
    %v205 = vpop.f32.mrf.mxu0
    %v206 = vadd.f32 %v142, %v205
    %207 = vmatmul.f32.gmra.mxu0 %v164
    %v208 = vpop.f32.mrf.mxu0
    %v209 = vadd.f32 %v142, %v208
    %210 = vmatmul.f32.gmra.mxu0 %v167
    %v211 = vpop.f32.mrf.mxu0
    %v212 = vadd.f32 %v142, %v211
    %213 = vdwg.mxu0
    %vm214 = vcmask 261120
    %v216 = vsel %vm214, 0.0, 0
    %218 = vmatpush.msra.mxu0 0.0
    %219 = vmatpush.msra.mxu0 0.0
    %220 = vmatpush.msra.mxu0 0.0
    %221 = vmatpush.msra.mxu0 0.0
    %222 = vmatpush.msra.mxu0 0.0
    %223 = vmatpush.msra.mxu0 0.0
    %224 = vmatpush.msra.mxu0 0.0
    %225 = vmatpush.msra.mxu0 0.0
    %226 = vmatpush.msra.mxu0 0.0
    %227 = vmatpush.msra.mxu0 0.0
    %228 = vmatpush.msra.mxu0 0.0
    %229 = vmatpush.msra.mxu0 0.0
    %230 = vmatpush.msra.mxu0 %v95
    %231 = vmatpush.msra.mxu0 %v94
    %232 = vmatpush.msra.mxu0 %v93
    %233 = vmatpush.msra.mxu0 %v92
    %234 = vmatmul.f32.gmra.mxu0 %v216
    %v235 = vpop.f32.mrf.mxu0
    %v236 = vadd.f32 0.0, %v235
    %237 = vdwg.mxu0
    %v238 = vadd.f32 %v191, %v236
    %v239 = vxor.u32 %v238, 2147483648
    %v240 = vmul.f32 %v239, 1.442695
    %v241 = vpow.pop %v240
    %v242 = vadd.f32 %v241, 1.0
    %v243 = vrcp.pop %v242
    %v244 = vmul.f32 %v242, %v243
    %v245 = vsub.f32 1.0, %v244
    %v246 = vmul.f32 %v243, %v245
    %v247 = vadd.f32 %v243, %v246
    %vm248 = vweird.f32 %v242
    %vm249 = vweird.f32 %v243
    %vm250 = vmor %vm248, %vm249
    %v251 = vsel %vm250, %v243, %v247
    %v252 = vand.u32 2147483647, %v242
    %vm253 = vcmp.eq.f32.partialorder %v252, 8.507059e+37
    %v254 = vand.u32 %v242, 2147483648
    %v255 = vor.u32 1.1754944e-38, %v254
    %v256 = vsel %vm253, %v255, %v251
    %v257 = vmul.f32 1.0, %v256
    %v258 = vtanh.pop %v238
    %v259 = vmul.f32 %v257, 0.0
    %261 = vrot.lane.b32.xlu0 %v258, 64
    %v262 = vpop.permute.xlu0 %261
    %v264 = vmul.f32 %v257, %v262
    %266 = vrot.lane.b32.xlu0 %v264, 32
    %v267 = vpop.permute.xlu0 %266
    %v269 = vadd.f32 %v259, %v267
    %v270 = vtanh.pop %v269
    %272 = vrot.lane.b32.xlu0 %v270, 64
    %v273 = vpop.permute.xlu0 %272
    %v275 = vmul.f32 %v257, %v273
    %276 = vmatpush.msra.mxu0 0.0
    %277 = vmatpush.msra.mxu0 0.0
    %278 = vmatpush.msra.mxu0 0.0
    %279 = vmatpush.msra.mxu0 0.0
    %280 = vmatpush.msra.mxu0 0.0
    %281 = vmatpush.msra.mxu0 0.0
    %282 = vmatpush.msra.mxu0 0.0
    %283 = vmatpush.msra.mxu0 0.0
    %284 = vmatpush.msra.mxu0 0.0
    %285 = vmatpush.msra.mxu0 0.0
    %286 = vmatpush.msra.mxu0 0.0
    %287 = vmatpush.msra.mxu0 0.0
    %288 = vmatpush.msra.mxu0 %v100
    %289 = vmatpush.msra.mxu0 %v99
    %290 = vmatpush.msra.mxu0 %v98
    %291 = vmatpush.msra.mxu0 %v97
    %292 = vmatmul.f32.gmra.mxu0 %v216
    %v293 = vpop.f32.mrf.mxu0
    %v294 = vadd.f32 0.0, %v293
    %295 = vdwg.mxu0
    %297 = vrot.lane.b32.xlu0 %v275, 32
    %v298 = vpop.permute.xlu0 %297
    %v299 = vsel %vm214, %v298, 0
    %301 = vmatpush.msra.mxu0 0.0
    %302 = vmatpush.msra.mxu0 0.0
    %303 = vmatpush.msra.mxu0 0.0
    %304 = vmatpush.msra.mxu0 0.0
    %305 = vmatpush.msra.mxu0 0.0
    %306 = vmatpush.msra.mxu0 0.0
    %307 = vmatpush.msra.mxu0 0.0
    %308 = vmatpush.msra.mxu0 0.0
    %309 = vmatpush.msra.mxu0 0.0
    %310 = vmatpush.msra.mxu0 0.0
    %311 = vmatpush.msra.mxu0 0.0
    %312 = vmatpush.msra.mxu0 0.0
    %313 = vmatpush.msra.mxu0 %v114
    %314 = vmatpush.msra.mxu0 %v113
    %315 = vmatpush.msra.mxu0 %v112
    %316 = vmatpush.msra.mxu0 %v111
    %317 = vmatmul.f32.gmra.mxu0 %v299
    %v318 = vpop.f32.mrf.mxu0
    %v319 = vadd.f32 %v294, %v318
    %320 = vdwg.mxu0
    %v322 = vperm.slane %v127, 0
    %v324 = vadd.f32 %v319, %v322
    %v325 = vxor.u32 %v324, 2147483648
    %v326 = vmul.f32 %v325, 1.442695
    %v327 = vpow.pop %v326
    %v328 = vadd.f32 %v327, 1.0
    %v329 = vrcp.pop %v328
    %v330 = vmul.f32 %v328, %v329
    %v331 = vsub.f32 1.0, %v330
    %v332 = vmul.f32 %v329, %v331
    %v333 = vadd.f32 %v329, %v332
    %vm334 = vweird.f32 %v328
    %vm335 = vweird.f32 %v329
    %vm336 = vmor %vm334, %vm335
    %v337 = vsel %vm336, %v329, %v333
    %v338 = vand.u32 2147483647, %v328
    %vm339 = vcmp.eq.f32.partialorder %v338, 8.507059e+37
    %v340 = vand.u32 %v328, 2147483648
    %v341 = vor.u32 1.1754944e-38, %v340
    %v342 = vsel %vm339, %v341, %v337
    %v343 = vmul.f32 1.0, %v342
    %v344 = vtanh.pop %v324
    %v345 = vmul.f32 %v343, 0.0
    %347 = vrot.lane.b32.xlu0 %v344, 64
    %v348 = vpop.permute.xlu0 %347
    %v350 = vmul.f32 %v343, %v348
    %352 = vrot.lane.b32.xlu0 %v350, 32
    %v353 = vpop.permute.xlu0 %352
    %v355 = vadd.f32 %v345, %v353
    %v356 = vtanh.pop %v355
    %358 = vrot.lane.b32.xlu0 %v356, 64
    %v359 = vpop.permute.xlu0 %358
    %v361 = vmul.f32 %v343, %v359
    %362 = vmatpush.msra.mxu0 0.0
    %363 = vmatpush.msra.mxu0 0.0
    %364 = vmatpush.msra.mxu0 0.0
    %365 = vmatpush.msra.mxu0 0.0
    %366 = vmatpush.msra.mxu0 0.0
    %367 = vmatpush.msra.mxu0 0.0
    %368 = vmatpush.msra.mxu0 0.0
    %369 = vmatpush.msra.mxu0 0.0
    %370 = vmatpush.msra.mxu0 0.0
    %371 = vmatpush.msra.mxu0 0.0
    %372 = vmatpush.msra.mxu0 0.0
    %373 = vmatpush.msra.mxu0 0.0
    %374 = vmatpush.msra.mxu0 %v95
    %375 = vmatpush.msra.mxu0 %v94
    %376 = vmatpush.msra.mxu0 %v93
    %377 = vmatpush.msra.mxu0 %v92
    %378 = vmatmul.f32.gmra.mxu0 %v299
    %v379 = vpop.f32.mrf.mxu0
    %v380 = vadd.f32 0.0, %v379
    %381 = vdwg.mxu0
    %v382 = vadd.f32 %v194, %v380
    %v383 = vxor.u32 %v382, 2147483648
    %v384 = vmul.f32 %v383, 1.442695
    %v385 = vpow.pop %v384
    %v386 = vadd.f32 %v385, 1.0
    %v387 = vrcp.pop %v386
    %v388 = vmul.f32 %v386, %v387
    %v389 = vsub.f32 1.0, %v388
    %v390 = vmul.f32 %v387, %v389
    %v391 = vadd.f32 %v387, %v390
    %vm392 = vweird.f32 %v386
    %vm393 = vweird.f32 %v387
    %vm394 = vmor %vm392, %vm393
    %v395 = vsel %vm394, %v387, %v391
    %v396 = vand.u32 2147483647, %v386
    %vm397 = vcmp.eq.f32.partialorder %v396, 8.507059e+37
    %v398 = vand.u32 %v386, 2147483648
    %v399 = vor.u32 1.1754944e-38, %v398
    %v400 = vsel %vm397, %v399, %v395
    %v401 = vmul.f32 1.0, %v400
    %v402 = vtanh.pop %v382
    %v403 = vmul.f32 %v401, %v269
    %405 = vrot.lane.b32.xlu0 %v402, 64
    %v406 = vpop.permute.xlu0 %405
    %v408 = vmul.f32 %v401, %v406
    %410 = vrot.lane.b32.xlu0 %v408, 32
    %v411 = vpop.permute.xlu0 %410
    %v413 = vadd.f32 %v403, %v411
    %v414 = vtanh.pop %v413
    %416 = vrot.lane.b32.xlu0 %v414, 64
    %v417 = vpop.permute.xlu0 %416
    %v419 = vmul.f32 %v401, %v417
    %420 = vmatpush.msra.mxu0 0.0
    %421 = vmatpush.msra.mxu0 0.0
    %422 = vmatpush.msra.mxu0 0.0
    %423 = vmatpush.msra.mxu0 0.0
    %424 = vmatpush.msra.mxu0 0.0
    %425 = vmatpush.msra.mxu0 0.0
    %426 = vmatpush.msra.mxu0 0.0
    %427 = vmatpush.msra.mxu0 0.0
    %428 = vmatpush.msra.mxu0 0.0
    %429 = vmatpush.msra.mxu0 0.0
    %430 = vmatpush.msra.mxu0 0.0
    %431 = vmatpush.msra.mxu0 0.0
    %432 = vmatpush.msra.mxu0 %v105
    %433 = vmatpush.msra.mxu0 %v104
    %434 = vmatpush.msra.mxu0 %v103
    %435 = vmatpush.msra.mxu0 %v102
    %436 = vmatmul.f32.gmra.mxu0 %v216
    %v437 = vpop.f32.mrf.mxu0
    %v438 = vadd.f32 0.0, %v437
    %439 = vdwg.mxu0
    %441 = vrot.lane.b32.xlu0 %v361, 32
    %v442 = vpop.permute.xlu0 %441
    %v443 = vsel %vm214, %v442, 0
    %445 = vmatpush.msra.mxu0 0.0
    %446 = vmatpush.msra.mxu0 0.0
    %447 = vmatpush.msra.mxu0 0.0
    %448 = vmatpush.msra.mxu0 0.0
    %449 = vmatpush.msra.mxu0 0.0
    %450 = vmatpush.msra.mxu0 0.0
    %451 = vmatpush.msra.mxu0 0.0
    %452 = vmatpush.msra.mxu0 0.0
    %453 = vmatpush.msra.mxu0 0.0
    %454 = vmatpush.msra.mxu0 0.0
    %455 = vmatpush.msra.mxu0 0.0
    %456 = vmatpush.msra.mxu0 0.0
    %457 = vmatpush.msra.mxu0 %v119
    %458 = vmatpush.msra.mxu0 %v118
    %459 = vmatpush.msra.mxu0 %v117
    %460 = vmatpush.msra.mxu0 %v116
    %461 = vmatmul.f32.gmra.mxu0 %v443
    %v462 = vpop.f32.mrf.mxu0
    %v463 = vadd.f32 %v438, %v462
    %464 = vdwg.mxu0
    %v466 = vperm.slane %v129, 0
    %v468 = vadd.f32 %v463, %v466
    %v469 = vxor.u32 %v468, 2147483648
    %v470 = vmul.f32 %v469, 1.442695
    %v471 = vpow.pop %v470
    %v472 = vadd.f32 %v471, 1.0
    %v473 = vrcp.pop %v472
    %v474 = vmul.f32 %v472, %v473
    %v475 = vsub.f32 1.0, %v474
    %v476 = vmul.f32 %v473, %v475
    %v477 = vadd.f32 %v473, %v476
    %vm478 = vweird.f32 %v472
    %vm479 = vweird.f32 %v473
    %vm480 = vmor %vm478, %vm479
    %v481 = vsel %vm480, %v473, %v477
    %v482 = vand.u32 2147483647, %v472
    %vm483 = vcmp.eq.f32.partialorder %v482, 8.507059e+37
    %v484 = vand.u32 %v472, 2147483648
    %v485 = vor.u32 1.1754944e-38, %v484
    %v486 = vsel %vm483, %v485, %v481
    %v487 = vmul.f32 1.0, %v486
    %v488 = vtanh.pop %v468
    %v489 = vmul.f32 %v487, 0.0
    %491 = vrot.lane.b32.xlu0 %v488, 64
    %v492 = vpop.permute.xlu0 %491
    %v494 = vmul.f32 %v487, %v492
    %496 = vrot.lane.b32.xlu0 %v494, 32
    %v497 = vpop.permute.xlu0 %496
    %v499 = vadd.f32 %v489, %v497
    %v500 = vtanh.pop %v499
    %502 = vrot.lane.b32.xlu0 %v500, 64
    %v503 = vpop.permute.xlu0 %502
    %v505 = vmul.f32 %v487, %v503
    %506 = vmatpush.msra.mxu0 0.0
    %507 = vmatpush.msra.mxu0 0.0
    %508 = vmatpush.msra.mxu0 0.0
    %509 = vmatpush.msra.mxu0 0.0
    %510 = vmatpush.msra.mxu0 0.0
    %511 = vmatpush.msra.mxu0 0.0
    %512 = vmatpush.msra.mxu0 0.0
    %513 = vmatpush.msra.mxu0 0.0
    %514 = vmatpush.msra.mxu0 0.0
    %515 = vmatpush.msra.mxu0 0.0
    %516 = vmatpush.msra.mxu0 0.0
    %517 = vmatpush.msra.mxu0 0.0
    %518 = vmatpush.msra.mxu0 %v100
    %519 = vmatpush.msra.mxu0 %v99
    %520 = vmatpush.msra.mxu0 %v98
    %521 = vmatpush.msra.mxu0 %v97
    %522 = vmatmul.f32.gmra.mxu0 %v443
    %v523 = vpop.f32.mrf.mxu0
    %v524 = vadd.f32 0.0, %v523
    %525 = vdwg.mxu0
    %527 = vrot.lane.b32.xlu0 %v419, 32
    %v528 = vpop.permute.xlu0 %527
    %v529 = vsel %vm214, %v528, 0
    %531 = vmatpush.msra.mxu0 0.0
    %532 = vmatpush.msra.mxu0 0.0
    %533 = vmatpush.msra.mxu0 0.0
    %534 = vmatpush.msra.mxu0 0.0
    %535 = vmatpush.msra.mxu0 0.0
    %536 = vmatpush.msra.mxu0 0.0
    %537 = vmatpush.msra.mxu0 0.0
    %538 = vmatpush.msra.mxu0 0.0
    %539 = vmatpush.msra.mxu0 0.0
    %540 = vmatpush.msra.mxu0 0.0
    %541 = vmatpush.msra.mxu0 0.0
    %542 = vmatpush.msra.mxu0 0.0
    %543 = vmatpush.msra.mxu0 %v114
    %544 = vmatpush.msra.mxu0 %v113
    %545 = vmatpush.msra.mxu0 %v112
    %546 = vmatpush.msra.mxu0 %v111
    %547 = vmatmul.f32.gmra.mxu0 %v529
    %v548 = vpop.f32.mrf.mxu0
    %v549 = vadd.f32 %v524, %v548
    %550 = vdwg.mxu0
    %v551 = vadd.f32 %v549, %v322
    %v552 = vxor.u32 %v551, 2147483648
    %v553 = vmul.f32 %v552, 1.442695
    %v554 = vpow.pop %v553
    %v555 = vadd.f32 %v554, 1.0
    %v556 = vrcp.pop %v555
    %v557 = vmul.f32 %v555, %v556
    %v558 = vsub.f32 1.0, %v557
    %v559 = vmul.f32 %v556, %v558
    %v560 = vadd.f32 %v556, %v559
    %vm561 = vweird.f32 %v555
    %vm562 = vweird.f32 %v556
    %vm563 = vmor %vm561, %vm562
    %v564 = vsel %vm563, %v556, %v560
    %v565 = vand.u32 2147483647, %v555
    %vm566 = vcmp.eq.f32.partialorder %v565, 8.507059e+37
    %v567 = vand.u32 %v555, 2147483648
    %v568 = vor.u32 1.1754944e-38, %v567
    %v569 = vsel %vm566, %v568, %v564
    %v570 = vmul.f32 1.0, %v569
    %v571 = vtanh.pop %v551
    %v572 = vmul.f32 %v570, %v355
    %574 = vrot.lane.b32.xlu0 %v571, 64
    %v575 = vpop.permute.xlu0 %574
    %v577 = vmul.f32 %v570, %v575
    %579 = vrot.lane.b32.xlu0 %v577, 32
    %v580 = vpop.permute.xlu0 %579
    %v582 = vadd.f32 %v572, %v580
    %v583 = vtanh.pop %v582
    %585 = vrot.lane.b32.xlu0 %v583, 64
    %v586 = vpop.permute.xlu0 %585
    %v588 = vmul.f32 %v570, %v586
    %589 = vmatpush.msra.mxu0 0.0
    %590 = vmatpush.msra.mxu0 0.0
    %591 = vmatpush.msra.mxu0 0.0
    %592 = vmatpush.msra.mxu0 0.0
    %593 = vmatpush.msra.mxu0 0.0
    %594 = vmatpush.msra.mxu0 0.0
    %595 = vmatpush.msra.mxu0 0.0
    %596 = vmatpush.msra.mxu0 0.0
    %597 = vmatpush.msra.mxu0 0.0
    %598 = vmatpush.msra.mxu0 0.0
    %599 = vmatpush.msra.mxu0 0.0
    %600 = vmatpush.msra.mxu0 0.0
    %601 = vmatpush.msra.mxu0 %v95
    %602 = vmatpush.msra.mxu0 %v94
    %603 = vmatpush.msra.mxu0 %v93
    %604 = vmatpush.msra.mxu0 %v92
    %605 = vmatmul.f32.gmra.mxu0 %v529
    %v606 = vpop.f32.mrf.mxu0
    %v607 = vadd.f32 0.0, %v606
    %608 = vdwg.mxu0
    %v609 = vadd.f32 %v197, %v607
    %v610 = vxor.u32 %v609, 2147483648
    %v611 = vmul.f32 %v610, 1.442695
    %v612 = vpow.pop %v611
    %v613 = vadd.f32 %v612, 1.0
    %v614 = vrcp.pop %v613
    %v615 = vmul.f32 %v613, %v614
    %v616 = vsub.f32 1.0, %v615
    %v617 = vmul.f32 %v614, %v616
    %v618 = vadd.f32 %v614, %v617
    %vm619 = vweird.f32 %v613
    %vm620 = vweird.f32 %v614
    %vm621 = vmor %vm619, %vm620
    %v622 = vsel %vm621, %v614, %v618
    %v623 = vand.u32 2147483647, %v613
    %vm624 = vcmp.eq.f32.partialorder %v623, 8.507059e+37
    %v625 = vand.u32 %v613, 2147483648
    %v626 = vor.u32 1.1754944e-38, %v625
    %v627 = vsel %vm624, %v626, %v622
    %v628 = vmul.f32 1.0, %v627
    %v629 = vtanh.pop %v609
    %v630 = vmul.f32 %v628, %v413
    %632 = vrot.lane.b32.xlu0 %v629, 64
    %v633 = vpop.permute.xlu0 %632
    %v635 = vmul.f32 %v628, %v633
    %637 = vrot.lane.b32.xlu0 %v635, 32
    %v638 = vpop.permute.xlu0 %637
    %v640 = vadd.f32 %v630, %v638
    %v641 = vtanh.pop %v640
    %643 = vrot.lane.b32.xlu0 %v641, 64
    %v644 = vpop.permute.xlu0 %643
    %v646 = vmul.f32 %v628, %v644
    %647 = vmatpush.msra.mxu0 0.0
    %648 = vmatpush.msra.mxu0 0.0
    %649 = vmatpush.msra.mxu0 0.0
    %650 = vmatpush.msra.mxu0 0.0
    %651 = vmatpush.msra.mxu0 0.0
    %652 = vmatpush.msra.mxu0 0.0
    %653 = vmatpush.msra.mxu0 0.0
    %654 = vmatpush.msra.mxu0 0.0
    %655 = vmatpush.msra.mxu0 0.0
    %656 = vmatpush.msra.mxu0 0.0
    %657 = vmatpush.msra.mxu0 0.0
    %658 = vmatpush.msra.mxu0 0.0
    %659 = vmatpush.msra.mxu0 %v110
    %660 = vmatpush.msra.mxu0 %v109
    %661 = vmatpush.msra.mxu0 %v108
    %662 = vmatpush.msra.mxu0 %v107
    %663 = vmatmul.f32.gmra.mxu0 %v216
    %v664 = vpop.f32.mrf.mxu0
    %v665 = vadd.f32 0.0, %v664
    %666 = vdwg.mxu0
    %668 = vrot.lane.b32.xlu0 %v505, 32
    %v669 = vpop.permute.xlu0 %668
    %v670 = vsel %vm214, %v669, 0
    %672 = vmatpush.msra.mxu0 0.0
    %673 = vmatpush.msra.mxu0 0.0
    %674 = vmatpush.msra.mxu0 0.0
    %675 = vmatpush.msra.mxu0 0.0
    %676 = vmatpush.msra.mxu0 0.0
    %677 = vmatpush.msra.mxu0 0.0
    %678 = vmatpush.msra.mxu0 0.0
    %679 = vmatpush.msra.mxu0 0.0
    %680 = vmatpush.msra.mxu0 0.0
    %681 = vmatpush.msra.mxu0 0.0
    %682 = vmatpush.msra.mxu0 0.0
    %683 = vmatpush.msra.mxu0 0.0
    %684 = vmatpush.msra.mxu0 %v124
    %685 = vmatpush.msra.mxu0 %v123
    %686 = vmatpush.msra.mxu0 %v122
    %687 = vmatpush.msra.mxu0 %v121
    %688 = vmatmul.f32.gmra.mxu0 %v670
    %v689 = vpop.f32.mrf.mxu0
    %v690 = vadd.f32 %v665, %v689
    %691 = vdwg.mxu0
    %v693 = vperm.slane %v131, 0
    %v695 = vadd.f32 %v690, %v693
    %v696 = vxor.u32 %v695, 2147483648
    %v697 = vmul.f32 %v696, 1.442695
    %v698 = vpow.pop %v697
    %v699 = vadd.f32 %v698, 1.0
    %v700 = vrcp.pop %v699
    %v701 = vmul.f32 %v699, %v700
    %v702 = vsub.f32 1.0, %v701
    %v703 = vmul.f32 %v700, %v702
    %v704 = vadd.f32 %v700, %v703
    %vm705 = vweird.f32 %v699
    %vm706 = vweird.f32 %v700
    %vm707 = vmor %vm705, %vm706
    %v708 = vsel %vm707, %v700, %v704
    %v709 = vand.u32 2147483647, %v699
    %vm710 = vcmp.eq.f32.partialorder %v709, 8.507059e+37
    %v711 = vand.u32 %v699, 2147483648
    %v712 = vor.u32 1.1754944e-38, %v711
    %v713 = vsel %vm710, %v712, %v708
    %v714 = vmul.f32 1.0, %v713
    %v715 = vtanh.pop %v695
    %v716 = vmul.f32 %v714, 0.0
    %718 = vrot.lane.b32.xlu0 %v715, 64
    %v719 = vpop.permute.xlu0 %718
    %v721 = vmul.f32 %v714, %v719
    %723 = vrot.lane.b32.xlu0 %v721, 32
    %v724 = vpop.permute.xlu0 %723
    %v726 = vadd.f32 %v716, %v724
    %v727 = vtanh.pop %v726
    %729 = vrot.lane.b32.xlu0 %v727, 64
    %v730 = vpop.permute.xlu0 %729
    %v732 = vmul.f32 %v714, %v730
    %733 = vmatpush.msra.mxu0 0.0
    %734 = vmatpush.msra.mxu0 0.0
    %735 = vmatpush.msra.mxu0 0.0
    %736 = vmatpush.msra.mxu0 0.0
    %737 = vmatpush.msra.mxu0 0.0
    %738 = vmatpush.msra.mxu0 0.0
    %739 = vmatpush.msra.mxu0 0.0
    %740 = vmatpush.msra.mxu0 0.0
    %741 = vmatpush.msra.mxu0 0.0
    %742 = vmatpush.msra.mxu0 0.0
    %743 = vmatpush.msra.mxu0 0.0
    %744 = vmatpush.msra.mxu0 0.0
    %745 = vmatpush.msra.mxu0 %v105
    %746 = vmatpush.msra.mxu0 %v104
    %747 = vmatpush.msra.mxu0 %v103
    %748 = vmatpush.msra.mxu0 %v102
    %749 = vmatmul.f32.gmra.mxu0 %v670
    %v750 = vpop.f32.mrf.mxu0
    %v751 = vadd.f32 0.0, %v750
    %752 = vdwg.mxu0
    %754 = vrot.lane.b32.xlu0 %v588, 32
    %v755 = vpop.permute.xlu0 %754
    %v756 = vsel %vm214, %v755, 0
    %758 = vmatpush.msra.mxu0 0.0
    %759 = vmatpush.msra.mxu0 0.0
    %760 = vmatpush.msra.mxu0 0.0
    %761 = vmatpush.msra.mxu0 0.0
    %762 = vmatpush.msra.mxu0 0.0
    %763 = vmatpush.msra.mxu0 0.0
    %764 = vmatpush.msra.mxu0 0.0
    %765 = vmatpush.msra.mxu0 0.0
    %766 = vmatpush.msra.mxu0 0.0
    %767 = vmatpush.msra.mxu0 0.0
    %768 = vmatpush.msra.mxu0 0.0
    %769 = vmatpush.msra.mxu0 0.0
    %770 = vmatpush.msra.mxu0 %v119
    %771 = vmatpush.msra.mxu0 %v118
    %772 = vmatpush.msra.mxu0 %v117
    %773 = vmatpush.msra.mxu0 %v116
    %774 = vmatmul.f32.gmra.mxu0 %v756
    %v775 = vpop.f32.mrf.mxu0
    %v776 = vadd.f32 %v751, %v775
    %777 = vdwg.mxu0
    %v778 = vadd.f32 %v776, %v466
    %v779 = vxor.u32 %v778, 2147483648
    %v780 = vmul.f32 %v779, 1.442695
    %v781 = vpow.pop %v780
    %v782 = vadd.f32 %v781, 1.0
    %v783 = vrcp.pop %v782
    %v784 = vmul.f32 %v782, %v783
    %v785 = vsub.f32 1.0, %v784
    %v786 = vmul.f32 %v783, %v785
    %v787 = vadd.f32 %v783, %v786
    %vm788 = vweird.f32 %v782
    %vm789 = vweird.f32 %v783
    %vm790 = vmor %vm788, %vm789
    %v791 = vsel %vm790, %v783, %v787
    %v792 = vand.u32 2147483647, %v782
    %vm793 = vcmp.eq.f32.partialorder %v792, 8.507059e+37
    %v794 = vand.u32 %v782, 2147483648
    %v795 = vor.u32 1.1754944e-38, %v794
    %v796 = vsel %vm793, %v795, %v791
    %v797 = vmul.f32 1.0, %v796
    %v798 = vtanh.pop %v778
    %v799 = vmul.f32 %v797, %v499
    %801 = vrot.lane.b32.xlu0 %v798, 64
    %v802 = vpop.permute.xlu0 %801
    %v804 = vmul.f32 %v797, %v802
    %806 = vrot.lane.b32.xlu0 %v804, 32
    %v807 = vpop.permute.xlu0 %806
    %v809 = vadd.f32 %v799, %v807
    %v810 = vtanh.pop %v809
    %812 = vrot.lane.b32.xlu0 %v810, 64
    %v813 = vpop.permute.xlu0 %812
    %v815 = vmul.f32 %v797, %v813
    %816 = vmatpush.msra.mxu0 0.0
    %817 = vmatpush.msra.mxu0 0.0
    %818 = vmatpush.msra.mxu0 0.0
    %819 = vmatpush.msra.mxu0 0.0
    %820 = vmatpush.msra.mxu0 0.0
    %821 = vmatpush.msra.mxu0 0.0
    %822 = vmatpush.msra.mxu0 0.0
    %823 = vmatpush.msra.mxu0 0.0
    %824 = vmatpush.msra.mxu0 0.0
    %825 = vmatpush.msra.mxu0 0.0
    %826 = vmatpush.msra.mxu0 0.0
    %827 = vmatpush.msra.mxu0 0.0
    %828 = vmatpush.msra.mxu0 %v100
    %829 = vmatpush.msra.mxu0 %v99
    %830 = vmatpush.msra.mxu0 %v98
    %831 = vmatpush.msra.mxu0 %v97
    %832 = vmatmul.f32.gmra.mxu0 %v756
    %v833 = vpop.f32.mrf.mxu0
    %v834 = vadd.f32 0.0, %v833
    %835 = vdwg.mxu0
    %837 = vrot.lane.b32.xlu0 %v646, 32
    %v838 = vpop.permute.xlu0 %837
    %v839 = vsel %vm214, %v838, 0
    %841 = vmatpush.msra.mxu0 0.0
    %842 = vmatpush.msra.mxu0 0.0
    %843 = vmatpush.msra.mxu0 0.0
    %844 = vmatpush.msra.mxu0 0.0
    %845 = vmatpush.msra.mxu0 0.0
    %846 = vmatpush.msra.mxu0 0.0
    %847 = vmatpush.msra.mxu0 0.0
    %848 = vmatpush.msra.mxu0 0.0
    %849 = vmatpush.msra.mxu0 0.0
    %850 = vmatpush.msra.mxu0 0.0
    %851 = vmatpush.msra.mxu0 0.0
    %852 = vmatpush.msra.mxu0 0.0
    %853 = vmatpush.msra.mxu0 %v114
    %854 = vmatpush.msra.mxu0 %v113
    %855 = vmatpush.msra.mxu0 %v112
    %856 = vmatpush.msra.mxu0 %v111
    %857 = vmatmul.f32.gmra.mxu0 %v839
    %v858 = vpop.f32.mrf.mxu0
    %v859 = vadd.f32 %v834, %v858
    %860 = vdwg.mxu0
    %v861 = vadd.f32 %v859, %v322
    %v862 = vxor.u32 %v861, 2147483648
    %v863 = vmul.f32 %v862, 1.442695
    %v864 = vpow.pop %v863
    %v865 = vadd.f32 %v864, 1.0
    %v866 = vrcp.pop %v865
    %v867 = vmul.f32 %v865, %v866
    %v868 = vsub.f32 1.0, %v867
    %v869 = vmul.f32 %v866, %v868
    %v870 = vadd.f32 %v866, %v869
    %vm871 = vweird.f32 %v865
    %vm872 = vweird.f32 %v866
    %vm873 = vmor %vm871, %vm872
    %v874 = vsel %vm873, %v866, %v870
    %v875 = vand.u32 2147483647, %v865
    %vm876 = vcmp.eq.f32.partialorder %v875, 8.507059e+37
    %v877 = vand.u32 %v865, 2147483648
    %v878 = vor.u32 1.1754944e-38, %v877
    %v879 = vsel %vm876, %v878, %v874
    %v880 = vmul.f32 1.0, %v879
    %v881 = vtanh.pop %v861
    %v882 = vmul.f32 %v880, %v582
    %884 = vrot.lane.b32.xlu0 %v881, 64
    %v885 = vpop.permute.xlu0 %884
    %v887 = vmul.f32 %v880, %v885
    %889 = vrot.lane.b32.xlu0 %v887, 32
    %v890 = vpop.permute.xlu0 %889
    %v892 = vadd.f32 %v882, %v890
    %v893 = vtanh.pop %v892
    %895 = vrot.lane.b32.xlu0 %v893, 64
    %v896 = vpop.permute.xlu0 %895
    %v898 = vmul.f32 %v880, %v896
    %899 = vmatpush.msra.mxu0 0.0
    %900 = vmatpush.msra.mxu0 0.0
    %901 = vmatpush.msra.mxu0 0.0
    %902 = vmatpush.msra.mxu0 0.0
    %903 = vmatpush.msra.mxu0 0.0
    %904 = vmatpush.msra.mxu0 0.0
    %905 = vmatpush.msra.mxu0 0.0
    %906 = vmatpush.msra.mxu0 0.0
    %907 = vmatpush.msra.mxu0 0.0
    %908 = vmatpush.msra.mxu0 0.0
    %909 = vmatpush.msra.mxu0 0.0
    %910 = vmatpush.msra.mxu0 0.0
    %911 = vmatpush.msra.mxu0 %v95
    %912 = vmatpush.msra.mxu0 %v94
    %913 = vmatpush.msra.mxu0 %v93
    %914 = vmatpush.msra.mxu0 %v92
    %915 = vmatmul.f32.gmra.mxu0 %v839
    %v916 = vpop.f32.mrf.mxu0
    %v917 = vadd.f32 0.0, %v916
    %918 = vdwg.mxu0
    %v919 = vadd.f32 %v200, %v917
    %v920 = vxor.u32 %v919, 2147483648
    %v921 = vmul.f32 %v920, 1.442695
    %v922 = vpow.pop %v921
    %v923 = vadd.f32 %v922, 1.0
    %v924 = vrcp.pop %v923
    %v925 = vmul.f32 %v923, %v924
    %v926 = vsub.f32 1.0, %v925
    %v927 = vmul.f32 %v924, %v926
    %v928 = vadd.f32 %v924, %v927
    %vm929 = vweird.f32 %v923
    %vm930 = vweird.f32 %v924
    %vm931 = vmor %vm929, %vm930
    %v932 = vsel %vm931, %v924, %v928
    %v933 = vand.u32 2147483647, %v923
    %vm934 = vcmp.eq.f32.partialorder %v933, 8.507059e+37
    %v935 = vand.u32 %v923, 2147483648
    %v936 = vor.u32 1.1754944e-38, %v935
    %v937 = vsel %vm934, %v936, %v932
    %v938 = vmul.f32 1.0, %v937
    %v939 = vtanh.pop %v919
    %v940 = vmul.f32 %v938, %v640
    %942 = vrot.lane.b32.xlu0 %v939, 64
    %v943 = vpop.permute.xlu0 %942
    %v945 = vmul.f32 %v938, %v943
    %947 = vrot.lane.b32.xlu0 %v945, 32
    %v948 = vpop.permute.xlu0 %947
    %v950 = vadd.f32 %v940, %v948
    %v951 = vtanh.pop %v950
    %953 = vrot.lane.b32.xlu0 %v951, 64
    %v954 = vpop.permute.xlu0 %953
    %v956 = vmul.f32 %v938, %v954
    %958 = vrot.lane.b32.xlu0 %v732, 32
    %v959 = vpop.permute.xlu0 %958
    %v960 = vsel %vm214, %v959, 0
    %962 = vmatpush.msra.mxu0 0.0
    %963 = vmatpush.msra.mxu0 0.0
    %964 = vmatpush.msra.mxu0 0.0
    %965 = vmatpush.msra.mxu0 0.0
    %966 = vmatpush.msra.mxu0 0.0
    %967 = vmatpush.msra.mxu0 0.0
    %968 = vmatpush.msra.mxu0 0.0
    %969 = vmatpush.msra.mxu0 0.0
    %970 = vmatpush.msra.mxu0 0.0
    %971 = vmatpush.msra.mxu0 0.0
    %972 = vmatpush.msra.mxu0 0.0
    %973 = vmatpush.msra.mxu0 0.0
    %974 = vmatpush.msra.mxu0 %v110
    %975 = vmatpush.msra.mxu0 %v109
    %976 = vmatpush.msra.mxu0 %v108
    %977 = vmatpush.msra.mxu0 %v107
    %978 = vmatmul.f32.gmra.mxu0 %v960
    %v979 = vpop.f32.mrf.mxu0
    %v980 = vadd.f32 0.0, %v979
    %981 = vdwg.mxu0
    %983 = vrot.lane.b32.xlu0 %v815, 32
    %v984 = vpop.permute.xlu0 %983
    %v985 = vsel %vm214, %v984, 0
    %987 = vmatpush.msra.mxu0 0.0
    %988 = vmatpush.msra.mxu0 0.0
    %989 = vmatpush.msra.mxu0 0.0
    %990 = vmatpush.msra.mxu0 0.0
    %991 = vmatpush.msra.mxu0 0.0
    %992 = vmatpush.msra.mxu0 0.0
    %993 = vmatpush.msra.mxu0 0.0
    %994 = vmatpush.msra.mxu0 0.0
    %995 = vmatpush.msra.mxu0 0.0
    %996 = vmatpush.msra.mxu0 0.0
    %997 = vmatpush.msra.mxu0 0.0
    %998 = vmatpush.msra.mxu0 0.0
    %999 = vmatpush.msra.mxu0 %v124
    %1000 = vmatpush.msra.mxu0 %v123
    %1001 = vmatpush.msra.mxu0 %v122
    %1002 = vmatpush.msra.mxu0 %v121
    %1003 = vmatmul.f32.gmra.mxu0 %v985
    %v1004 = vpop.f32.mrf.mxu0
    %v1005 = vadd.f32 %v980, %v1004
    %1006 = vdwg.mxu0
    %v1007 = vadd.f32 %v1005, %v693
    %v1008 = vxor.u32 %v1007, 2147483648
    %v1009 = vmul.f32 %v1008, 1.442695
    %v1010 = vpow.pop %v1009
    %v1011 = vadd.f32 %v1010, 1.0
    %v1012 = vrcp.pop %v1011
    %v1013 = vmul.f32 %v1011, %v1012
    %v1014 = vsub.f32 1.0, %v1013
    %v1015 = vmul.f32 %v1012, %v1014
    %v1016 = vadd.f32 %v1012, %v1015
    %vm1017 = vweird.f32 %v1011
    %vm1018 = vweird.f32 %v1012
    %vm1019 = vmor %vm1017, %vm1018
    %v1020 = vsel %vm1019, %v1012, %v1016
    %v1021 = vand.u32 2147483647, %v1011
    %vm1022 = vcmp.eq.f32.partialorder %v1021, 8.507059e+37
    %v1023 = vand.u32 %v1011, 2147483648
    %v1024 = vor.u32 1.1754944e-38, %v1023
    %v1025 = vsel %vm1022, %v1024, %v1020
    %v1026 = vmul.f32 1.0, %v1025
    %v1027 = vtanh.pop %v1007
    %v1028 = vmul.f32 %v1026, %v726
    %1030 = vrot.lane.b32.xlu0 %v1027, 64
    %v1031 = vpop.permute.xlu0 %1030
    %v1033 = vmul.f32 %v1026, %v1031
    %1035 = vrot.lane.b32.xlu0 %v1033, 32
    %v1036 = vpop.permute.xlu0 %1035
    %v1038 = vadd.f32 %v1028, %v1036
    %v1039 = vtanh.pop %v1038
    %1041 = vrot.lane.b32.xlu0 %v1039, 64
    %v1042 = vpop.permute.xlu0 %1041
    %v1044 = vmul.f32 %v1026, %v1042
    %1045 = vmatpush.msra.mxu0 0.0
    %1046 = vmatpush.msra.mxu0 0.0
    %1047 = vmatpush.msra.mxu0 0.0
    %1048 = vmatpush.msra.mxu0 0.0
    %1049 = vmatpush.msra.mxu0 0.0
    %1050 = vmatpush.msra.mxu0 0.0
    %1051 = vmatpush.msra.mxu0 0.0
    %1052 = vmatpush.msra.mxu0 0.0
    %1053 = vmatpush.msra.mxu0 0.0
    %1054 = vmatpush.msra.mxu0 0.0
    %1055 = vmatpush.msra.mxu0 0.0
    %1056 = vmatpush.msra.mxu0 0.0
    %1057 = vmatpush.msra.mxu0 %v105
    %1058 = vmatpush.msra.mxu0 %v104
    %1059 = vmatpush.msra.mxu0 %v103
    %1060 = vmatpush.msra.mxu0 %v102
    %1061 = vmatmul.f32.gmra.mxu0 %v985
    %v1062 = vpop.f32.mrf.mxu0
    %v1063 = vadd.f32 0.0, %v1062
    %1064 = vdwg.mxu0
    %1066 = vrot.lane.b32.xlu0 %v898, 32
    %v1067 = vpop.permute.xlu0 %1066
    %v1068 = vsel %vm214, %v1067, 0
    %1070 = vmatpush.msra.mxu0 0.0
    %1071 = vmatpush.msra.mxu0 0.0
    %1072 = vmatpush.msra.mxu0 0.0
    %1073 = vmatpush.msra.mxu0 0.0
    %1074 = vmatpush.msra.mxu0 0.0
    %1075 = vmatpush.msra.mxu0 0.0
    %1076 = vmatpush.msra.mxu0 0.0
    %1077 = vmatpush.msra.mxu0 0.0
    %1078 = vmatpush.msra.mxu0 0.0
    %1079 = vmatpush.msra.mxu0 0.0
    %1080 = vmatpush.msra.mxu0 0.0
    %1081 = vmatpush.msra.mxu0 0.0
    %1082 = vmatpush.msra.mxu0 %v119
    %1083 = vmatpush.msra.mxu0 %v118
    %1084 = vmatpush.msra.mxu0 %v117
    %1085 = vmatpush.msra.mxu0 %v116
    %1086 = vmatmul.f32.gmra.mxu0 %v1068
    %v1087 = vpop.f32.mrf.mxu0
    %v1088 = vadd.f32 %v1063, %v1087
    %1089 = vdwg.mxu0
    %v1090 = vadd.f32 %v1088, %v466
    %v1091 = vxor.u32 %v1090, 2147483648
    %v1092 = vmul.f32 %v1091, 1.442695
    %v1093 = vpow.pop %v1092
    %v1094 = vadd.f32 %v1093, 1.0
    %v1095 = vrcp.pop %v1094
    %v1096 = vmul.f32 %v1094, %v1095
    %v1097 = vsub.f32 1.0, %v1096
    %v1098 = vmul.f32 %v1095, %v1097
    %v1099 = vadd.f32 %v1095, %v1098
    %vm1100 = vweird.f32 %v1094
    %vm1101 = vweird.f32 %v1095
    %vm1102 = vmor %vm1100, %vm1101
    %v1103 = vsel %vm1102, %v1095, %v1099
    %v1104 = vand.u32 2147483647, %v1094
    %vm1105 = vcmp.eq.f32.partialorder %v1104, 8.507059e+37
    %v1106 = vand.u32 %v1094, 2147483648
    %v1107 = vor.u32 1.1754944e-38, %v1106
    %v1108 = vsel %vm1105, %v1107, %v1103
    %v1109 = vmul.f32 1.0, %v1108
    %v1110 = vtanh.pop %v1090
    %v1111 = vmul.f32 %v1109, %v809
    %1113 = vrot.lane.b32.xlu0 %v1110, 64
    %v1114 = vpop.permute.xlu0 %1113
    %v1116 = vmul.f32 %v1109, %v1114
    %1118 = vrot.lane.b32.xlu0 %v1116, 32
    %v1119 = vpop.permute.xlu0 %1118
    %v1121 = vadd.f32 %v1111, %v1119
    %v1122 = vtanh.pop %v1121
    %1124 = vrot.lane.b32.xlu0 %v1122, 64
    %v1125 = vpop.permute.xlu0 %1124
    %v1127 = vmul.f32 %v1109, %v1125
    %1128 = vmatpush.msra.mxu0 0.0
    %1129 = vmatpush.msra.mxu0 0.0
    %1130 = vmatpush.msra.mxu0 0.0
    %1131 = vmatpush.msra.mxu0 0.0
    %1132 = vmatpush.msra.mxu0 0.0
    %1133 = vmatpush.msra.mxu0 0.0
    %1134 = vmatpush.msra.mxu0 0.0
    %1135 = vmatpush.msra.mxu0 0.0
    %1136 = vmatpush.msra.mxu0 0.0
    %1137 = vmatpush.msra.mxu0 0.0
    %1138 = vmatpush.msra.mxu0 0.0
    %1139 = vmatpush.msra.mxu0 0.0
    %1140 = vmatpush.msra.mxu0 %v100
    %1141 = vmatpush.msra.mxu0 %v99
    %1142 = vmatpush.msra.mxu0 %v98
    %1143 = vmatpush.msra.mxu0 %v97
    %1144 = vmatmul.f32.gmra.mxu0 %v1068
    %v1145 = vpop.f32.mrf.mxu0
    %v1146 = vadd.f32 0.0, %v1145
    %1147 = vdwg.mxu0
    %1149 = vrot.lane.b32.xlu0 %v956, 32
    %v1150 = vpop.permute.xlu0 %1149
    %v1151 = vsel %vm214, %v1150, 0
    %1153 = vmatpush.msra.mxu0 0.0
    %1154 = vmatpush.msra.mxu0 0.0
    %1155 = vmatpush.msra.mxu0 0.0
    %1156 = vmatpush.msra.mxu0 0.0
    %1157 = vmatpush.msra.mxu0 0.0
    %1158 = vmatpush.msra.mxu0 0.0
    %1159 = vmatpush.msra.mxu0 0.0
    %1160 = vmatpush.msra.mxu0 0.0
    %1161 = vmatpush.msra.mxu0 0.0
    %1162 = vmatpush.msra.mxu0 0.0
    %1163 = vmatpush.msra.mxu0 0.0
    %1164 = vmatpush.msra.mxu0 0.0
    %1165 = vmatpush.msra.mxu0 %v114
    %1166 = vmatpush.msra.mxu0 %v113
    %1167 = vmatpush.msra.mxu0 %v112
    %1168 = vmatpush.msra.mxu0 %v111
    %1169 = vmatmul.f32.gmra.mxu0 %v1151
    %v1170 = vpop.f32.mrf.mxu0
    %v1171 = vadd.f32 %v1146, %v1170
    %1172 = vdwg.mxu0
    %v1173 = vadd.f32 %v1171, %v322
    %v1174 = vxor.u32 %v1173, 2147483648
    %v1175 = vmul.f32 %v1174, 1.442695
    %v1176 = vpow.pop %v1175
    %v1177 = vadd.f32 %v1176, 1.0
    %v1178 = vrcp.pop %v1177
    %v1179 = vmul.f32 %v1177, %v1178
    %v1180 = vsub.f32 1.0, %v1179
    %v1181 = vmul.f32 %v1178, %v1180
    %v1182 = vadd.f32 %v1178, %v1181
    %vm1183 = vweird.f32 %v1177
    %vm1184 = vweird.f32 %v1178
    %vm1185 = vmor %vm1183, %vm1184
    %v1186 = vsel %vm1185, %v1178, %v1182
    %v1187 = vand.u32 2147483647, %v1177
    %vm1188 = vcmp.eq.f32.partialorder %v1187, 8.507059e+37
    %v1189 = vand.u32 %v1177, 2147483648
    %v1190 = vor.u32 1.1754944e-38, %v1189
    %v1191 = vsel %vm1188, %v1190, %v1186
    %v1192 = vmul.f32 1.0, %v1191
    %v1193 = vtanh.pop %v1173
    %v1194 = vmul.f32 %v1192, %v892
    %1196 = vrot.lane.b32.xlu0 %v1193, 64
    %v1197 = vpop.permute.xlu0 %1196
    %v1199 = vmul.f32 %v1192, %v1197
    %1201 = vrot.lane.b32.xlu0 %v1199, 32
    %v1202 = vpop.permute.xlu0 %1201
    %v1204 = vadd.f32 %v1194, %v1202
    %v1205 = vtanh.pop %v1204
    %1207 = vrot.lane.b32.xlu0 %v1205, 64
    %v1208 = vpop.permute.xlu0 %1207
    %v1210 = vmul.f32 %v1192, %v1208
    %1211 = vmatpush.msra.mxu0 0.0
    %1212 = vmatpush.msra.mxu0 0.0
    %1213 = vmatpush.msra.mxu0 0.0
    %1214 = vmatpush.msra.mxu0 0.0
    %1215 = vmatpush.msra.mxu0 0.0
    %1216 = vmatpush.msra.mxu0 0.0
    %1217 = vmatpush.msra.mxu0 0.0
    %1218 = vmatpush.msra.mxu0 0.0
    %1219 = vmatpush.msra.mxu0 0.0
    %1220 = vmatpush.msra.mxu0 0.0
    %1221 = vmatpush.msra.mxu0 0.0
    %1222 = vmatpush.msra.mxu0 0.0
    %1223 = vmatpush.msra.mxu0 %v95
    %1224 = vmatpush.msra.mxu0 %v94
    %1225 = vmatpush.msra.mxu0 %v93
    %1226 = vmatpush.msra.mxu0 %v92
    %1227 = vmatmul.f32.gmra.mxu0 %v1151
    %v1228 = vpop.f32.mrf.mxu0
    %v1229 = vadd.f32 0.0, %v1228
    %1230 = vdwg.mxu0
    %v1231 = vadd.f32 %v203, %v1229
    %v1232 = vxor.u32 %v1231, 2147483648
    %v1233 = vmul.f32 %v1232, 1.442695
    %v1234 = vpow.pop %v1233
    %v1235 = vadd.f32 %v1234, 1.0
    %v1236 = vrcp.pop %v1235
    %v1237 = vmul.f32 %v1235, %v1236
    %v1238 = vsub.f32 1.0, %v1237
    %v1239 = vmul.f32 %v1236, %v1238
    %v1240 = vadd.f32 %v1236, %v1239
    %vm1241 = vweird.f32 %v1235
    %vm1242 = vweird.f32 %v1236
    %vm1243 = vmor %vm1241, %vm1242
    %v1244 = vsel %vm1243, %v1236, %v1240
    %v1245 = vand.u32 2147483647, %v1235
    %vm1246 = vcmp.eq.f32.partialorder %v1245, 8.507059e+37
    %v1247 = vand.u32 %v1235, 2147483648
    %v1248 = vor.u32 1.1754944e-38, %v1247
    %v1249 = vsel %vm1246, %v1248, %v1244
    %v1250 = vmul.f32 1.0, %v1249
    %v1251 = vtanh.pop %v1231
    %v1252 = vmul.f32 %v1250, %v950
    %1254 = vrot.lane.b32.xlu0 %v1251, 64
    %v1255 = vpop.permute.xlu0 %1254
    %v1257 = vmul.f32 %v1250, %v1255
    %1259 = vrot.lane.b32.xlu0 %v1257, 32
    %v1260 = vpop.permute.xlu0 %1259
    %v1262 = vadd.f32 %v1252, %v1260
    %v1263 = vtanh.pop %v1262
    %1265 = vrot.lane.b32.xlu0 %v1263, 64
    %v1266 = vpop.permute.xlu0 %1265
    %v1268 = vmul.f32 %v1250, %v1266
    %1270 = vrot.lane.b32.xlu0 %v1044, 32
    %v1271 = vpop.permute.xlu0 %1270
    %v1272 = vsel %vm214, %v1271, 0
    %1274 = vmatpush.msra.mxu0 0.0
    %1275 = vmatpush.msra.mxu0 0.0
    %1276 = vmatpush.msra.mxu0 0.0
    %1277 = vmatpush.msra.mxu0 0.0
    %1278 = vmatpush.msra.mxu0 0.0
    %1279 = vmatpush.msra.mxu0 0.0
    %1280 = vmatpush.msra.mxu0 0.0
    %1281 = vmatpush.msra.mxu0 0.0
    %1282 = vmatpush.msra.mxu0 0.0
    %1283 = vmatpush.msra.mxu0 0.0
    %1284 = vmatpush.msra.mxu0 0.0
    %1285 = vmatpush.msra.mxu0 0.0
    %1286 = vmatpush.msra.mxu0 %v110
    %1287 = vmatpush.msra.mxu0 %v109
    %1288 = vmatpush.msra.mxu0 %v108
    %1289 = vmatpush.msra.mxu0 %v107
    %1290 = vmatmul.f32.gmra.mxu0 %v1272
    %v1291 = vpop.f32.mrf.mxu0
    %v1292 = vadd.f32 0.0, %v1291
    %1293 = vdwg.mxu0
    %1295 = vrot.lane.b32.xlu0 %v1127, 32
    %v1296 = vpop.permute.xlu0 %1295
    %v1297 = vsel %vm214, %v1296, 0
    %1299 = vmatpush.msra.mxu0 0.0
    %1300 = vmatpush.msra.mxu0 0.0
    %1301 = vmatpush.msra.mxu0 0.0
    %1302 = vmatpush.msra.mxu0 0.0
    %1303 = vmatpush.msra.mxu0 0.0
    %1304 = vmatpush.msra.mxu0 0.0
    %1305 = vmatpush.msra.mxu0 0.0
    %1306 = vmatpush.msra.mxu0 0.0
    %1307 = vmatpush.msra.mxu0 0.0
    %1308 = vmatpush.msra.mxu0 0.0
    %1309 = vmatpush.msra.mxu0 0.0
    %1310 = vmatpush.msra.mxu0 0.0
    %1311 = vmatpush.msra.mxu0 %v124
    %1312 = vmatpush.msra.mxu0 %v123
    %1313 = vmatpush.msra.mxu0 %v122
    %1314 = vmatpush.msra.mxu0 %v121
    %1315 = vmatmul.f32.gmra.mxu0 %v1297
    %v1316 = vpop.f32.mrf.mxu0
    %v1317 = vadd.f32 %v1292, %v1316
    %1318 = vdwg.mxu0
    %v1319 = vadd.f32 %v1317, %v693
    %v1320 = vxor.u32 %v1319, 2147483648
    %v1321 = vmul.f32 %v1320, 1.442695
    %v1322 = vpow.pop %v1321
    %v1323 = vadd.f32 %v1322, 1.0
    %v1324 = vrcp.pop %v1323
    %v1325 = vmul.f32 %v1323, %v1324
    %v1326 = vsub.f32 1.0, %v1325
    %v1327 = vmul.f32 %v1324, %v1326
    %v1328 = vadd.f32 %v1324, %v1327
    %vm1329 = vweird.f32 %v1323
    %vm1330 = vweird.f32 %v1324
    %vm1331 = vmor %vm1329, %vm1330
    %v1332 = vsel %vm1331, %v1324, %v1328
    %v1333 = vand.u32 2147483647, %v1323
    %vm1334 = vcmp.eq.f32.partialorder %v1333, 8.507059e+37
    %v1335 = vand.u32 %v1323, 2147483648
    %v1336 = vor.u32 1.1754944e-38, %v1335
    %v1337 = vsel %vm1334, %v1336, %v1332
    %v1338 = vmul.f32 1.0, %v1337
    %v1339 = vtanh.pop %v1319
    %v1340 = vmul.f32 %v1338, %v1038
    %1342 = vrot.lane.b32.xlu0 %v1339, 64
    %v1343 = vpop.permute.xlu0 %1342
    %v1345 = vmul.f32 %v1338, %v1343
    %1347 = vrot.lane.b32.xlu0 %v1345, 32
    %v1348 = vpop.permute.xlu0 %1347
    %v1350 = vadd.f32 %v1340, %v1348
    %v1351 = vtanh.pop %v1350
    %1353 = vrot.lane.b32.xlu0 %v1351, 64
    %v1354 = vpop.permute.xlu0 %1353
    %v1356 = vmul.f32 %v1338, %v1354
    %1357 = vmatpush.msra.mxu0 0.0
    %1358 = vmatpush.msra.mxu0 0.0
    %1359 = vmatpush.msra.mxu0 0.0
    %1360 = vmatpush.msra.mxu0 0.0
    %1361 = vmatpush.msra.mxu0 0.0
    %1362 = vmatpush.msra.mxu0 0.0
    %1363 = vmatpush.msra.mxu0 0.0
    %1364 = vmatpush.msra.mxu0 0.0
    %1365 = vmatpush.msra.mxu0 0.0
    %1366 = vmatpush.msra.mxu0 0.0
    %1367 = vmatpush.msra.mxu0 0.0
    %1368 = vmatpush.msra.mxu0 0.0
    %1369 = vmatpush.msra.mxu0 %v105
    %1370 = vmatpush.msra.mxu0 %v104
    %1371 = vmatpush.msra.mxu0 %v103
    %1372 = vmatpush.msra.mxu0 %v102
    %1373 = vmatmul.f32.gmra.mxu0 %v1297
    %v1374 = vpop.f32.mrf.mxu0
    %v1375 = vadd.f32 0.0, %v1374
    %1376 = vdwg.mxu0
    %1378 = vrot.lane.b32.xlu0 %v1210, 32
    %v1379 = vpop.permute.xlu0 %1378
    %v1380 = vsel %vm214, %v1379, 0
    %1382 = vmatpush.msra.mxu0 0.0
    %1383 = vmatpush.msra.mxu0 0.0
    %1384 = vmatpush.msra.mxu0 0.0
    %1385 = vmatpush.msra.mxu0 0.0
    %1386 = vmatpush.msra.mxu0 0.0
    %1387 = vmatpush.msra.mxu0 0.0
    %1388 = vmatpush.msra.mxu0 0.0
    %1389 = vmatpush.msra.mxu0 0.0
    %1390 = vmatpush.msra.mxu0 0.0
    %1391 = vmatpush.msra.mxu0 0.0
    %1392 = vmatpush.msra.mxu0 0.0
    %1393 = vmatpush.msra.mxu0 0.0
    %1394 = vmatpush.msra.mxu0 %v119
    %1395 = vmatpush.msra.mxu0 %v118
    %1396 = vmatpush.msra.mxu0 %v117
    %1397 = vmatpush.msra.mxu0 %v116
    %1398 = vmatmul.f32.gmra.mxu0 %v1380
    %v1399 = vpop.f32.mrf.mxu0
    %v1400 = vadd.f32 %v1375, %v1399
    %1401 = vdwg.mxu0
    %v1402 = vadd.f32 %v1400, %v466
    %v1403 = vxor.u32 %v1402, 2147483648
    %v1404 = vmul.f32 %v1403, 1.442695
    %v1405 = vpow.pop %v1404
    %v1406 = vadd.f32 %v1405, 1.0
    %v1407 = vrcp.pop %v1406
    %v1408 = vmul.f32 %v1406, %v1407
    %v1409 = vsub.f32 1.0, %v1408
    %v1410 = vmul.f32 %v1407, %v1409
    %v1411 = vadd.f32 %v1407, %v1410
    %vm1412 = vweird.f32 %v1406
    %vm1413 = vweird.f32 %v1407
    %vm1414 = vmor %vm1412, %vm1413
    %v1415 = vsel %vm1414, %v1407, %v1411
    %v1416 = vand.u32 2147483647, %v1406
    %vm1417 = vcmp.eq.f32.partialorder %v1416, 8.507059e+37
    %v1418 = vand.u32 %v1406, 2147483648
    %v1419 = vor.u32 1.1754944e-38, %v1418
    %v1420 = vsel %vm1417, %v1419, %v1415
    %v1421 = vmul.f32 1.0, %v1420
    %v1422 = vtanh.pop %v1402
    %v1423 = vmul.f32 %v1421, %v1121
    %1425 = vrot.lane.b32.xlu0 %v1422, 64
    %v1426 = vpop.permute.xlu0 %1425
    %v1428 = vmul.f32 %v1421, %v1426
    %1430 = vrot.lane.b32.xlu0 %v1428, 32
    %v1431 = vpop.permute.xlu0 %1430
    %v1433 = vadd.f32 %v1423, %v1431
    %v1434 = vtanh.pop %v1433
    %1436 = vrot.lane.b32.xlu0 %v1434, 64
    %v1437 = vpop.permute.xlu0 %1436
    %v1439 = vmul.f32 %v1421, %v1437
    %1440 = vmatpush.msra.mxu0 0.0
    %1441 = vmatpush.msra.mxu0 0.0
    %1442 = vmatpush.msra.mxu0 0.0
    %1443 = vmatpush.msra.mxu0 0.0
    %1444 = vmatpush.msra.mxu0 0.0
    %1445 = vmatpush.msra.mxu0 0.0
    %1446 = vmatpush.msra.mxu0 0.0
    %1447 = vmatpush.msra.mxu0 0.0
    %1448 = vmatpush.msra.mxu0 0.0
    %1449 = vmatpush.msra.mxu0 0.0
    %1450 = vmatpush.msra.mxu0 0.0
    %1451 = vmatpush.msra.mxu0 0.0
    %1452 = vmatpush.msra.mxu0 %v100
    %1453 = vmatpush.msra.mxu0 %v99
    %1454 = vmatpush.msra.mxu0 %v98
    %1455 = vmatpush.msra.mxu0 %v97
    %1456 = vmatmul.f32.gmra.mxu0 %v1380
    %v1457 = vpop.f32.mrf.mxu0
    %v1458 = vadd.f32 0.0, %v1457
    %1459 = vdwg.mxu0
    %1461 = vrot.lane.b32.xlu0 %v1268, 32
    %v1462 = vpop.permute.xlu0 %1461
    %v1463 = vsel %vm214, %v1462, 0
    %1465 = vmatpush.msra.mxu0 0.0
    %1466 = vmatpush.msra.mxu0 0.0
    %1467 = vmatpush.msra.mxu0 0.0
    %1468 = vmatpush.msra.mxu0 0.0
    %1469 = vmatpush.msra.mxu0 0.0
    %1470 = vmatpush.msra.mxu0 0.0
    %1471 = vmatpush.msra.mxu0 0.0
    %1472 = vmatpush.msra.mxu0 0.0
    %1473 = vmatpush.msra.mxu0 0.0
    %1474 = vmatpush.msra.mxu0 0.0
    %1475 = vmatpush.msra.mxu0 0.0
    %1476 = vmatpush.msra.mxu0 0.0
    %1477 = vmatpush.msra.mxu0 %v114
    %1478 = vmatpush.msra.mxu0 %v113
    %1479 = vmatpush.msra.mxu0 %v112
    %1480 = vmatpush.msra.mxu0 %v111
    %1481 = vmatmul.f32.gmra.mxu0 %v1463
    %v1482 = vpop.f32.mrf.mxu0
    %v1483 = vadd.f32 %v1458, %v1482
    %1484 = vdwg.mxu0
    %v1485 = vadd.f32 %v1483, %v322
    %v1486 = vxor.u32 %v1485, 2147483648
    %v1487 = vmul.f32 %v1486, 1.442695
    %v1488 = vpow.pop %v1487
    %v1489 = vadd.f32 %v1488, 1.0
    %v1490 = vrcp.pop %v1489
    %v1491 = vmul.f32 %v1489, %v1490
    %v1492 = vsub.f32 1.0, %v1491
    %v1493 = vmul.f32 %v1490, %v1492
    %v1494 = vadd.f32 %v1490, %v1493
    %vm1495 = vweird.f32 %v1489
    %vm1496 = vweird.f32 %v1490
    %vm1497 = vmor %vm1495, %vm1496
    %v1498 = vsel %vm1497, %v1490, %v1494
    %v1499 = vand.u32 2147483647, %v1489
    %vm1500 = vcmp.eq.f32.partialorder %v1499, 8.507059e+37
    %v1501 = vand.u32 %v1489, 2147483648
    %v1502 = vor.u32 1.1754944e-38, %v1501
    %v1503 = vsel %vm1500, %v1502, %v1498
    %v1504 = vmul.f32 1.0, %v1503
    %v1505 = vtanh.pop %v1485
    %v1506 = vmul.f32 %v1504, %v1204
    %1508 = vrot.lane.b32.xlu0 %v1505, 64
    %v1509 = vpop.permute.xlu0 %1508
    %v1511 = vmul.f32 %v1504, %v1509
    %1513 = vrot.lane.b32.xlu0 %v1511, 32
    %v1514 = vpop.permute.xlu0 %1513
    %v1516 = vadd.f32 %v1506, %v1514
    %v1517 = vtanh.pop %v1516
    %1519 = vrot.lane.b32.xlu0 %v1517, 64
    %v1520 = vpop.permute.xlu0 %1519
    %v1522 = vmul.f32 %v1504, %v1520
    %1523 = vmatpush.msra.mxu0 0.0
    %1524 = vmatpush.msra.mxu0 0.0
    %1525 = vmatpush.msra.mxu0 0.0
    %1526 = vmatpush.msra.mxu0 0.0
    %1527 = vmatpush.msra.mxu0 0.0
    %1528 = vmatpush.msra.mxu0 0.0
    %1529 = vmatpush.msra.mxu0 0.0
    %1530 = vmatpush.msra.mxu0 0.0
    %1531 = vmatpush.msra.mxu0 0.0
    %1532 = vmatpush.msra.mxu0 0.0
    %1533 = vmatpush.msra.mxu0 0.0
    %1534 = vmatpush.msra.mxu0 0.0
    %1535 = vmatpush.msra.mxu0 %v95
    %1536 = vmatpush.msra.mxu0 %v94
    %1537 = vmatpush.msra.mxu0 %v93
    %1538 = vmatpush.msra.mxu0 %v92
    %1539 = vmatmul.f32.gmra.mxu0 %v1463
    %v1540 = vpop.f32.mrf.mxu0
    %v1541 = vadd.f32 0.0, %v1540
    %1542 = vdwg.mxu0
    %v1543 = vadd.f32 %v206, %v1541
    %v1544 = vxor.u32 %v1543, 2147483648
    %v1545 = vmul.f32 %v1544, 1.442695
    %v1546 = vpow.pop %v1545
    %v1547 = vadd.f32 %v1546, 1.0
    %v1548 = vrcp.pop %v1547
    %v1549 = vmul.f32 %v1547, %v1548
    %v1550 = vsub.f32 1.0, %v1549
    %v1551 = vmul.f32 %v1548, %v1550
    %v1552 = vadd.f32 %v1548, %v1551
    %vm1553 = vweird.f32 %v1547
    %vm1554 = vweird.f32 %v1548
    %vm1555 = vmor %vm1553, %vm1554
    %v1556 = vsel %vm1555, %v1548, %v1552
    %v1557 = vand.u32 2147483647, %v1547
    %vm1558 = vcmp.eq.f32.partialorder %v1557, 8.507059e+37
    %v1559 = vand.u32 %v1547, 2147483648
    %v1560 = vor.u32 1.1754944e-38, %v1559
    %v1561 = vsel %vm1558, %v1560, %v1556
    %v1562 = vmul.f32 1.0, %v1561
    %v1563 = vtanh.pop %v1543
    %v1564 = vmul.f32 %v1562, %v1262
    %1566 = vrot.lane.b32.xlu0 %v1563, 64
    %v1567 = vpop.permute.xlu0 %1566
    %v1569 = vmul.f32 %v1562, %v1567
    %1571 = vrot.lane.b32.xlu0 %v1569, 32
    %v1572 = vpop.permute.xlu0 %1571
    %v1574 = vadd.f32 %v1564, %v1572
    %v1575 = vtanh.pop %v1574
    %1577 = vrot.lane.b32.xlu0 %v1575, 64
    %v1578 = vpop.permute.xlu0 %1577
    %v1580 = vmul.f32 %v1562, %v1578
    %1582 = vrot.lane.b32.xlu0 %v1356, 32
    %v1583 = vpop.permute.xlu0 %1582
    %v1584 = vsel %vm214, %v1583, 0
    %1586 = vmatpush.msra.mxu0 0.0
    %1587 = vmatpush.msra.mxu0 0.0
    %1588 = vmatpush.msra.mxu0 0.0
    %1589 = vmatpush.msra.mxu0 0.0
    %1590 = vmatpush.msra.mxu0 0.0
    %1591 = vmatpush.msra.mxu0 0.0
    %1592 = vmatpush.msra.mxu0 0.0
    %1593 = vmatpush.msra.mxu0 0.0
    %1594 = vmatpush.msra.mxu0 0.0
    %1595 = vmatpush.msra.mxu0 0.0
    %1596 = vmatpush.msra.mxu0 0.0
    %1597 = vmatpush.msra.mxu0 0.0
    %1598 = vmatpush.msra.mxu0 %v110
    %1599 = vmatpush.msra.mxu0 %v109
    %1600 = vmatpush.msra.mxu0 %v108
    %1601 = vmatpush.msra.mxu0 %v107
    %1602 = vmatmul.f32.gmra.mxu0 %v1584
    %v1603 = vpop.f32.mrf.mxu0
    %v1604 = vadd.f32 0.0, %v1603
    %1605 = vdwg.mxu0
    %1607 = vrot.lane.b32.xlu0 %v1439, 32
    %v1608 = vpop.permute.xlu0 %1607
    %v1609 = vsel %vm214, %v1608, 0
    %1611 = vmatpush.msra.mxu0 0.0
    %1612 = vmatpush.msra.mxu0 0.0
    %1613 = vmatpush.msra.mxu0 0.0
    %1614 = vmatpush.msra.mxu0 0.0
    %1615 = vmatpush.msra.mxu0 0.0
    %1616 = vmatpush.msra.mxu0 0.0
    %1617 = vmatpush.msra.mxu0 0.0
    %1618 = vmatpush.msra.mxu0 0.0
    %1619 = vmatpush.msra.mxu0 0.0
    %1620 = vmatpush.msra.mxu0 0.0
    %1621 = vmatpush.msra.mxu0 0.0
    %1622 = vmatpush.msra.mxu0 0.0
    %1623 = vmatpush.msra.mxu0 %v124
    %1624 = vmatpush.msra.mxu0 %v123
    %1625 = vmatpush.msra.mxu0 %v122
    %1626 = vmatpush.msra.mxu0 %v121
    %1627 = vmatmul.f32.gmra.mxu0 %v1609
    %v1628 = vpop.f32.mrf.mxu0
    %v1629 = vadd.f32 %v1604, %v1628
    %1630 = vdwg.mxu0
    %v1631 = vadd.f32 %v1629, %v693
    %v1632 = vxor.u32 %v1631, 2147483648
    %v1633 = vmul.f32 %v1632, 1.442695
    %v1634 = vpow.pop %v1633
    %v1635 = vadd.f32 %v1634, 1.0
    %v1636 = vrcp.pop %v1635
    %v1637 = vmul.f32 %v1635, %v1636
    %v1638 = vsub.f32 1.0, %v1637
    %v1639 = vmul.f32 %v1636, %v1638
    %v1640 = vadd.f32 %v1636, %v1639
    %vm1641 = vweird.f32 %v1635
    %vm1642 = vweird.f32 %v1636
    %vm1643 = vmor %vm1641, %vm1642
    %v1644 = vsel %vm1643, %v1636, %v1640
    %v1645 = vand.u32 2147483647, %v1635
    %vm1646 = vcmp.eq.f32.partialorder %v1645, 8.507059e+37
    %v1647 = vand.u32 %v1635, 2147483648
    %v1648 = vor.u32 1.1754944e-38, %v1647
    %v1649 = vsel %vm1646, %v1648, %v1644
    %v1650 = vmul.f32 1.0, %v1649
    %v1651 = vtanh.pop %v1631
    %v1652 = vmul.f32 %v1650, %v1350
    %1654 = vrot.lane.b32.xlu0 %v1651, 64
    %v1655 = vpop.permute.xlu0 %1654
    %v1657 = vmul.f32 %v1650, %v1655
    %1659 = vrot.lane.b32.xlu0 %v1657, 32
    %v1660 = vpop.permute.xlu0 %1659
    %v1662 = vadd.f32 %v1652, %v1660
    %v1663 = vtanh.pop %v1662
    %1665 = vrot.lane.b32.xlu0 %v1663, 64
    %v1666 = vpop.permute.xlu0 %1665
    %v1668 = vmul.f32 %v1650, %v1666
    %1669 = vmatpush.msra.mxu0 0.0
    %1670 = vmatpush.msra.mxu0 0.0
    %1671 = vmatpush.msra.mxu0 0.0
    %1672 = vmatpush.msra.mxu0 0.0
    %1673 = vmatpush.msra.mxu0 0.0
    %1674 = vmatpush.msra.mxu0 0.0
    %1675 = vmatpush.msra.mxu0 0.0
    %1676 = vmatpush.msra.mxu0 0.0
    %1677 = vmatpush.msra.mxu0 0.0
    %1678 = vmatpush.msra.mxu0 0.0
    %1679 = vmatpush.msra.mxu0 0.0
    %1680 = vmatpush.msra.mxu0 0.0
    %1681 = vmatpush.msra.mxu0 %v105
    %1682 = vmatpush.msra.mxu0 %v104
    %1683 = vmatpush.msra.mxu0 %v103
    %1684 = vmatpush.msra.mxu0 %v102
    %1685 = vmatmul.f32.gmra.mxu0 %v1609
    %v1686 = vpop.f32.mrf.mxu0
    %v1687 = vadd.f32 0.0, %v1686
    %1688 = vdwg.mxu0
    %1690 = vrot.lane.b32.xlu0 %v1522, 32
    %v1691 = vpop.permute.xlu0 %1690
    %v1692 = vsel %vm214, %v1691, 0
    %1694 = vmatpush.msra.mxu0 0.0
    %1695 = vmatpush.msra.mxu0 0.0
    %1696 = vmatpush.msra.mxu0 0.0
    %1697 = vmatpush.msra.mxu0 0.0
    %1698 = vmatpush.msra.mxu0 0.0
    %1699 = vmatpush.msra.mxu0 0.0
    %1700 = vmatpush.msra.mxu0 0.0
    %1701 = vmatpush.msra.mxu0 0.0
    %1702 = vmatpush.msra.mxu0 0.0
    %1703 = vmatpush.msra.mxu0 0.0
    %1704 = vmatpush.msra.mxu0 0.0
    %1705 = vmatpush.msra.mxu0 0.0
    %1706 = vmatpush.msra.mxu0 %v119
    %1707 = vmatpush.msra.mxu0 %v118
    %1708 = vmatpush.msra.mxu0 %v117
    %1709 = vmatpush.msra.mxu0 %v116
    %1710 = vmatmul.f32.gmra.mxu0 %v1692
    %v1711 = vpop.f32.mrf.mxu0
    %v1712 = vadd.f32 %v1687, %v1711
    %1713 = vdwg.mxu0
    %v1714 = vadd.f32 %v1712, %v466
    %v1715 = vxor.u32 %v1714, 2147483648
    %v1716 = vmul.f32 %v1715, 1.442695
    %v1717 = vpow.pop %v1716
    %v1718 = vadd.f32 %v1717, 1.0
    %v1719 = vrcp.pop %v1718
    %v1720 = vmul.f32 %v1718, %v1719
    %v1721 = vsub.f32 1.0, %v1720
    %v1722 = vmul.f32 %v1719, %v1721
    %v1723 = vadd.f32 %v1719, %v1722
    %vm1724 = vweird.f32 %v1718
    %vm1725 = vweird.f32 %v1719
    %vm1726 = vmor %vm1724, %vm1725
    %v1727 = vsel %vm1726, %v1719, %v1723
    %v1728 = vand.u32 2147483647, %v1718
    %vm1729 = vcmp.eq.f32.partialorder %v1728, 8.507059e+37
    %v1730 = vand.u32 %v1718, 2147483648
    %v1731 = vor.u32 1.1754944e-38, %v1730
    %v1732 = vsel %vm1729, %v1731, %v1727
    %v1733 = vmul.f32 1.0, %v1732
    %v1734 = vtanh.pop %v1714
    %v1735 = vmul.f32 %v1733, %v1433
    %1737 = vrot.lane.b32.xlu0 %v1734, 64
    %v1738 = vpop.permute.xlu0 %1737
    %v1740 = vmul.f32 %v1733, %v1738
    %1742 = vrot.lane.b32.xlu0 %v1740, 32
    %v1743 = vpop.permute.xlu0 %1742
    %v1745 = vadd.f32 %v1735, %v1743
    %v1746 = vtanh.pop %v1745
    %1748 = vrot.lane.b32.xlu0 %v1746, 64
    %v1749 = vpop.permute.xlu0 %1748
    %v1751 = vmul.f32 %v1733, %v1749
    %1752 = vmatpush.msra.mxu0 0.0
    %1753 = vmatpush.msra.mxu0 0.0
    %1754 = vmatpush.msra.mxu0 0.0
    %1755 = vmatpush.msra.mxu0 0.0
    %1756 = vmatpush.msra.mxu0 0.0
    %1757 = vmatpush.msra.mxu0 0.0
    %1758 = vmatpush.msra.mxu0 0.0
    %1759 = vmatpush.msra.mxu0 0.0
    %1760 = vmatpush.msra.mxu0 0.0
    %1761 = vmatpush.msra.mxu0 0.0
    %1762 = vmatpush.msra.mxu0 0.0
    %1763 = vmatpush.msra.mxu0 0.0
    %1764 = vmatpush.msra.mxu0 %v100
    %1765 = vmatpush.msra.mxu0 %v99
    %1766 = vmatpush.msra.mxu0 %v98
    %1767 = vmatpush.msra.mxu0 %v97
    %1768 = vmatmul.f32.gmra.mxu0 %v1692
    %v1769 = vpop.f32.mrf.mxu0
    %v1770 = vadd.f32 0.0, %v1769
    %1771 = vdwg.mxu0
    %1773 = vrot.lane.b32.xlu0 %v1580, 32
    %v1774 = vpop.permute.xlu0 %1773
    %v1775 = vsel %vm214, %v1774, 0
    %1777 = vmatpush.msra.mxu0 0.0
    %1778 = vmatpush.msra.mxu0 0.0
    %1779 = vmatpush.msra.mxu0 0.0
    %1780 = vmatpush.msra.mxu0 0.0
    %1781 = vmatpush.msra.mxu0 0.0
    %1782 = vmatpush.msra.mxu0 0.0
    %1783 = vmatpush.msra.mxu0 0.0
    %1784 = vmatpush.msra.mxu0 0.0
    %1785 = vmatpush.msra.mxu0 0.0
    %1786 = vmatpush.msra.mxu0 0.0
    %1787 = vmatpush.msra.mxu0 0.0
    %1788 = vmatpush.msra.mxu0 0.0
    %1789 = vmatpush.msra.mxu0 %v114
    %1790 = vmatpush.msra.mxu0 %v113
    %1791 = vmatpush.msra.mxu0 %v112
    %1792 = vmatpush.msra.mxu0 %v111
    %1793 = vmatmul.f32.gmra.mxu0 %v1775
    %v1794 = vpop.f32.mrf.mxu0
    %v1795 = vadd.f32 %v1770, %v1794
    %1796 = vdwg.mxu0
    %v1797 = vadd.f32 %v1795, %v322
    %v1798 = vxor.u32 %v1797, 2147483648
    %v1799 = vmul.f32 %v1798, 1.442695
    %v1800 = vpow.pop %v1799
    %v1801 = vadd.f32 %v1800, 1.0
    %v1802 = vrcp.pop %v1801
    %v1803 = vmul.f32 %v1801, %v1802
    %v1804 = vsub.f32 1.0, %v1803
    %v1805 = vmul.f32 %v1802, %v1804
    %v1806 = vadd.f32 %v1802, %v1805
    %vm1807 = vweird.f32 %v1801
    %vm1808 = vweird.f32 %v1802
    %vm1809 = vmor %vm1807, %vm1808
    %v1810 = vsel %vm1809, %v1802, %v1806
    %v1811 = vand.u32 2147483647, %v1801
    %vm1812 = vcmp.eq.f32.partialorder %v1811, 8.507059e+37
    %v1813 = vand.u32 %v1801, 2147483648
    %v1814 = vor.u32 1.1754944e-38, %v1813
    %v1815 = vsel %vm1812, %v1814, %v1810
    %v1816 = vmul.f32 1.0, %v1815
    %v1817 = vtanh.pop %v1797
    %v1818 = vmul.f32 %v1816, %v1516
    %1820 = vrot.lane.b32.xlu0 %v1817, 64
    %v1821 = vpop.permute.xlu0 %1820
    %v1823 = vmul.f32 %v1816, %v1821
    %1825 = vrot.lane.b32.xlu0 %v1823, 32
    %v1826 = vpop.permute.xlu0 %1825
    %v1828 = vadd.f32 %v1818, %v1826
    %v1829 = vtanh.pop %v1828
    %1831 = vrot.lane.b32.xlu0 %v1829, 64
    %v1832 = vpop.permute.xlu0 %1831
    %v1834 = vmul.f32 %v1816, %v1832
    %1835 = vmatpush.msra.mxu0 0.0
    %1836 = vmatpush.msra.mxu0 0.0
    %1837 = vmatpush.msra.mxu0 0.0
    %1838 = vmatpush.msra.mxu0 0.0
    %1839 = vmatpush.msra.mxu0 0.0
    %1840 = vmatpush.msra.mxu0 0.0
    %1841 = vmatpush.msra.mxu0 0.0
    %1842 = vmatpush.msra.mxu0 0.0
    %1843 = vmatpush.msra.mxu0 0.0
    %1844 = vmatpush.msra.mxu0 0.0
    %1845 = vmatpush.msra.mxu0 0.0
    %1846 = vmatpush.msra.mxu0 0.0
    %1847 = vmatpush.msra.mxu0 %v95
    %1848 = vmatpush.msra.mxu0 %v94
    %1849 = vmatpush.msra.mxu0 %v93
    %1850 = vmatpush.msra.mxu0 %v92
    %1851 = vmatmul.f32.gmra.mxu0 %v1775
    %v1852 = vpop.f32.mrf.mxu0
    %v1853 = vadd.f32 0.0, %v1852
    %1854 = vdwg.mxu0
    %v1855 = vadd.f32 %v209, %v1853
    %v1856 = vxor.u32 %v1855, 2147483648
    %v1857 = vmul.f32 %v1856, 1.442695
    %v1858 = vpow.pop %v1857
    %v1859 = vadd.f32 %v1858, 1.0
    %v1860 = vrcp.pop %v1859
    %v1861 = vmul.f32 %v1859, %v1860
    %v1862 = vsub.f32 1.0, %v1861
    %v1863 = vmul.f32 %v1860, %v1862
    %v1864 = vadd.f32 %v1860, %v1863
    %vm1865 = vweird.f32 %v1859
    %vm1866 = vweird.f32 %v1860
    %vm1867 = vmor %vm1865, %vm1866
    %v1868 = vsel %vm1867, %v1860, %v1864
    %v1869 = vand.u32 2147483647, %v1859
    %vm1870 = vcmp.eq.f32.partialorder %v1869, 8.507059e+37
    %v1871 = vand.u32 %v1859, 2147483648
    %v1872 = vor.u32 1.1754944e-38, %v1871
    %v1873 = vsel %vm1870, %v1872, %v1868
    %v1874 = vmul.f32 1.0, %v1873
    %v1875 = vtanh.pop %v1855
    %v1876 = vmul.f32 %v1874, %v1574
    %1878 = vrot.lane.b32.xlu0 %v1875, 64
    %v1879 = vpop.permute.xlu0 %1878
    %v1881 = vmul.f32 %v1874, %v1879
    %1883 = vrot.lane.b32.xlu0 %v1881, 32
    %v1884 = vpop.permute.xlu0 %1883
    %v1886 = vadd.f32 %v1876, %v1884
    %v1887 = vtanh.pop %v1886
    %1889 = vrot.lane.b32.xlu0 %v1887, 64
    %v1890 = vpop.permute.xlu0 %1889
    %v1892 = vmul.f32 %v1874, %v1890
    %1894 = vrot.lane.b32.xlu0 %v1668, 32
    %v1895 = vpop.permute.xlu0 %1894
    %v1896 = vsel %vm214, %v1895, 0
    %1898 = vmatpush.msra.mxu0 0.0
    %1899 = vmatpush.msra.mxu0 0.0
    %1900 = vmatpush.msra.mxu0 0.0
    %1901 = vmatpush.msra.mxu0 0.0
    %1902 = vmatpush.msra.mxu0 0.0
    %1903 = vmatpush.msra.mxu0 0.0
    %1904 = vmatpush.msra.mxu0 0.0
    %1905 = vmatpush.msra.mxu0 0.0
    %1906 = vmatpush.msra.mxu0 0.0
    %1907 = vmatpush.msra.mxu0 0.0
    %1908 = vmatpush.msra.mxu0 0.0
    %1909 = vmatpush.msra.mxu0 0.0
    %1910 = vmatpush.msra.mxu0 %v110
    %1911 = vmatpush.msra.mxu0 %v109
    %1912 = vmatpush.msra.mxu0 %v108
    %1913 = vmatpush.msra.mxu0 %v107
    %1914 = vmatmul.f32.gmra.mxu0 %v1896
    %v1915 = vpop.f32.mrf.mxu0
    %v1916 = vadd.f32 0.0, %v1915
    %1917 = vdwg.mxu0
    %1919 = vrot.lane.b32.xlu0 %v1751, 32
    %v1920 = vpop.permute.xlu0 %1919
    %v1921 = vsel %vm214, %v1920, 0
    %1923 = vmatpush.msra.mxu0 0.0
    %1924 = vmatpush.msra.mxu0 0.0
    %1925 = vmatpush.msra.mxu0 0.0
    %1926 = vmatpush.msra.mxu0 0.0
    %1927 = vmatpush.msra.mxu0 0.0
    %1928 = vmatpush.msra.mxu0 0.0
    %1929 = vmatpush.msra.mxu0 0.0
    %1930 = vmatpush.msra.mxu0 0.0
    %1931 = vmatpush.msra.mxu0 0.0
    %1932 = vmatpush.msra.mxu0 0.0
    %1933 = vmatpush.msra.mxu0 0.0
    %1934 = vmatpush.msra.mxu0 0.0
    %1935 = vmatpush.msra.mxu0 %v124
    %1936 = vmatpush.msra.mxu0 %v123
    %1937 = vmatpush.msra.mxu0 %v122
    %1938 = vmatpush.msra.mxu0 %v121
    %1939 = vmatmul.f32.gmra.mxu0 %v1921
    %v1940 = vpop.f32.mrf.mxu0
    %v1941 = vadd.f32 %v1916, %v1940
    %1942 = vdwg.mxu0
    %v1943 = vadd.f32 %v1941, %v693
    %v1944 = vxor.u32 %v1943, 2147483648
    %v1945 = vmul.f32 %v1944, 1.442695
    %v1946 = vpow.pop %v1945
    %v1947 = vadd.f32 %v1946, 1.0
    %v1948 = vrcp.pop %v1947
    %v1949 = vmul.f32 %v1947, %v1948
    %v1950 = vsub.f32 1.0, %v1949
    %v1951 = vmul.f32 %v1948, %v1950
    %v1952 = vadd.f32 %v1948, %v1951
    %vm1953 = vweird.f32 %v1947
    %vm1954 = vweird.f32 %v1948
    %vm1955 = vmor %vm1953, %vm1954
    %v1956 = vsel %vm1955, %v1948, %v1952
    %v1957 = vand.u32 2147483647, %v1947
    %vm1958 = vcmp.eq.f32.partialorder %v1957, 8.507059e+37
    %v1959 = vand.u32 %v1947, 2147483648
    %v1960 = vor.u32 1.1754944e-38, %v1959
    %v1961 = vsel %vm1958, %v1960, %v1956
    %v1962 = vmul.f32 1.0, %v1961
    %v1963 = vtanh.pop %v1943
    %v1964 = vmul.f32 %v1962, %v1662
    %1966 = vrot.lane.b32.xlu0 %v1963, 64
    %v1967 = vpop.permute.xlu0 %1966
    %v1969 = vmul.f32 %v1962, %v1967
    %1971 = vrot.lane.b32.xlu0 %v1969, 32
    %v1972 = vpop.permute.xlu0 %1971
    %v1974 = vadd.f32 %v1964, %v1972
    %v1975 = vtanh.pop %v1974
    %1977 = vrot.lane.b32.xlu0 %v1975, 64
    %v1978 = vpop.permute.xlu0 %1977
    %v1980 = vmul.f32 %v1962, %v1978
    %1981 = vmatpush.msra.mxu0 0.0
    %1982 = vmatpush.msra.mxu0 0.0
    %1983 = vmatpush.msra.mxu0 0.0
    %1984 = vmatpush.msra.mxu0 0.0
    %1985 = vmatpush.msra.mxu0 0.0
    %1986 = vmatpush.msra.mxu0 0.0
    %1987 = vmatpush.msra.mxu0 0.0
    %1988 = vmatpush.msra.mxu0 0.0
    %1989 = vmatpush.msra.mxu0 0.0
    %1990 = vmatpush.msra.mxu0 0.0
    %1991 = vmatpush.msra.mxu0 0.0
    %1992 = vmatpush.msra.mxu0 0.0
    %1993 = vmatpush.msra.mxu0 %v105
    %1994 = vmatpush.msra.mxu0 %v104
    %1995 = vmatpush.msra.mxu0 %v103
    %1996 = vmatpush.msra.mxu0 %v102
    %1997 = vmatmul.f32.gmra.mxu0 %v1921
    %v1998 = vpop.f32.mrf.mxu0
    %v1999 = vadd.f32 0.0, %v1998
    %2000 = vdwg.mxu0
    %2002 = vrot.lane.b32.xlu0 %v1834, 32
    %v2003 = vpop.permute.xlu0 %2002
    %v2004 = vsel %vm214, %v2003, 0
    %2006 = vmatpush.msra.mxu0 0.0
    %2007 = vmatpush.msra.mxu0 0.0
    %2008 = vmatpush.msra.mxu0 0.0
    %2009 = vmatpush.msra.mxu0 0.0
    %2010 = vmatpush.msra.mxu0 0.0
    %2011 = vmatpush.msra.mxu0 0.0
    %2012 = vmatpush.msra.mxu0 0.0
    %2013 = vmatpush.msra.mxu0 0.0
    %2014 = vmatpush.msra.mxu0 0.0
    %2015 = vmatpush.msra.mxu0 0.0
    %2016 = vmatpush.msra.mxu0 0.0
    %2017 = vmatpush.msra.mxu0 0.0
    %2018 = vmatpush.msra.mxu0 %v119
    %2019 = vmatpush.msra.mxu0 %v118
    %2020 = vmatpush.msra.mxu0 %v117
    %2021 = vmatpush.msra.mxu0 %v116
    %2022 = vmatmul.f32.gmra.mxu0 %v2004
    %v2023 = vpop.f32.mrf.mxu0
    %v2024 = vadd.f32 %v1999, %v2023
    %2025 = vdwg.mxu0
    %v2026 = vadd.f32 %v2024, %v466
    %v2027 = vxor.u32 %v2026, 2147483648
    %v2028 = vmul.f32 %v2027, 1.442695
    %v2029 = vpow.pop %v2028
    %v2030 = vadd.f32 %v2029, 1.0
    %v2031 = vrcp.pop %v2030
    %v2032 = vmul.f32 %v2030, %v2031
    %v2033 = vsub.f32 1.0, %v2032
    %v2034 = vmul.f32 %v2031, %v2033
    %v2035 = vadd.f32 %v2031, %v2034
    %vm2036 = vweird.f32 %v2030
    %vm2037 = vweird.f32 %v2031
    %vm2038 = vmor %vm2036, %vm2037
    %v2039 = vsel %vm2038, %v2031, %v2035
    %v2040 = vand.u32 2147483647, %v2030
    %vm2041 = vcmp.eq.f32.partialorder %v2040, 8.507059e+37
    %v2042 = vand.u32 %v2030, 2147483648
    %v2043 = vor.u32 1.1754944e-38, %v2042
    %v2044 = vsel %vm2041, %v2043, %v2039
    %v2045 = vmul.f32 1.0, %v2044
    %v2046 = vtanh.pop %v2026
    %v2047 = vmul.f32 %v2045, %v1745
    %2049 = vrot.lane.b32.xlu0 %v2046, 64
    %v2050 = vpop.permute.xlu0 %2049
    %v2052 = vmul.f32 %v2045, %v2050
    %2054 = vrot.lane.b32.xlu0 %v2052, 32
    %v2055 = vpop.permute.xlu0 %2054
    %v2057 = vadd.f32 %v2047, %v2055
    %v2058 = vtanh.pop %v2057
    %2060 = vrot.lane.b32.xlu0 %v2058, 64
    %v2061 = vpop.permute.xlu0 %2060
    %v2063 = vmul.f32 %v2045, %v2061
    %2064 = vmatpush.msra.mxu0 0.0
    %2065 = vmatpush.msra.mxu0 0.0
    %2066 = vmatpush.msra.mxu0 0.0
    %2067 = vmatpush.msra.mxu0 0.0
    %2068 = vmatpush.msra.mxu0 0.0
    %2069 = vmatpush.msra.mxu0 0.0
    %2070 = vmatpush.msra.mxu0 0.0
    %2071 = vmatpush.msra.mxu0 0.0
    %2072 = vmatpush.msra.mxu0 0.0
    %2073 = vmatpush.msra.mxu0 0.0
    %2074 = vmatpush.msra.mxu0 0.0
    %2075 = vmatpush.msra.mxu0 0.0
    %2076 = vmatpush.msra.mxu0 %v100
    %2077 = vmatpush.msra.mxu0 %v99
    %2078 = vmatpush.msra.mxu0 %v98
    %2079 = vmatpush.msra.mxu0 %v97
    %2080 = vmatmul.f32.gmra.mxu0 %v2004
    %v2081 = vpop.f32.mrf.mxu0
    %v2082 = vadd.f32 0.0, %v2081
    %2083 = vdwg.mxu0
    %2085 = vrot.lane.b32.xlu0 %v1892, 32
    %v2086 = vpop.permute.xlu0 %2085
    %v2087 = vsel %vm214, %v2086, 0
    %2089 = vmatpush.msra.mxu0 0.0
    %2090 = vmatpush.msra.mxu0 0.0
    %2091 = vmatpush.msra.mxu0 0.0
    %2092 = vmatpush.msra.mxu0 0.0
    %2093 = vmatpush.msra.mxu0 0.0
    %2094 = vmatpush.msra.mxu0 0.0
    %2095 = vmatpush.msra.mxu0 0.0
    %2096 = vmatpush.msra.mxu0 0.0
    %2097 = vmatpush.msra.mxu0 0.0
    %2098 = vmatpush.msra.mxu0 0.0
    %2099 = vmatpush.msra.mxu0 0.0
    %2100 = vmatpush.msra.mxu0 0.0
    %2101 = vmatpush.msra.mxu0 %v114
    %2102 = vmatpush.msra.mxu0 %v113
    %2103 = vmatpush.msra.mxu0 %v112
    %2104 = vmatpush.msra.mxu0 %v111
    %2105 = vmatmul.f32.gmra.mxu0 %v2087
    %v2106 = vpop.f32.mrf.mxu0
    %v2107 = vadd.f32 %v2082, %v2106
    %2108 = vdwg.mxu0
    %v2109 = vadd.f32 %v2107, %v322
    %v2110 = vxor.u32 %v2109, 2147483648
    %v2111 = vmul.f32 %v2110, 1.442695
    %v2112 = vpow.pop %v2111
    %v2113 = vadd.f32 %v2112, 1.0
    %v2114 = vrcp.pop %v2113
    %v2115 = vmul.f32 %v2113, %v2114
    %v2116 = vsub.f32 1.0, %v2115
    %v2117 = vmul.f32 %v2114, %v2116
    %v2118 = vadd.f32 %v2114, %v2117
    %vm2119 = vweird.f32 %v2113
    %vm2120 = vweird.f32 %v2114
    %vm2121 = vmor %vm2119, %vm2120
    %v2122 = vsel %vm2121, %v2114, %v2118
    %v2123 = vand.u32 2147483647, %v2113
    %vm2124 = vcmp.eq.f32.partialorder %v2123, 8.507059e+37
    %v2125 = vand.u32 %v2113, 2147483648
    %v2126 = vor.u32 1.1754944e-38, %v2125
    %v2127 = vsel %vm2124, %v2126, %v2122
    %v2128 = vmul.f32 1.0, %v2127
    %v2129 = vtanh.pop %v2109
    %v2130 = vmul.f32 %v2128, %v1828
    %2132 = vrot.lane.b32.xlu0 %v2129, 64
    %v2133 = vpop.permute.xlu0 %2132
    %v2135 = vmul.f32 %v2128, %v2133
    %2137 = vrot.lane.b32.xlu0 %v2135, 32
    %v2138 = vpop.permute.xlu0 %2137
    %v2140 = vadd.f32 %v2130, %v2138
    %v2141 = vtanh.pop %v2140
    %2143 = vrot.lane.b32.xlu0 %v2141, 64
    %v2144 = vpop.permute.xlu0 %2143
    %v2146 = vmul.f32 %v2128, %v2144
    %2147 = vmatpush.msra.mxu0 0.0
    %2148 = vmatpush.msra.mxu0 0.0
    %2149 = vmatpush.msra.mxu0 0.0
    %2150 = vmatpush.msra.mxu0 0.0
    %2151 = vmatpush.msra.mxu0 0.0
    %2152 = vmatpush.msra.mxu0 0.0
    %2153 = vmatpush.msra.mxu0 0.0
    %2154 = vmatpush.msra.mxu0 0.0
    %2155 = vmatpush.msra.mxu0 0.0
    %2156 = vmatpush.msra.mxu0 0.0
    %2157 = vmatpush.msra.mxu0 0.0
    %2158 = vmatpush.msra.mxu0 0.0
    %2159 = vmatpush.msra.mxu0 %v95
    %2160 = vmatpush.msra.mxu0 %v94
    %2161 = vmatpush.msra.mxu0 %v93
    %2162 = vmatpush.msra.mxu0 %v92
    %2163 = vmatmul.f32.gmra.mxu0 %v2087
    %v2164 = vpop.f32.mrf.mxu0
    %v2165 = vadd.f32 0.0, %v2164
    %2166 = vdwg.mxu0
    %v2167 = vadd.f32 %v212, %v2165
    %v2168 = vxor.u32 %v2167, 2147483648
    %v2169 = vmul.f32 %v2168, 1.442695
    %v2170 = vpow.pop %v2169
    %v2171 = vadd.f32 %v2170, 1.0
    %v2172 = vrcp.pop %v2171
    %v2173 = vmul.f32 %v2171, %v2172
    %v2174 = vsub.f32 1.0, %v2173
    %v2175 = vmul.f32 %v2172, %v2174
    %v2176 = vadd.f32 %v2172, %v2175
    %vm2177 = vweird.f32 %v2171
    %vm2178 = vweird.f32 %v2172
    %vm2179 = vmor %vm2177, %vm2178
    %v2180 = vsel %vm2179, %v2172, %v2176
    %v2181 = vand.u32 2147483647, %v2171
    %vm2182 = vcmp.eq.f32.partialorder %v2181, 8.507059e+37
    %v2183 = vand.u32 %v2171, 2147483648
    %v2184 = vor.u32 1.1754944e-38, %v2183
    %v2185 = vsel %vm2182, %v2184, %v2180
    %v2186 = vmul.f32 1.0, %v2185
    %v2187 = vtanh.pop %v2167
    %v2188 = vmul.f32 %v2186, %v1886
    %2190 = vrot.lane.b32.xlu0 %v2187, 64
    %v2191 = vpop.permute.xlu0 %2190
    %v2193 = vmul.f32 %v2186, %v2191
    %2195 = vrot.lane.b32.xlu0 %v2193, 32
    %v2196 = vpop.permute.xlu0 %2195
    %v2198 = vadd.f32 %v2188, %v2196
    %v2199 = vtanh.pop %v2198
    %2201 = vrot.lane.b32.xlu0 %v2199, 64
    %v2202 = vpop.permute.xlu0 %2201
    %v2204 = vmul.f32 %v2186, %v2202
    %2206 = vrot.lane.b32.xlu0 %v1980, 32
    %v2207 = vpop.permute.xlu0 %2206
    %v2208 = vsel %vm214, %v2207, 0
    %2210 = vmatpush.msra.mxu0 0.0
    %2211 = vmatpush.msra.mxu0 0.0
    %2212 = vmatpush.msra.mxu0 0.0
    %2213 = vmatpush.msra.mxu0 0.0
    %2214 = vmatpush.msra.mxu0 0.0
    %2215 = vmatpush.msra.mxu0 0.0
    %2216 = vmatpush.msra.mxu0 0.0
    %2217 = vmatpush.msra.mxu0 0.0
    %2218 = vmatpush.msra.mxu0 0.0
    %2219 = vmatpush.msra.mxu0 0.0
    %2220 = vmatpush.msra.mxu0 0.0
    %2221 = vmatpush.msra.mxu0 0.0
    %2222 = vmatpush.msra.mxu0 %v110
    %2223 = vmatpush.msra.mxu0 %v109
    %2224 = vmatpush.msra.mxu0 %v108
    %2225 = vmatpush.msra.mxu0 %v107
    %2226 = vmatmul.f32.gmra.mxu0 %v2208
    %v2227 = vpop.f32.mrf.mxu0
    %v2228 = vadd.f32 0.0, %v2227
    %2229 = vdwg.mxu0
    %2231 = vrot.lane.b32.xlu0 %v2063, 32
    %v2232 = vpop.permute.xlu0 %2231
    %v2233 = vsel %vm214, %v2232, 0
    %2235 = vmatpush.msra.mxu0 0.0
    %2236 = vmatpush.msra.mxu0 0.0
    %2237 = vmatpush.msra.mxu0 0.0
    %2238 = vmatpush.msra.mxu0 0.0
    %2239 = vmatpush.msra.mxu0 0.0
    %2240 = vmatpush.msra.mxu0 0.0
    %2241 = vmatpush.msra.mxu0 0.0
    %2242 = vmatpush.msra.mxu0 0.0
    %2243 = vmatpush.msra.mxu0 0.0
    %2244 = vmatpush.msra.mxu0 0.0
    %2245 = vmatpush.msra.mxu0 0.0
    %2246 = vmatpush.msra.mxu0 0.0
    %2247 = vmatpush.msra.mxu0 %v124
    %2248 = vmatpush.msra.mxu0 %v123
    %2249 = vmatpush.msra.mxu0 %v122
    %2250 = vmatpush.msra.mxu0 %v121
    %2251 = vmatmul.f32.gmra.mxu0 %v2233
    %v2252 = vpop.f32.mrf.mxu0
    %v2253 = vadd.f32 %v2228, %v2252
    %2254 = vdwg.mxu0
    %v2255 = vadd.f32 %v2253, %v693
    %v2256 = vxor.u32 %v2255, 2147483648
    %v2257 = vmul.f32 %v2256, 1.442695
    %v2258 = vpow.pop %v2257
    %v2259 = vadd.f32 %v2258, 1.0
    %v2260 = vrcp.pop %v2259
    %v2261 = vmul.f32 %v2259, %v2260
    %v2262 = vsub.f32 1.0, %v2261
    %v2263 = vmul.f32 %v2260, %v2262
    %v2264 = vadd.f32 %v2260, %v2263
    %vm2265 = vweird.f32 %v2259
    %vm2266 = vweird.f32 %v2260
    %vm2267 = vmor %vm2265, %vm2266
    %v2268 = vsel %vm2267, %v2260, %v2264
    %v2269 = vand.u32 2147483647, %v2259
    %vm2270 = vcmp.eq.f32.partialorder %v2269, 8.507059e+37
    %v2271 = vand.u32 %v2259, 2147483648
    %v2272 = vor.u32 1.1754944e-38, %v2271
    %v2273 = vsel %vm2270, %v2272, %v2268
    %v2274 = vmul.f32 1.0, %v2273
    %v2275 = vtanh.pop %v2255
    %v2276 = vmul.f32 %v2274, %v1974
    %2278 = vrot.lane.b32.xlu0 %v2275, 64
    %v2279 = vpop.permute.xlu0 %2278
    %v2281 = vmul.f32 %v2274, %v2279
    %2283 = vrot.lane.b32.xlu0 %v2281, 32
    %v2284 = vpop.permute.xlu0 %2283
    %v2286 = vadd.f32 %v2276, %v2284
    %v2287 = vtanh.pop %v2286
    %2289 = vrot.lane.b32.xlu0 %v2287, 64
    %v2290 = vpop.permute.xlu0 %2289
    %v2292 = vmul.f32 %v2274, %v2290
    %2293 = vmatpush.msra.mxu0 0.0
    %2294 = vmatpush.msra.mxu0 0.0
    %2295 = vmatpush.msra.mxu0 0.0
    %2296 = vmatpush.msra.mxu0 0.0
    %2297 = vmatpush.msra.mxu0 0.0
    %2298 = vmatpush.msra.mxu0 0.0
    %2299 = vmatpush.msra.mxu0 0.0
    %2300 = vmatpush.msra.mxu0 0.0
    %2301 = vmatpush.msra.mxu0 0.0
    %2302 = vmatpush.msra.mxu0 0.0
    %2303 = vmatpush.msra.mxu0 0.0
    %2304 = vmatpush.msra.mxu0 0.0
    %2305 = vmatpush.msra.mxu0 %v105
    %2306 = vmatpush.msra.mxu0 %v104
    %2307 = vmatpush.msra.mxu0 %v103
    %2308 = vmatpush.msra.mxu0 %v102
    %2309 = vmatmul.f32.gmra.mxu0 %v2233
    %v2310 = vpop.f32.mrf.mxu0
    %v2311 = vadd.f32 0.0, %v2310
    %2312 = vdwg.mxu0
    %2314 = vrot.lane.b32.xlu0 %v2146, 32
    %v2315 = vpop.permute.xlu0 %2314
    %v2316 = vsel %vm214, %v2315, 0
    %2318 = vmatpush.msra.mxu0 0.0
    %2319 = vmatpush.msra.mxu0 0.0
    %2320 = vmatpush.msra.mxu0 0.0
    %2321 = vmatpush.msra.mxu0 0.0
    %2322 = vmatpush.msra.mxu0 0.0
    %2323 = vmatpush.msra.mxu0 0.0
    %2324 = vmatpush.msra.mxu0 0.0
    %2325 = vmatpush.msra.mxu0 0.0
    %2326 = vmatpush.msra.mxu0 0.0
    %2327 = vmatpush.msra.mxu0 0.0
    %2328 = vmatpush.msra.mxu0 0.0
    %2329 = vmatpush.msra.mxu0 0.0
    %2330 = vmatpush.msra.mxu0 %v119
    %2331 = vmatpush.msra.mxu0 %v118
    %2332 = vmatpush.msra.mxu0 %v117
    %2333 = vmatpush.msra.mxu0 %v116
    %2334 = vmatmul.f32.gmra.mxu0 %v2316
    %v2335 = vpop.f32.mrf.mxu0
    %v2336 = vadd.f32 %v2311, %v2335
    %2337 = vdwg.mxu0
    %v2338 = vadd.f32 %v2336, %v466
    %v2339 = vxor.u32 %v2338, 2147483648
    %v2340 = vmul.f32 %v2339, 1.442695
    %v2341 = vpow.pop %v2340
    %v2342 = vadd.f32 %v2341, 1.0
    %v2343 = vrcp.pop %v2342
    %v2344 = vmul.f32 %v2342, %v2343
    %v2345 = vsub.f32 1.0, %v2344
    %v2346 = vmul.f32 %v2343, %v2345
    %v2347 = vadd.f32 %v2343, %v2346
    %vm2348 = vweird.f32 %v2342
    %vm2349 = vweird.f32 %v2343
    %vm2350 = vmor %vm2348, %vm2349
    %v2351 = vsel %vm2350, %v2343, %v2347
    %v2352 = vand.u32 2147483647, %v2342
    %vm2353 = vcmp.eq.f32.partialorder %v2352, 8.507059e+37
    %v2354 = vand.u32 %v2342, 2147483648
    %v2355 = vor.u32 1.1754944e-38, %v2354
    %v2356 = vsel %vm2353, %v2355, %v2351
    %v2357 = vmul.f32 1.0, %v2356
    %v2358 = vtanh.pop %v2338
    %v2359 = vmul.f32 %v2357, %v2057
    %2361 = vrot.lane.b32.xlu0 %v2358, 64
    %v2362 = vpop.permute.xlu0 %2361
    %v2364 = vmul.f32 %v2357, %v2362
    %2366 = vrot.lane.b32.xlu0 %v2364, 32
    %v2367 = vpop.permute.xlu0 %2366
    %v2369 = vadd.f32 %v2359, %v2367
    %v2370 = vtanh.pop %v2369
    %2372 = vrot.lane.b32.xlu0 %v2370, 64
    %v2373 = vpop.permute.xlu0 %2372
    %v2375 = vmul.f32 %v2357, %v2373
    %2376 = vmatpush.msra.mxu0 0.0
    %2377 = vmatpush.msra.mxu0 0.0
    %2378 = vmatpush.msra.mxu0 0.0
    %2379 = vmatpush.msra.mxu0 0.0
    %2380 = vmatpush.msra.mxu0 0.0
    %2381 = vmatpush.msra.mxu0 0.0
    %2382 = vmatpush.msra.mxu0 0.0
    %2383 = vmatpush.msra.mxu0 0.0
    %2384 = vmatpush.msra.mxu0 0.0
    %2385 = vmatpush.msra.mxu0 0.0
    %2386 = vmatpush.msra.mxu0 0.0
    %2387 = vmatpush.msra.mxu0 0.0
    %2388 = vmatpush.msra.mxu0 %v100
    %2389 = vmatpush.msra.mxu0 %v99
    %2390 = vmatpush.msra.mxu0 %v98
    %2391 = vmatpush.msra.mxu0 %v97
    %2392 = vmatmul.f32.gmra.mxu0 %v2316
    %v2393 = vpop.f32.mrf.mxu0
    %v2394 = vadd.f32 0.0, %v2393
    %2395 = vdwg.mxu0
    %2397 = vrot.lane.b32.xlu0 %v2204, 32
    %v2398 = vpop.permute.xlu0 %2397
    %v2399 = vsel %vm214, %v2398, 0
    %2401 = vmatpush.msra.mxu0 0.0
    %2402 = vmatpush.msra.mxu0 0.0
    %2403 = vmatpush.msra.mxu0 0.0
    %2404 = vmatpush.msra.mxu0 0.0
    %2405 = vmatpush.msra.mxu0 0.0
    %2406 = vmatpush.msra.mxu0 0.0
    %2407 = vmatpush.msra.mxu0 0.0
    %2408 = vmatpush.msra.mxu0 0.0
    %2409 = vmatpush.msra.mxu0 0.0
    %2410 = vmatpush.msra.mxu0 0.0
    %2411 = vmatpush.msra.mxu0 0.0
    %2412 = vmatpush.msra.mxu0 0.0
    %2413 = vmatpush.msra.mxu0 %v114
    %2414 = vmatpush.msra.mxu0 %v113
    %2415 = vmatpush.msra.mxu0 %v112
    %2416 = vmatpush.msra.mxu0 %v111
    %2417 = vmatmul.f32.gmra.mxu0 %v2399
    %v2418 = vpop.f32.mrf.mxu0
    %v2419 = vadd.f32 %v2394, %v2418
    %2420 = vdwg.mxu0
    %v2421 = vadd.f32 %v2419, %v322
    %v2422 = vxor.u32 %v2421, 2147483648
    %v2423 = vmul.f32 %v2422, 1.442695
    %v2424 = vpow.pop %v2423
    %v2425 = vadd.f32 %v2424, 1.0
    %v2426 = vrcp.pop %v2425
    %v2427 = vmul.f32 %v2425, %v2426
    %v2428 = vsub.f32 1.0, %v2427
    %v2429 = vmul.f32 %v2426, %v2428
    %v2430 = vadd.f32 %v2426, %v2429
    %vm2431 = vweird.f32 %v2425
    %vm2432 = vweird.f32 %v2426
    %vm2433 = vmor %vm2431, %vm2432
    %v2434 = vsel %vm2433, %v2426, %v2430
    %v2435 = vand.u32 2147483647, %v2425
    %vm2436 = vcmp.eq.f32.partialorder %v2435, 8.507059e+37
    %v2437 = vand.u32 %v2425, 2147483648
    %v2438 = vor.u32 1.1754944e-38, %v2437
    %v2439 = vsel %vm2436, %v2438, %v2434
    %v2440 = vmul.f32 1.0, %v2439
    %v2441 = vtanh.pop %v2421
    %v2442 = vmul.f32 %v2440, %v2140
    %2444 = vrot.lane.b32.xlu0 %v2441, 64
    %v2445 = vpop.permute.xlu0 %2444
    %v2447 = vmul.f32 %v2440, %v2445
    %2449 = vrot.lane.b32.xlu0 %v2447, 32
    %v2450 = vpop.permute.xlu0 %2449
    %v2452 = vadd.f32 %v2442, %v2450
    %v2453 = vtanh.pop %v2452
    %2455 = vrot.lane.b32.xlu0 %v2453, 64
    %v2456 = vpop.permute.xlu0 %2455
    %v2458 = vmul.f32 %v2440, %v2456
    %2460 = vrot.lane.b32.xlu0 %v2292, 32
    %v2461 = vpop.permute.xlu0 %2460
    %v2462 = vsel %vm214, %v2461, 0
    %2464 = vmatpush.msra.mxu0 0.0
    %2465 = vmatpush.msra.mxu0 0.0
    %2466 = vmatpush.msra.mxu0 0.0
    %2467 = vmatpush.msra.mxu0 0.0
    %2468 = vmatpush.msra.mxu0 0.0
    %2469 = vmatpush.msra.mxu0 0.0
    %2470 = vmatpush.msra.mxu0 0.0
    %2471 = vmatpush.msra.mxu0 0.0
    %2472 = vmatpush.msra.mxu0 0.0
    %2473 = vmatpush.msra.mxu0 0.0
    %2474 = vmatpush.msra.mxu0 0.0
    %2475 = vmatpush.msra.mxu0 0.0
    %2476 = vmatpush.msra.mxu0 %v110
    %2477 = vmatpush.msra.mxu0 %v109
    %2478 = vmatpush.msra.mxu0 %v108
    %2479 = vmatpush.msra.mxu0 %v107
    %2480 = vmatmul.f32.gmra.mxu0 %v2462
    %v2481 = vpop.f32.mrf.mxu0
    %v2482 = vadd.f32 0.0, %v2481
    %2483 = vdwg.mxu0
    %2485 = vrot.lane.b32.xlu0 %v2375, 32
    %v2486 = vpop.permute.xlu0 %2485
    %v2487 = vsel %vm214, %v2486, 0
    %2489 = vmatpush.msra.mxu0 0.0
    %2490 = vmatpush.msra.mxu0 0.0
    %2491 = vmatpush.msra.mxu0 0.0
    %2492 = vmatpush.msra.mxu0 0.0
    %2493 = vmatpush.msra.mxu0 0.0
    %2494 = vmatpush.msra.mxu0 0.0
    %2495 = vmatpush.msra.mxu0 0.0
    %2496 = vmatpush.msra.mxu0 0.0
    %2497 = vmatpush.msra.mxu0 0.0
    %2498 = vmatpush.msra.mxu0 0.0
    %2499 = vmatpush.msra.mxu0 0.0
    %2500 = vmatpush.msra.mxu0 0.0
    %2501 = vmatpush.msra.mxu0 %v124
    %2502 = vmatpush.msra.mxu0 %v123
    %2503 = vmatpush.msra.mxu0 %v122
    %2504 = vmatpush.msra.mxu0 %v121
    %2505 = vmatmul.f32.gmra.mxu0 %v2487
    %v2506 = vpop.f32.mrf.mxu0
    %v2507 = vadd.f32 %v2482, %v2506
    %2508 = vdwg.mxu0
    %v2509 = vadd.f32 %v2507, %v693
    %v2510 = vxor.u32 %v2509, 2147483648
    %v2511 = vmul.f32 %v2510, 1.442695
    %v2512 = vpow.pop %v2511
    %v2513 = vadd.f32 %v2512, 1.0
    %v2514 = vrcp.pop %v2513
    %v2515 = vmul.f32 %v2513, %v2514
    %v2516 = vsub.f32 1.0, %v2515
    %v2517 = vmul.f32 %v2514, %v2516
    %v2518 = vadd.f32 %v2514, %v2517
    %vm2519 = vweird.f32 %v2513
    %vm2520 = vweird.f32 %v2514
    %vm2521 = vmor %vm2519, %vm2520
    %v2522 = vsel %vm2521, %v2514, %v2518
    %v2523 = vand.u32 2147483647, %v2513
    %vm2524 = vcmp.eq.f32.partialorder %v2523, 8.507059e+37
    %v2525 = vand.u32 %v2513, 2147483648
    %v2526 = vor.u32 1.1754944e-38, %v2525
    %v2527 = vsel %vm2524, %v2526, %v2522
    %v2528 = vmul.f32 1.0, %v2527
    %v2529 = vtanh.pop %v2509
    %v2530 = vmul.f32 %v2528, %v2286
    %2532 = vrot.lane.b32.xlu0 %v2529, 64
    %v2533 = vpop.permute.xlu0 %2532
    %v2535 = vmul.f32 %v2528, %v2533
    %2537 = vrot.lane.b32.xlu0 %v2535, 32
    %v2538 = vpop.permute.xlu0 %2537
    %v2540 = vadd.f32 %v2530, %v2538
    %v2541 = vtanh.pop %v2540
    %2543 = vrot.lane.b32.xlu0 %v2541, 64
    %v2544 = vpop.permute.xlu0 %2543
    %v2546 = vmul.f32 %v2528, %v2544
    %2547 = vmatpush.msra.mxu0 0.0
    %2548 = vmatpush.msra.mxu0 0.0
    %2549 = vmatpush.msra.mxu0 0.0
    %2550 = vmatpush.msra.mxu0 0.0
    %2551 = vmatpush.msra.mxu0 0.0
    %2552 = vmatpush.msra.mxu0 0.0
    %2553 = vmatpush.msra.mxu0 0.0
    %2554 = vmatpush.msra.mxu0 0.0
    %2555 = vmatpush.msra.mxu0 0.0
    %2556 = vmatpush.msra.mxu0 0.0
    %2557 = vmatpush.msra.mxu0 0.0
    %2558 = vmatpush.msra.mxu0 0.0
    %2559 = vmatpush.msra.mxu0 %v105
    %2560 = vmatpush.msra.mxu0 %v104
    %2561 = vmatpush.msra.mxu0 %v103
    %2562 = vmatpush.msra.mxu0 %v102
    %2563 = vmatmul.f32.gmra.mxu0 %v2487
    %v2564 = vpop.f32.mrf.mxu0
    %v2565 = vadd.f32 0.0, %v2564
    %2566 = vdwg.mxu0
    %2568 = vrot.lane.b32.xlu0 %v2458, 32
    %v2569 = vpop.permute.xlu0 %2568
    %v2570 = vsel %vm214, %v2569, 0
    %2572 = vmatpush.msra.mxu0 0.0
    %2573 = vmatpush.msra.mxu0 0.0
    %2574 = vmatpush.msra.mxu0 0.0
    %2575 = vmatpush.msra.mxu0 0.0
    %2576 = vmatpush.msra.mxu0 0.0
    %2577 = vmatpush.msra.mxu0 0.0
    %2578 = vmatpush.msra.mxu0 0.0
    %2579 = vmatpush.msra.mxu0 0.0
    %2580 = vmatpush.msra.mxu0 0.0
    %2581 = vmatpush.msra.mxu0 0.0
    %2582 = vmatpush.msra.mxu0 0.0
    %2583 = vmatpush.msra.mxu0 0.0
    %2584 = vmatpush.msra.mxu0 %v119
    %2585 = vmatpush.msra.mxu0 %v118
    %2586 = vmatpush.msra.mxu0 %v117
    %2587 = vmatpush.msra.mxu0 %v116
    %2588 = vmatmul.f32.gmra.mxu0 %v2570
    %v2589 = vpop.f32.mrf.mxu0
    %v2590 = vadd.f32 %v2565, %v2589
    %2591 = vdwg.mxu0
    %v2592 = vadd.f32 %v2590, %v466
    %v2593 = vxor.u32 %v2592, 2147483648
    %v2594 = vmul.f32 %v2593, 1.442695
    %v2595 = vpow.pop %v2594
    %v2596 = vadd.f32 %v2595, 1.0
    %v2597 = vrcp.pop %v2596
    %v2598 = vmul.f32 %v2596, %v2597
    %v2599 = vsub.f32 1.0, %v2598
    %v2600 = vmul.f32 %v2597, %v2599
    %v2601 = vadd.f32 %v2597, %v2600
    %vm2602 = vweird.f32 %v2596
    %vm2603 = vweird.f32 %v2597
    %vm2604 = vmor %vm2602, %vm2603
    %v2605 = vsel %vm2604, %v2597, %v2601
    %v2606 = vand.u32 2147483647, %v2596
    %vm2607 = vcmp.eq.f32.partialorder %v2606, 8.507059e+37
    %v2608 = vand.u32 %v2596, 2147483648
    %v2609 = vor.u32 1.1754944e-38, %v2608
    %v2610 = vsel %vm2607, %v2609, %v2605
    %v2611 = vmul.f32 1.0, %v2610
    %v2612 = vtanh.pop %v2592
    %v2613 = vmul.f32 %v2611, %v2369
    %2615 = vrot.lane.b32.xlu0 %v2612, 64
    %v2616 = vpop.permute.xlu0 %2615
    %v2618 = vmul.f32 %v2611, %v2616
    %2620 = vrot.lane.b32.xlu0 %v2618, 32
    %v2621 = vpop.permute.xlu0 %2620
    %v2623 = vadd.f32 %v2613, %v2621
    %v2624 = vtanh.pop %v2623
    %2626 = vrot.lane.b32.xlu0 %v2624, 64
    %v2627 = vpop.permute.xlu0 %2626
    %v2629 = vmul.f32 %v2611, %v2627
    %2631 = vrot.lane.b32.xlu0 %v2546, 32
    %v2632 = vpop.permute.xlu0 %2631
    %v2633 = vsel %vm214, %v2632, 0
    %2635 = vmatpush.msra.mxu0 0.0
    %2636 = vmatpush.msra.mxu0 0.0
    %2637 = vmatpush.msra.mxu0 0.0
    %2638 = vmatpush.msra.mxu0 0.0
    %2639 = vmatpush.msra.mxu0 0.0
    %2640 = vmatpush.msra.mxu0 0.0
    %2641 = vmatpush.msra.mxu0 0.0
    %2642 = vmatpush.msra.mxu0 0.0
    %2643 = vmatpush.msra.mxu0 0.0
    %2644 = vmatpush.msra.mxu0 0.0
    %2645 = vmatpush.msra.mxu0 0.0
    %2646 = vmatpush.msra.mxu0 0.0
    %2647 = vmatpush.msra.mxu0 %v110
    %2648 = vmatpush.msra.mxu0 %v109
    %2649 = vmatpush.msra.mxu0 %v108
    %2650 = vmatpush.msra.mxu0 %v107
    %2651 = vmatmul.f32.gmra.mxu0 %v2633
    %v2652 = vpop.f32.mrf.mxu0
    %v2653 = vadd.f32 0.0, %v2652
    %2654 = vdwg.mxu0
    %2656 = vrot.lane.b32.xlu0 %v2629, 32
    %v2657 = vpop.permute.xlu0 %2656
    %v2658 = vsel %vm214, %v2657, 0
    %2660 = vmatpush.msra.mxu0 0.0
    %2661 = vmatpush.msra.mxu0 0.0
    %2662 = vmatpush.msra.mxu0 0.0
    %2663 = vmatpush.msra.mxu0 0.0
    %2664 = vmatpush.msra.mxu0 0.0
    %2665 = vmatpush.msra.mxu0 0.0
    %2666 = vmatpush.msra.mxu0 0.0
    %2667 = vmatpush.msra.mxu0 0.0
    %2668 = vmatpush.msra.mxu0 0.0
    %2669 = vmatpush.msra.mxu0 0.0
    %2670 = vmatpush.msra.mxu0 0.0
    %2671 = vmatpush.msra.mxu0 0.0
    %2672 = vmatpush.msra.mxu0 %v124
    %2673 = vmatpush.msra.mxu0 %v123
    %2674 = vmatpush.msra.mxu0 %v122
    %2675 = vmatpush.msra.mxu0 %v121
    %2676 = vmatmul.f32.gmra.mxu0 %v2658
    %v2677 = vpop.f32.mrf.mxu0
    %v2678 = vadd.f32 %v2653, %v2677
    %2679 = vdwg.mxu0
    %v2680 = vadd.f32 %v2678, %v693
    %v2681 = vxor.u32 %v2680, 2147483648
    %v2682 = vmul.f32 %v2681, 1.442695
    %v2683 = vpow.pop %v2682
    %v2684 = vadd.f32 %v2683, 1.0
    %v2685 = vrcp.pop %v2684
    %v2686 = vmul.f32 %v2684, %v2685
    %v2687 = vsub.f32 1.0, %v2686
    %v2688 = vmul.f32 %v2685, %v2687
    %v2689 = vadd.f32 %v2685, %v2688
    %vm2690 = vweird.f32 %v2684
    %vm2691 = vweird.f32 %v2685
    %vm2692 = vmor %vm2690, %vm2691
    %v2693 = vsel %vm2692, %v2685, %v2689
    %v2694 = vand.u32 2147483647, %v2684
    %vm2695 = vcmp.eq.f32.partialorder %v2694, 8.507059e+37
    %v2696 = vand.u32 %v2684, 2147483648
    %v2697 = vor.u32 1.1754944e-38, %v2696
    %v2698 = vsel %vm2695, %v2697, %v2693
    %v2699 = vmul.f32 1.0, %v2698
    %v2700 = vtanh.pop %v2680
    %v2701 = vmul.f32 %v2699, %v2540
    %2703 = vrot.lane.b32.xlu0 %v2700, 64
    %v2704 = vpop.permute.xlu0 %2703
    %v2706 = vmul.f32 %v2699, %v2704
    %2708 = vrot.lane.b32.xlu0 %v2706, 32
    %v2709 = vpop.permute.xlu0 %2708
    %v2711 = vadd.f32 %v2701, %v2709
    %v2712 = vtanh.pop %v2711
    %2714 = vrot.lane.b32.xlu0 %v2712, 64
    %v2715 = vpop.permute.xlu0 %2714
    %v2717 = vmul.f32 %v2699, %v2715
    %2719 = vrot.lane.b32.xlu0 %v1044, 64
    %v2720 = vpop.permute.xlu0 %2719
    %2722 = vrot.lane.b32.xlu0 %v1356, 96
    %v2723 = vpop.permute.xlu0 %2722
    %2726 = vrot.lane.b32.xlu0 %v2292, 64
    %v2727 = vpop.permute.xlu0 %2726
    %2729 = vrot.lane.b32.xlu0 %v2546, 96
    %v2730 = vpop.permute.xlu0 %2729
    %v2732 = vsel %vm214, %v959, %v2720
    %vm2733 = vcmask 523264
    %v2734 = vsel %vm2733, %v2732, %v2723
    %vm2735 = vcmask 785408
    %v2736 = vsel %vm2735, %v2734, %v1668
    %v2737 = vsel %vm214, %v2207, %v2727
    %v2738 = vsel %vm2733, %v2737, %v2730
    %v2739 = vsel %vm2735, %v2738, %v2717
    %v2740 = vld [vmem:[#allocation2] sm:$0xff]
    %v2741 = vld [vmem:[#allocation2 + $0x8] sm:$0xff]
    %v2742 = vld [vmem:[#allocation2 + $0x10] sm:$0xff]
    %v2743 = vld [vmem:[#allocation2 + $0x18] sm:$0xff]
    %v2744 = vld [vmem:[#allocation2 + $0x20] sm:$0xff]
    %v2745 = vld [vmem:[#allocation2 + $0x28] sm:$0xff]
    %v2746 = vld [vmem:[#allocation2 + $0x30] sm:$0xff]
    %v2747 = vld [vmem:[#allocation2 + $0x38] sm:$0xff]
    %v2748 = vld [vmem:[#allocation2 + $0x40] sm:$0xff]
    %v2749 = vld [vmem:[#allocation2 + $0x48] sm:$0xff]
    %v2750 = vld [vmem:[#allocation2 + $0x50] sm:$0xff]
    %v2751 = vld [vmem:[#allocation2 + $0x58] sm:$0xff]
    %v2752 = vld [vmem:[#allocation2 + $0x60] sm:$0xff]
    %v2753 = vld [vmem:[#allocation2 + $0x68] sm:$0xff]
    %v2754 = vld [vmem:[#allocation2 + $0x70] sm:$0xff]
    %v2755 = vld [vmem:[#allocation2 + $0x78] sm:$0xff]
    %v2756 = vld [vmem:[#allocation2 + $0x80] sm:$0xff]
    %v2757 = vld [vmem:[#allocation2 + $0x88] sm:$0xff]
    %v2758 = vld [vmem:[#allocation2 + $0x90] sm:$0xff]
    %v2759 = vld [vmem:[#allocation2 + $0x98] sm:$0xff]
    %v2760 = vld [vmem:[#allocation2 + $0xa0] sm:$0xff]
    %v2761 = vld [vmem:[#allocation2 + $0xa8] sm:$0xff]
    %v2762 = vld [vmem:[#allocation2 + $0xb0] sm:$0xff]
    %v2763 = vld [vmem:[#allocation2 + $0xb8] sm:$0xff]
    %v2764 = vld [vmem:[#allocation2 + $0xc0] sm:$0xff]
    %v2765 = vld [vmem:[#allocation2 + $0xc8] sm:$0xff]
    %v2766 = vld [vmem:[#allocation2 + $0xd0] sm:$0xff]
    %v2767 = vld [vmem:[#allocation2 + $0xd8] sm:$0xff]
    %v2768 = vld [vmem:[#allocation2 + $0xe0] sm:$0xff]
    %v2769 = vld [vmem:[#allocation2 + $0xe8] sm:$0xff]
    %v2770 = vld [vmem:[#allocation2 + $0xf0] sm:$0xff]
    %v2771 = vld [vmem:[#allocation2 + $0xf8] sm:$0xff]
    %v2772 = vld [vmem:[#allocation2 + $0x100] sm:$0xff]
    %v2773 = vld [vmem:[#allocation2 + $0x108] sm:$0xff]
    %v2774 = vld [vmem:[#allocation2 + $0x110] sm:$0xff]
    %v2775 = vld [vmem:[#allocation2 + $0x118] sm:$0xff]
    %v2776 = vld [vmem:[#allocation2 + $0x120] sm:$0xff]
    %v2777 = vld [vmem:[#allocation2 + $0x128] sm:$0xff]
    %v2778 = vld [vmem:[#allocation2 + $0x130] sm:$0xff]
    %v2779 = vld [vmem:[#allocation2 + $0x138] sm:$0xff]
    %v2780 = vld [vmem:[#allocation2 + $0x140] sm:$0xff]
    %v2781 = vld [vmem:[#allocation2 + $0x148] sm:$0xff]
    %v2782 = vld [vmem:[#allocation2 + $0x150] sm:$0xff]
    %v2783 = vld [vmem:[#allocation2 + $0x158] sm:$0xff]
    %v2784 = vld [vmem:[#allocation2 + $0x160] sm:$0xff]
    %v2785 = vld [vmem:[#allocation2 + $0x168] sm:$0xff]
    %v2786 = vld [vmem:[#allocation2 + $0x170] sm:$0xff]
    %v2787 = vld [vmem:[#allocation2 + $0x178] sm:$0xff]
    %v2788 = vld [vmem:[#allocation2 + $0x180] sm:$0xff]
    %v2789 = vld [vmem:[#allocation2 + $0x188] sm:$0xff]
    %v2790 = vld [vmem:[#allocation2 + $0x190] sm:$0xff]
    %v2791 = vld [vmem:[#allocation2 + $0x198] sm:$0xff]
    %v2792 = vld [vmem:[#allocation2 + $0x1a0] sm:$0xff]
    %v2793 = vld [vmem:[#allocation2 + $0x1a8] sm:$0xff]
    %v2794 = vld [vmem:[#allocation2 + $0x1b0] sm:$0xff]
    %v2795 = vld [vmem:[#allocation2 + $0x1b8] sm:$0xff]
    %v2796 = vld [vmem:[#allocation2 + $0x1c0] sm:$0xff]
    %v2797 = vld [vmem:[#allocation2 + $0x1c8] sm:$0xff]
    %v2798 = vld [vmem:[#allocation2 + $0x1d0] sm:$0xff]
    %v2799 = vld [vmem:[#allocation2 + $0x1d8] sm:$0xff]
    %v2800 = vld [vmem:[#allocation2 + $0x1e0] sm:$0xff]
    %v2801 = vld [vmem:[#allocation2 + $0x1e8] sm:$0xff]
    %v2802 = vld [vmem:[#allocation2 + $0x1f0] sm:$0xff]
    %v2803 = vld [vmem:[#allocation2 + $0x1f8] sm:$0xff]
    %v2804 = vld [vmem:[#allocation2 + $0x200] sm:$0xff]
    %v2805 = vld [vmem:[#allocation2 + $0x208] sm:$0xff]
    %v2806 = vld [vmem:[#allocation2 + $0x210] sm:$0xff]
    %v2807 = vld [vmem:[#allocation2 + $0x218] sm:$0xff]
    %v2808 = vld [vmem:[#allocation2 + $0x220] sm:$0xff]
    %v2809 = vld [vmem:[#allocation2 + $0x228] sm:$0xff]
    %v2810 = vld [vmem:[#allocation2 + $0x230] sm:$0xff]
    %v2811 = vld [vmem:[#allocation2 + $0x238] sm:$0xff]
    %v2812 = vld [vmem:[#allocation2 + $0x240] sm:$0xff]
    %v2813 = vld [vmem:[#allocation2 + $0x248] sm:$0xff]
    %v2814 = vld [vmem:[#allocation2 + $0x250] sm:$0xff]
    %v2815 = vld [vmem:[#allocation2 + $0x258] sm:$0xff]
    %v2816 = vld [vmem:[#allocation2 + $0x260] sm:$0xff]
    %v2817 = vld [vmem:[#allocation2 + $0x268] sm:$0xff]
    %v2818 = vld [vmem:[#allocation2 + $0x270] sm:$0xff]
    %v2819 = vld [vmem:[#allocation2 + $0x278] sm:$0xff]
    %v2820 = vld [vmem:[#allocation2 + $0x280] sm:$0xff]
    %v2821 = vld [vmem:[#allocation2 + $0x288] sm:$0xff]
    %v2822 = vld [vmem:[#allocation2 + $0x290] sm:$0xff]
    %v2823 = vld [vmem:[#allocation2 + $0x298] sm:$0xff]
    %v2824 = vld [vmem:[#allocation2 + $0x2a0] sm:$0xff]
    %v2825 = vld [vmem:[#allocation2 + $0x2a8] sm:$0xff]
    %v2826 = vld [vmem:[#allocation2 + $0x2b0] sm:$0xff]
    %v2827 = vld [vmem:[#allocation2 + $0x2b8] sm:$0xff]
    %v2828 = vld [vmem:[#allocation2 + $0x2c0] sm:$0xff]
    %v2829 = vld [vmem:[#allocation2 + $0x2c8] sm:$0xff]
    %v2830 = vld [vmem:[#allocation2 + $0x2d0] sm:$0xff]
    %v2831 = vld [vmem:[#allocation2 + $0x2d8] sm:$0xff]
    %v2832 = vld [vmem:[#allocation2 + $0x2e0] sm:$0xff]
    %v2833 = vld [vmem:[#allocation2 + $0x2e8] sm:$0xff]
    %v2834 = vld [vmem:[#allocation2 + $0x2f0] sm:$0xff]
    %v2835 = vld [vmem:[#allocation2 + $0x2f8] sm:$0xff]
    %v2836 = vld [vmem:[#allocation2 + $0x300] sm:$0xff]
    %v2837 = vld [vmem:[#allocation2 + $0x308] sm:$0xff]
    %v2838 = vld [vmem:[#allocation2 + $0x310] sm:$0xff]
    %v2839 = vld [vmem:[#allocation2 + $0x318] sm:$0xff]
    %v2840 = vld [vmem:[#allocation2 + $0x320] sm:$0xff]
    %v2841 = vld [vmem:[#allocation2 + $0x328] sm:$0xff]
    %v2842 = vld [vmem:[#allocation2 + $0x330] sm:$0xff]
    %v2843 = vld [vmem:[#allocation2 + $0x338] sm:$0xff]
    %v2844 = vld [vmem:[#allocation2 + $0x340] sm:$0xff]
    %v2845 = vld [vmem:[#allocation2 + $0x348] sm:$0xff]
    %v2846 = vld [vmem:[#allocation2 + $0x350] sm:$0xff]
    %v2847 = vld [vmem:[#allocation2 + $0x358] sm:$0xff]
    %v2848 = vld [vmem:[#allocation2 + $0x360] sm:$0xff]
    %v2849 = vld [vmem:[#allocation2 + $0x368] sm:$0xff]
    %v2850 = vld [vmem:[#allocation2 + $0x370] sm:$0xff]
    %v2851 = vld [vmem:[#allocation2 + $0x378] sm:$0xff]
    %v2852 = vld [vmem:[#allocation2 + $0x380] sm:$0xff]
    %v2853 = vld [vmem:[#allocation2 + $0x388] sm:$0xff]
    %v2854 = vld [vmem:[#allocation2 + $0x390] sm:$0xff]
    %v2855 = vld [vmem:[#allocation2 + $0x398] sm:$0xff]
    %v2856 = vld [vmem:[#allocation2 + $0x3a0] sm:$0xff]
    %v2857 = vld [vmem:[#allocation2 + $0x3a8] sm:$0xff]
    %v2858 = vld [vmem:[#allocation2 + $0x3b0] sm:$0xff]
    %v2859 = vld [vmem:[#allocation2 + $0x3b8] sm:$0xff]
    %v2860 = vld [vmem:[#allocation2 + $0x3c0] sm:$0xff]
    %v2861 = vld [vmem:[#allocation2 + $0x3c8] sm:$0xff]
    %v2862 = vld [vmem:[#allocation2 + $0x3d0] sm:$0xff]
    %v2863 = vld [vmem:[#allocation2 + $0x3d8] sm:$0xff]
    %v2864 = vld [vmem:[#allocation2 + $0x3e0] sm:$0xff]
    %v2865 = vld [vmem:[#allocation2 + $0x3e8] sm:$0xff]
    %v2866 = vld [vmem:[#allocation2 + $0x3f0] sm:$0xff]
    %v2867 = vld [vmem:[#allocation2 + $0x3f8] sm:$0xff]
    %v2868 = vld [vmem:[%s6] sm:$0xf]
    %v2870 = vperm.slane %v2868, 0
    %v2871 = vperm.slane %v2868, 1
    %v2872 = vperm.slane %v2868, 2
    %v2873 = vperm.slane %v2868, 3
    %2878 = vmatpush.msra.mxu0 %v2800
    %2879 = vmatpush.msra.mxu0 %v2796
    %2880 = vmatpush.msra.mxu0 %v2792
    %2881 = vmatpush.msra.mxu0 %v2788
    %2882 = vmatpush.msra.mxu0 %v2784
    %2883 = vmatpush.msra.mxu0 %v2780
    %2884 = vmatpush.msra.mxu0 %v2776
    %2885 = vmatpush.msra.mxu0 %v2772
    %2886 = vmatpush.msra.mxu0 %v2768
    %2887 = vmatpush.msra.mxu0 %v2764
    %2888 = vmatpush.msra.mxu0 %v2760
    %2889 = vmatpush.msra.mxu0 %v2756
    %2890 = vmatpush.msra.mxu0 %v2752
    %2891 = vmatpush.msra.mxu0 %v2748
    %2892 = vmatpush.msra.mxu0 %v2744
    %2893 = vmatpush.msra.mxu0 %v2740
    %2894 = vmatmul.f32.gmra.mxu0 %v2736
    %v2895 = vpop.f32.mrf.mxu0
    %v2896 = vadd.f32 %v2870, %v2895
    %2897 = vdwg.mxu0
    %2898 = vmatpush.msra.mxu0 %v2864
    %2899 = vmatpush.msra.mxu0 %v2860
    %2900 = vmatpush.msra.mxu0 %v2856
    %2901 = vmatpush.msra.mxu0 %v2852
    %2902 = vmatpush.msra.mxu0 %v2848
    %2903 = vmatpush.msra.mxu0 %v2844
    %2904 = vmatpush.msra.mxu0 %v2840
    %2905 = vmatpush.msra.mxu0 %v2836
    %2906 = vmatpush.msra.mxu0 %v2832
    %2907 = vmatpush.msra.mxu0 %v2828
    %2908 = vmatpush.msra.mxu0 %v2824
    %2909 = vmatpush.msra.mxu0 %v2820
    %2910 = vmatpush.msra.mxu0 %v2816
    %2911 = vmatpush.msra.mxu0 %v2812
    %2912 = vmatpush.msra.mxu0 %v2808
    %2913 = vmatpush.msra.mxu0 %v2804
    %2914 = vmatmul.f32.gmra.mxu0 %v2739
    %v2915 = vpop.f32.mrf.mxu0
    %v2916 = vadd.f32 %v2896, %v2915
    %2917 = vdwg.mxu0
    %2918 = vmatpush.msra.mxu0 %v2801
    %2919 = vmatpush.msra.mxu0 %v2797
    %2920 = vmatpush.msra.mxu0 %v2793
    %2921 = vmatpush.msra.mxu0 %v2789
    %2922 = vmatpush.msra.mxu0 %v2785
    %2923 = vmatpush.msra.mxu0 %v2781
    %2924 = vmatpush.msra.mxu0 %v2777
    %2925 = vmatpush.msra.mxu0 %v2773
    %2926 = vmatpush.msra.mxu0 %v2769
    %2927 = vmatpush.msra.mxu0 %v2765
    %2928 = vmatpush.msra.mxu0 %v2761
    %2929 = vmatpush.msra.mxu0 %v2757
    %2930 = vmatpush.msra.mxu0 %v2753
    %2931 = vmatpush.msra.mxu0 %v2749
    %2932 = vmatpush.msra.mxu0 %v2745
    %2933 = vmatpush.msra.mxu0 %v2741
    %2934 = vmatmul.f32.gmra.mxu0 %v2736
    %v2935 = vpop.f32.mrf.mxu0
    %v2936 = vadd.f32 %v2871, %v2935
    %2937 = vdwg.mxu0
    %2938 = vmatpush.msra.mxu0 %v2865
    %2939 = vmatpush.msra.mxu0 %v2861
    %2940 = vmatpush.msra.mxu0 %v2857
    %2941 = vmatpush.msra.mxu0 %v2853
    %2942 = vmatpush.msra.mxu0 %v2849
    %2943 = vmatpush.msra.mxu0 %v2845
    %2944 = vmatpush.msra.mxu0 %v2841
    %2945 = vmatpush.msra.mxu0 %v2837
    %2946 = vmatpush.msra.mxu0 %v2833
    %2947 = vmatpush.msra.mxu0 %v2829
    %2948 = vmatpush.msra.mxu0 %v2825
    %2949 = vmatpush.msra.mxu0 %v2821
    %2950 = vmatpush.msra.mxu0 %v2817
    %2951 = vmatpush.msra.mxu0 %v2813
    %2952 = vmatpush.msra.mxu0 %v2809
    %2953 = vmatpush.msra.mxu0 %v2805
    %2954 = vmatmul.f32.gmra.mxu0 %v2739
    %v2955 = vpop.f32.mrf.mxu0
    %v2956 = vadd.f32 %v2936, %v2955
    %2957 = vdwg.mxu0
    %2958 = vmatpush.msra.mxu0 %v2802
    %2959 = vmatpush.msra.mxu0 %v2798
    %2960 = vmatpush.msra.mxu0 %v2794
    %2961 = vmatpush.msra.mxu0 %v2790
    %2962 = vmatpush.msra.mxu0 %v2786
    %2963 = vmatpush.msra.mxu0 %v2782
    %2964 = vmatpush.msra.mxu0 %v2778
    %2965 = vmatpush.msra.mxu0 %v2774
    %2966 = vmatpush.msra.mxu0 %v2770
    %2967 = vmatpush.msra.mxu0 %v2766
    %2968 = vmatpush.msra.mxu0 %v2762
    %2969 = vmatpush.msra.mxu0 %v2758
    %2970 = vmatpush.msra.mxu0 %v2754
    %2971 = vmatpush.msra.mxu0 %v2750
    %2972 = vmatpush.msra.mxu0 %v2746
    %2973 = vmatpush.msra.mxu0 %v2742
    %2974 = vmatmul.f32.gmra.mxu0 %v2736
    %v2975 = vpop.f32.mrf.mxu0
    %v2976 = vadd.f32 %v2872, %v2975
    %2977 = vdwg.mxu0
    %2978 = vmatpush.msra.mxu0 %v2866
    %2979 = vmatpush.msra.mxu0 %v2862
    %2980 = vmatpush.msra.mxu0 %v2858
    %2981 = vmatpush.msra.mxu0 %v2854
    %2982 = vmatpush.msra.mxu0 %v2850
    %2983 = vmatpush.msra.mxu0 %v2846
    %2984 = vmatpush.msra.mxu0 %v2842
    %2985 = vmatpush.msra.mxu0 %v2838
    %2986 = vmatpush.msra.mxu0 %v2834
    %2987 = vmatpush.msra.mxu0 %v2830
    %2988 = vmatpush.msra.mxu0 %v2826
    %2989 = vmatpush.msra.mxu0 %v2822
    %2990 = vmatpush.msra.mxu0 %v2818
    %2991 = vmatpush.msra.mxu0 %v2814
    %2992 = vmatpush.msra.mxu0 %v2810
    %2993 = vmatpush.msra.mxu0 %v2806
    %2994 = vmatmul.f32.gmra.mxu0 %v2739
    %v2995 = vpop.f32.mrf.mxu0
    %v2996 = vadd.f32 %v2976, %v2995
    %2997 = vdwg.mxu0
    %2998 = vmatpush.msra.mxu0 %v2803
    %2999 = vmatpush.msra.mxu0 %v2799
    %3000 = vmatpush.msra.mxu0 %v2795
    %3001 = vmatpush.msra.mxu0 %v2791
    %3002 = vmatpush.msra.mxu0 %v2787
    %3003 = vmatpush.msra.mxu0 %v2783
    %3004 = vmatpush.msra.mxu0 %v2779
    %3005 = vmatpush.msra.mxu0 %v2775
    %3006 = vmatpush.msra.mxu0 %v2771
    %3007 = vmatpush.msra.mxu0 %v2767
    %3008 = vmatpush.msra.mxu0 %v2763
    %3009 = vmatpush.msra.mxu0 %v2759
    %3010 = vmatpush.msra.mxu0 %v2755
    %3011 = vmatpush.msra.mxu0 %v2751
    %3012 = vmatpush.msra.mxu0 %v2747
    %3013 = vmatpush.msra.mxu0 %v2743
    %3014 = vmatmul.f32.gmra.mxu0 %v2736
    %v3015 = vpop.f32.mrf.mxu0
    %v3016 = vadd.f32 %v2873, %v3015
    %3017 = vdwg.mxu0
    %3018 = vmatpush.msra.mxu0 %v2867
    %3019 = vmatpush.msra.mxu0 %v2863
    %3020 = vmatpush.msra.mxu0 %v2859
    %3021 = vmatpush.msra.mxu0 %v2855
    %3022 = vmatpush.msra.mxu0 %v2851
    %3023 = vmatpush.msra.mxu0 %v2847
    %3024 = vmatpush.msra.mxu0 %v2843
    %3025 = vmatpush.msra.mxu0 %v2839
    %3026 = vmatpush.msra.mxu0 %v2835
    %3027 = vmatpush.msra.mxu0 %v2831
    %3028 = vmatpush.msra.mxu0 %v2827
    %3029 = vmatpush.msra.mxu0 %v2823
    %3030 = vmatpush.msra.mxu0 %v2819
    %3031 = vmatpush.msra.mxu0 %v2815
    %3032 = vmatpush.msra.mxu0 %v2811
    %3033 = vmatpush.msra.mxu0 %v2807
    %3034 = vmatmul.f32.gmra.mxu0 %v2739
    %v3035 = vpop.f32.mrf.mxu0
    %v3036 = vadd.f32 %v3016, %v3035
    %3037 = vdwg.mxu0
    %v3038 = vmax.f32 %v2916, 0.0
    %v3039 = vmax.f32 %v2956, 0.0
    %v3040 = vmax.f32 %v2996, 0.0
    %v3041 = vmax.f32 %v3036, 0.0
    %v3042 = vld [vmem:[#allocation5] sm:$0xff]
    %v3043 = vld [vmem:[#allocation5 + $0x8] sm:$0xff]
    %v3044 = vld [vmem:[#allocation5 + $0x10] sm:$0xff]
    %v3045 = vld [vmem:[#allocation5 + $0x18] sm:$0xff]
    %v3046 = vld [vmem:[#allocation5 + $0x20] sm:$0xff]
    %v3047 = vld [vmem:[#allocation5 + $0x28] sm:$0xff]
    %v3048 = vld [vmem:[#allocation5 + $0x30] sm:$0xff]
    %v3049 = vld [vmem:[#allocation5 + $0x38] sm:$0xff]
    %v3050 = vld [vmem:[#allocation5 + $0x40] sm:$0xff]
    %v3051 = vld [vmem:[#allocation5 + $0x48] sm:$0xff]
    %v3052 = vld [vmem:[#allocation5 + $0x50] sm:$0xff]
    %v3053 = vld [vmem:[#allocation5 + $0x58] sm:$0xff]
    %v3054 = vld [vmem:[#allocation5 + $0x60] sm:$0xff]
    %v3055 = vld [vmem:[#allocation5 + $0x68] sm:$0xff]
    %v3056 = vld [vmem:[#allocation5 + $0x70] sm:$0xff]
    %v3057 = vld [vmem:[#allocation5 + $0x78] sm:$0xff]
    %v3058 = vld [vmem:[#allocation5 + $0x80] sm:$0xff]
    %v3059 = vld [vmem:[#allocation5 + $0x88] sm:$0xff]
    %v3060 = vld [vmem:[#allocation5 + $0x90] sm:$0xff]
    %v3061 = vld [vmem:[#allocation5 + $0x98] sm:$0xff]
    %v3062 = vld [vmem:[#allocation5 + $0xa0] sm:$0xff]
    %v3063 = vld [vmem:[#allocation5 + $0xa8] sm:$0xff]
    %v3064 = vld [vmem:[#allocation5 + $0xb0] sm:$0xff]
    %v3065 = vld [vmem:[#allocation5 + $0xb8] sm:$0xff]
    %v3066 = vld [vmem:[#allocation5 + $0xc0] sm:$0xff]
    %v3067 = vld [vmem:[#allocation5 + $0xc8] sm:$0xff]
    %v3068 = vld [vmem:[#allocation5 + $0xd0] sm:$0xff]
    %v3069 = vld [vmem:[#allocation5 + $0xd8] sm:$0xff]
    %v3070 = vld [vmem:[#allocation5 + $0xe0] sm:$0xff]
    %v3071 = vld [vmem:[#allocation5 + $0xe8] sm:$0xff]
    %v3072 = vld [vmem:[#allocation5 + $0xf0] sm:$0xff]
    %v3073 = vld [vmem:[#allocation5 + $0xf8] sm:$0xff]
    %v3074 = vld [vmem:[#allocation5 + $0x100] sm:$0xff]
    %v3075 = vld [vmem:[#allocation5 + $0x108] sm:$0xff]
    %v3076 = vld [vmem:[#allocation5 + $0x110] sm:$0xff]
    %v3077 = vld [vmem:[#allocation5 + $0x118] sm:$0xff]
    %v3078 = vld [vmem:[#allocation5 + $0x120] sm:$0xff]
    %v3079 = vld [vmem:[#allocation5 + $0x128] sm:$0xff]
    %v3080 = vld [vmem:[#allocation5 + $0x130] sm:$0xff]
    %v3081 = vld [vmem:[#allocation5 + $0x138] sm:$0xff]
    %v3082 = vld [vmem:[#allocation5 + $0x140] sm:$0xff]
    %v3083 = vld [vmem:[#allocation5 + $0x148] sm:$0xff]
    %v3084 = vld [vmem:[#allocation5 + $0x150] sm:$0xff]
    %v3085 = vld [vmem:[#allocation5 + $0x158] sm:$0xff]
    %v3086 = vld [vmem:[#allocation5 + $0x160] sm:$0xff]
    %v3087 = vld [vmem:[#allocation5 + $0x168] sm:$0xff]
    %v3088 = vld [vmem:[#allocation5 + $0x170] sm:$0xff]
    %v3089 = vld [vmem:[#allocation5 + $0x178] sm:$0xff]
    %v3090 = vld [vmem:[#allocation5 + $0x180] sm:$0xff]
    %v3091 = vld [vmem:[#allocation5 + $0x188] sm:$0xff]
    %v3092 = vld [vmem:[#allocation5 + $0x190] sm:$0xff]
    %v3093 = vld [vmem:[#allocation5 + $0x198] sm:$0xff]
    %v3094 = vld [vmem:[#allocation5 + $0x1a0] sm:$0xff]
    %v3095 = vld [vmem:[#allocation5 + $0x1a8] sm:$0xff]
    %v3096 = vld [vmem:[#allocation5 + $0x1b0] sm:$0xff]
    %v3097 = vld [vmem:[#allocation5 + $0x1b8] sm:$0xff]
    %v3098 = vld [vmem:[#allocation5 + $0x1c0] sm:$0xff]
    %v3099 = vld [vmem:[#allocation5 + $0x1c8] sm:$0xff]
    %v3100 = vld [vmem:[#allocation5 + $0x1d0] sm:$0xff]
    %v3101 = vld [vmem:[#allocation5 + $0x1d8] sm:$0xff]
    %v3102 = vld [vmem:[#allocation5 + $0x1e0] sm:$0xff]
    %v3103 = vld [vmem:[#allocation5 + $0x1e8] sm:$0xff]
    %v3104 = vld [vmem:[#allocation5 + $0x1f0] sm:$0xff]
    %v3105 = vld [vmem:[#allocation5 + $0x1f8] sm:$0xff]
    %v3106 = vld [vmem:[#allocation5 + $0x200] sm:$0xff]
    %v3107 = vld [vmem:[#allocation5 + $0x208] sm:$0xff]
    %v3108 = vld [vmem:[#allocation5 + $0x210] sm:$0xff]
    %v3109 = vld [vmem:[#allocation5 + $0x218] sm:$0xff]
    %v3110 = vld [vmem:[#allocation5 + $0x220] sm:$0xff]
    %v3111 = vld [vmem:[#allocation5 + $0x228] sm:$0xff]
    %v3112 = vld [vmem:[#allocation5 + $0x230] sm:$0xff]
    %v3113 = vld [vmem:[#allocation5 + $0x238] sm:$0xff]
    %v3114 = vld [vmem:[#allocation5 + $0x240] sm:$0xff]
    %v3115 = vld [vmem:[#allocation5 + $0x248] sm:$0xff]
    %v3116 = vld [vmem:[#allocation5 + $0x250] sm:$0xff]
    %v3117 = vld [vmem:[#allocation5 + $0x258] sm:$0xff]
    %v3118 = vld [vmem:[#allocation5 + $0x260] sm:$0xff]
    %v3119 = vld [vmem:[#allocation5 + $0x268] sm:$0xff]
    %v3120 = vld [vmem:[#allocation5 + $0x270] sm:$0xff]
    %v3121 = vld [vmem:[#allocation5 + $0x278] sm:$0xff]
    %v3122 = vld [vmem:[#allocation5 + $0x280] sm:$0xff]
    %v3123 = vld [vmem:[#allocation5 + $0x288] sm:$0xff]
    %v3124 = vld [vmem:[#allocation5 + $0x290] sm:$0xff]
    %v3125 = vld [vmem:[#allocation5 + $0x298] sm:$0xff]
    %v3126 = vld [vmem:[#allocation5 + $0x2a0] sm:$0xff]
    %v3127 = vld [vmem:[#allocation5 + $0x2a8] sm:$0xff]
    %v3128 = vld [vmem:[#allocation5 + $0x2b0] sm:$0xff]
    %v3129 = vld [vmem:[#allocation5 + $0x2b8] sm:$0xff]
    %v3130 = vld [vmem:[#allocation5 + $0x2c0] sm:$0xff]
    %v3131 = vld [vmem:[#allocation5 + $0x2c8] sm:$0xff]
    %v3132 = vld [vmem:[#allocation5 + $0x2d0] sm:$0xff]
    %v3133 = vld [vmem:[#allocation5 + $0x2d8] sm:$0xff]
    %v3134 = vld [vmem:[#allocation5 + $0x2e0] sm:$0xff]
    %v3135 = vld [vmem:[#allocation5 + $0x2e8] sm:$0xff]
    %v3136 = vld [vmem:[#allocation5 + $0x2f0] sm:$0xff]
    %v3137 = vld [vmem:[#allocation5 + $0x2f8] sm:$0xff]
    %v3138 = vld [vmem:[#allocation5 + $0x300] sm:$0xff]
    %v3139 = vld [vmem:[#allocation5 + $0x308] sm:$0xff]
    %v3140 = vld [vmem:[#allocation5 + $0x310] sm:$0xff]
    %v3141 = vld [vmem:[#allocation5 + $0x318] sm:$0xff]
    %v3142 = vld [vmem:[#allocation5 + $0x320] sm:$0xff]
    %v3143 = vld [vmem:[#allocation5 + $0x328] sm:$0xff]
    %v3144 = vld [vmem:[#allocation5 + $0x330] sm:$0xff]
    %v3145 = vld [vmem:[#allocation5 + $0x338] sm:$0xff]
    %v3146 = vld [vmem:[#allocation5 + $0x340] sm:$0xff]
    %v3147 = vld [vmem:[#allocation5 + $0x348] sm:$0xff]
    %v3148 = vld [vmem:[#allocation5 + $0x350] sm:$0xff]
    %v3149 = vld [vmem:[#allocation5 + $0x358] sm:$0xff]
    %v3150 = vld [vmem:[#allocation5 + $0x360] sm:$0xff]
    %v3151 = vld [vmem:[#allocation5 + $0x368] sm:$0xff]
    %v3152 = vld [vmem:[#allocation5 + $0x370] sm:$0xff]
    %v3153 = vld [vmem:[#allocation5 + $0x378] sm:$0xff]
    %v3154 = vld [vmem:[#allocation5 + $0x380] sm:$0xff]
    %v3155 = vld [vmem:[#allocation5 + $0x388] sm:$0xff]
    %v3156 = vld [vmem:[#allocation5 + $0x390] sm:$0xff]
    %v3157 = vld [vmem:[#allocation5 + $0x398] sm:$0xff]
    %v3158 = vld [vmem:[#allocation5 + $0x3a0] sm:$0xff]
    %v3159 = vld [vmem:[#allocation5 + $0x3a8] sm:$0xff]
    %v3160 = vld [vmem:[#allocation5 + $0x3b0] sm:$0xff]
    %v3161 = vld [vmem:[#allocation5 + $0x3b8] sm:$0xff]
    %v3162 = vld [vmem:[#allocation5 + $0x3c0] sm:$0xff]
    %v3163 = vld [vmem:[#allocation5 + $0x3c8] sm:$0xff]
    %v3164 = vld [vmem:[#allocation5 + $0x3d0] sm:$0xff]
    %v3165 = vld [vmem:[#allocation5 + $0x3d8] sm:$0xff]
    %v3166 = vld [vmem:[#allocation5 + $0x3e0] sm:$0xff]
    %v3167 = vld [vmem:[#allocation5 + $0x3e8] sm:$0xff]
    %v3168 = vld [vmem:[#allocation5 + $0x3f0] sm:$0xff]
    %v3169 = vld [vmem:[#allocation5 + $0x3f8] sm:$0xff]
    %v3170 = vld [vmem:[#allocation5 + $0x400] sm:$0xff]
    %v3171 = vld [vmem:[#allocation5 + $0x408] sm:$0xff]
    %v3172 = vld [vmem:[#allocation5 + $0x410] sm:$0xff]
    %v3173 = vld [vmem:[#allocation5 + $0x418] sm:$0xff]
    %v3174 = vld [vmem:[#allocation5 + $0x420] sm:$0xff]
    %v3175 = vld [vmem:[#allocation5 + $0x428] sm:$0xff]
    %v3176 = vld [vmem:[#allocation5 + $0x430] sm:$0xff]
    %v3177 = vld [vmem:[#allocation5 + $0x438] sm:$0xff]
    %v3178 = vld [vmem:[#allocation5 + $0x440] sm:$0xff]
    %v3179 = vld [vmem:[#allocation5 + $0x448] sm:$0xff]
    %v3180 = vld [vmem:[#allocation5 + $0x450] sm:$0xff]
    %v3181 = vld [vmem:[#allocation5 + $0x458] sm:$0xff]
    %v3182 = vld [vmem:[#allocation5 + $0x460] sm:$0xff]
    %v3183 = vld [vmem:[#allocation5 + $0x468] sm:$0xff]
    %v3184 = vld [vmem:[#allocation5 + $0x470] sm:$0xff]
    %v3185 = vld [vmem:[#allocation5 + $0x478] sm:$0xff]
    %v3186 = vld [vmem:[#allocation5 + $0x480] sm:$0xff]
    %v3187 = vld [vmem:[#allocation5 + $0x488] sm:$0xff]
    %v3188 = vld [vmem:[#allocation5 + $0x490] sm:$0xff]
    %v3189 = vld [vmem:[#allocation5 + $0x498] sm:$0xff]
    %v3190 = vld [vmem:[#allocation5 + $0x4a0] sm:$0xff]
    %v3191 = vld [vmem:[#allocation5 + $0x4a8] sm:$0xff]
    %v3192 = vld [vmem:[#allocation5 + $0x4b0] sm:$0xff]
    %v3193 = vld [vmem:[#allocation5 + $0x4b8] sm:$0xff]
    %v3194 = vld [vmem:[#allocation5 + $0x4c0] sm:$0xff]
    %v3195 = vld [vmem:[#allocation5 + $0x4c8] sm:$0xff]
    %v3196 = vld [vmem:[#allocation5 + $0x4d0] sm:$0xff]
    %v3197 = vld [vmem:[#allocation5 + $0x4d8] sm:$0xff]
    %v3198 = vld [vmem:[#allocation5 + $0x4e0] sm:$0xff]
    %v3199 = vld [vmem:[#allocation5 + $0x4e8] sm:$0xff]
    %v3200 = vld [vmem:[#allocation5 + $0x4f0] sm:$0xff]
    %v3201 = vld [vmem:[#allocation5 + $0x4f8] sm:$0xff]
    %v3202 = vld [vmem:[#allocation5 + $0x500] sm:$0xff]
    %v3203 = vld [vmem:[#allocation5 + $0x508] sm:$0xff]
    %v3204 = vld [vmem:[#allocation5 + $0x510] sm:$0xff]
    %v3205 = vld [vmem:[#allocation5 + $0x518] sm:$0xff]
    %v3206 = vld [vmem:[#allocation5 + $0x520] sm:$0xff]
    %v3207 = vld [vmem:[#allocation5 + $0x528] sm:$0xff]
    %v3208 = vld [vmem:[#allocation5 + $0x530] sm:$0xff]
    %v3209 = vld [vmem:[#allocation5 + $0x538] sm:$0xff]
    %v3210 = vld [vmem:[#allocation5 + $0x540] sm:$0xff]
    %v3211 = vld [vmem:[#allocation5 + $0x548] sm:$0xff]
    %v3212 = vld [vmem:[#allocation5 + $0x550] sm:$0xff]
    %v3213 = vld [vmem:[#allocation5 + $0x558] sm:$0xff]
    %v3214 = vld [vmem:[#allocation5 + $0x560] sm:$0xff]
    %v3215 = vld [vmem:[#allocation5 + $0x568] sm:$0xff]
    %v3216 = vld [vmem:[#allocation5 + $0x570] sm:$0xff]
    %v3217 = vld [vmem:[#allocation5 + $0x578] sm:$0xff]
    %v3218 = vld [vmem:[#allocation5 + $0x580] sm:$0xff]
    %v3219 = vld [vmem:[#allocation5 + $0x588] sm:$0xff]
    %v3220 = vld [vmem:[#allocation5 + $0x590] sm:$0xff]
    %v3221 = vld [vmem:[#allocation5 + $0x598] sm:$0xff]
    %v3222 = vld [vmem:[#allocation5 + $0x5a0] sm:$0xff]
    %v3223 = vld [vmem:[#allocation5 + $0x5a8] sm:$0xff]
    %v3224 = vld [vmem:[#allocation5 + $0x5b0] sm:$0xff]
    %v3225 = vld [vmem:[#allocation5 + $0x5b8] sm:$0xff]
    %v3226 = vld [vmem:[#allocation5 + $0x5c0] sm:$0xff]
    %v3227 = vld [vmem:[#allocation5 + $0x5c8] sm:$0xff]
    %v3228 = vld [vmem:[#allocation5 + $0x5d0] sm:$0xff]
    %v3229 = vld [vmem:[#allocation5 + $0x5d8] sm:$0xff]
    %v3230 = vld [vmem:[#allocation5 + $0x5e0] sm:$0xff]
    %v3231 = vld [vmem:[#allocation5 + $0x5e8] sm:$0xff]
    %v3232 = vld [vmem:[#allocation5 + $0x5f0] sm:$0xff]
    %v3233 = vld [vmem:[#allocation5 + $0x5f8] sm:$0xff]
    %v3234 = vld [vmem:[#allocation5 + $0x600] sm:$0xff]
    %v3235 = vld [vmem:[#allocation5 + $0x608] sm:$0xff]
    %v3236 = vld [vmem:[#allocation5 + $0x610] sm:$0xff]
    %v3237 = vld [vmem:[#allocation5 + $0x618] sm:$0xff]
    %v3238 = vld [vmem:[#allocation5 + $0x620] sm:$0xff]
    %v3239 = vld [vmem:[#allocation5 + $0x628] sm:$0xff]
    %v3240 = vld [vmem:[#allocation5 + $0x630] sm:$0xff]
    %v3241 = vld [vmem:[#allocation5 + $0x638] sm:$0xff]
    %v3242 = vld [vmem:[#allocation5 + $0x640] sm:$0xff]
    %v3243 = vld [vmem:[#allocation5 + $0x648] sm:$0xff]
    %v3244 = vld [vmem:[#allocation5 + $0x650] sm:$0xff]
    %v3245 = vld [vmem:[#allocation5 + $0x658] sm:$0xff]
    %v3246 = vld [vmem:[#allocation5 + $0x660] sm:$0xff]
    %v3247 = vld [vmem:[#allocation5 + $0x668] sm:$0xff]
    %v3248 = vld [vmem:[#allocation5 + $0x670] sm:$0xff]
    %v3249 = vld [vmem:[#allocation5 + $0x678] sm:$0xff]
    %v3250 = vld [vmem:[#allocation5 + $0x680] sm:$0xff]
    %v3251 = vld [vmem:[#allocation5 + $0x688] sm:$0xff]
    %v3252 = vld [vmem:[#allocation5 + $0x690] sm:$0xff]
    %v3253 = vld [vmem:[#allocation5 + $0x698] sm:$0xff]
    %v3254 = vld [vmem:[#allocation5 + $0x6a0] sm:$0xff]
    %v3255 = vld [vmem:[#allocation5 + $0x6a8] sm:$0xff]
    %v3256 = vld [vmem:[#allocation5 + $0x6b0] sm:$0xff]
    %v3257 = vld [vmem:[#allocation5 + $0x6b8] sm:$0xff]
    %v3258 = vld [vmem:[#allocation5 + $0x6c0] sm:$0xff]
    %v3259 = vld [vmem:[#allocation5 + $0x6c8] sm:$0xff]
    %v3260 = vld [vmem:[#allocation5 + $0x6d0] sm:$0xff]
    %v3261 = vld [vmem:[#allocation5 + $0x6d8] sm:$0xff]
    %v3262 = vld [vmem:[#allocation5 + $0x6e0] sm:$0xff]
    %v3263 = vld [vmem:[#allocation5 + $0x6e8] sm:$0xff]
    %v3264 = vld [vmem:[#allocation5 + $0x6f0] sm:$0xff]
    %v3265 = vld [vmem:[#allocation5 + $0x6f8] sm:$0xff]
    %v3266 = vld [vmem:[#allocation5 + $0x700] sm:$0xff]
    %v3267 = vld [vmem:[#allocation5 + $0x708] sm:$0xff]
    %v3268 = vld [vmem:[#allocation5 + $0x710] sm:$0xff]
    %v3269 = vld [vmem:[#allocation5 + $0x718] sm:$0xff]
    %v3270 = vld [vmem:[#allocation5 + $0x720] sm:$0xff]
    %v3271 = vld [vmem:[#allocation5 + $0x728] sm:$0xff]
    %v3272 = vld [vmem:[#allocation5 + $0x730] sm:$0xff]
    %v3273 = vld [vmem:[#allocation5 + $0x738] sm:$0xff]
    %v3274 = vld [vmem:[#allocation5 + $0x740] sm:$0xff]
    %v3275 = vld [vmem:[#allocation5 + $0x748] sm:$0xff]
    %v3276 = vld [vmem:[#allocation5 + $0x750] sm:$0xff]
    %v3277 = vld [vmem:[#allocation5 + $0x758] sm:$0xff]
    %v3278 = vld [vmem:[#allocation5 + $0x760] sm:$0xff]
    %v3279 = vld [vmem:[#allocation5 + $0x768] sm:$0xff]
    %v3280 = vld [vmem:[#allocation5 + $0x770] sm:$0xff]
    %v3281 = vld [vmem:[#allocation5 + $0x778] sm:$0xff]
    %v3282 = vld [vmem:[#allocation5 + $0x780] sm:$0xff]
    %v3283 = vld [vmem:[#allocation5 + $0x788] sm:$0xff]
    %v3284 = vld [vmem:[#allocation5 + $0x790] sm:$0xff]
    %v3285 = vld [vmem:[#allocation5 + $0x798] sm:$0xff]
    %v3286 = vld [vmem:[#allocation5 + $0x7a0] sm:$0xff]
    %v3287 = vld [vmem:[#allocation5 + $0x7a8] sm:$0xff]
    %v3288 = vld [vmem:[#allocation5 + $0x7b0] sm:$0xff]
    %v3289 = vld [vmem:[#allocation5 + $0x7b8] sm:$0xff]
    %v3290 = vld [vmem:[#allocation5 + $0x7c0] sm:$0xff]
    %v3291 = vld [vmem:[#allocation5 + $0x7c8] sm:$0xff]
    %v3292 = vld [vmem:[#allocation5 + $0x7d0] sm:$0xff]
    %v3293 = vld [vmem:[#allocation5 + $0x7d8] sm:$0xff]
    %v3294 = vld [vmem:[#allocation5 + $0x7e0] sm:$0xff]
    %v3295 = vld [vmem:[#allocation5 + $0x7e8] sm:$0xff]
    %v3296 = vld [vmem:[#allocation5 + $0x7f0] sm:$0xff]
    %v3297 = vld [vmem:[#allocation5 + $0x7f8] sm:$0xff]
    %v3298 = vld [vmem:[%s8] sm:$0xf]
    %v3300 = vperm.slane %v3298, 0
    %v3301 = vperm.slane %v3298, 1
    %v3302 = vperm.slane %v3298, 2
    %v3303 = vperm.slane %v3298, 3
    %3308 = vmatpush.msra.mxu0 %v3102
    %3309 = vmatpush.msra.mxu0 %v3098
    %3310 = vmatpush.msra.mxu0 %v3094
    %3311 = vmatpush.msra.mxu0 %v3090
    %3312 = vmatpush.msra.mxu0 %v3086
    %3313 = vmatpush.msra.mxu0 %v3082
    %3314 = vmatpush.msra.mxu0 %v3078
    %3315 = vmatpush.msra.mxu0 %v3074
    %3316 = vmatpush.msra.mxu0 %v3070
    %3317 = vmatpush.msra.mxu0 %v3066
    %3318 = vmatpush.msra.mxu0 %v3062
    %3319 = vmatpush.msra.mxu0 %v3058
    %3320 = vmatpush.msra.mxu0 %v3054
    %3321 = vmatpush.msra.mxu0 %v3050
    %3322 = vmatpush.msra.mxu0 %v3046
    %3323 = vmatpush.msra.mxu0 %v3042
    %3324 = vmatmul.f32.gmra.mxu0 %v3038
    %v3325 = vpop.f32.mrf.mxu0
    %v3326 = vadd.f32 %v3300, %v3325
    %3327 = vdwg.mxu0
    %3328 = vmatpush.msra.mxu0 %v3166
    %3329 = vmatpush.msra.mxu0 %v3162
    %3330 = vmatpush.msra.mxu0 %v3158
    %3331 = vmatpush.msra.mxu0 %v3154
    %3332 = vmatpush.msra.mxu0 %v3150
    %3333 = vmatpush.msra.mxu0 %v3146
    %3334 = vmatpush.msra.mxu0 %v3142
    %3335 = vmatpush.msra.mxu0 %v3138
    %3336 = vmatpush.msra.mxu0 %v3134
    %3337 = vmatpush.msra.mxu0 %v3130
    %3338 = vmatpush.msra.mxu0 %v3126
    %3339 = vmatpush.msra.mxu0 %v3122
    %3340 = vmatpush.msra.mxu0 %v3118
    %3341 = vmatpush.msra.mxu0 %v3114
    %3342 = vmatpush.msra.mxu0 %v3110
    %3343 = vmatpush.msra.mxu0 %v3106
    %3344 = vmatmul.f32.gmra.mxu0 %v3039
    %v3345 = vpop.f32.mrf.mxu0
    %v3346 = vadd.f32 %v3326, %v3345
    %3347 = vdwg.mxu0
    %3348 = vmatpush.msra.mxu0 %v3230
    %3349 = vmatpush.msra.mxu0 %v3226
    %3350 = vmatpush.msra.mxu0 %v3222
    %3351 = vmatpush.msra.mxu0 %v3218
    %3352 = vmatpush.msra.mxu0 %v3214
    %3353 = vmatpush.msra.mxu0 %v3210
    %3354 = vmatpush.msra.mxu0 %v3206
    %3355 = vmatpush.msra.mxu0 %v3202
    %3356 = vmatpush.msra.mxu0 %v3198
    %3357 = vmatpush.msra.mxu0 %v3194
    %3358 = vmatpush.msra.mxu0 %v3190
    %3359 = vmatpush.msra.mxu0 %v3186
    %3360 = vmatpush.msra.mxu0 %v3182
    %3361 = vmatpush.msra.mxu0 %v3178
    %3362 = vmatpush.msra.mxu0 %v3174
    %3363 = vmatpush.msra.mxu0 %v3170
    %3364 = vmatmul.f32.gmra.mxu0 %v3040
    %v3365 = vpop.f32.mrf.mxu0
    %v3366 = vadd.f32 %v3346, %v3365
    %3367 = vdwg.mxu0
    %3368 = vmatpush.msra.mxu0 %v3294
    %3369 = vmatpush.msra.mxu0 %v3290
    %3370 = vmatpush.msra.mxu0 %v3286
    %3371 = vmatpush.msra.mxu0 %v3282
    %3372 = vmatpush.msra.mxu0 %v3278
    %3373 = vmatpush.msra.mxu0 %v3274
    %3374 = vmatpush.msra.mxu0 %v3270
    %3375 = vmatpush.msra.mxu0 %v3266
    %3376 = vmatpush.msra.mxu0 %v3262
    %3377 = vmatpush.msra.mxu0 %v3258
    %3378 = vmatpush.msra.mxu0 %v3254
    %3379 = vmatpush.msra.mxu0 %v3250
    %3380 = vmatpush.msra.mxu0 %v3246
    %3381 = vmatpush.msra.mxu0 %v3242
    %3382 = vmatpush.msra.mxu0 %v3238
    %3383 = vmatpush.msra.mxu0 %v3234
    %3384 = vmatmul.f32.gmra.mxu0 %v3041
    %v3385 = vpop.f32.mrf.mxu0
    %v3386 = vadd.f32 %v3366, %v3385
    %3387 = vdwg.mxu0
    %3388 = vmatpush.msra.mxu0 %v3103
    %3389 = vmatpush.msra.mxu0 %v3099
    %3390 = vmatpush.msra.mxu0 %v3095
    %3391 = vmatpush.msra.mxu0 %v3091
    %3392 = vmatpush.msra.mxu0 %v3087
    %3393 = vmatpush.msra.mxu0 %v3083
    %3394 = vmatpush.msra.mxu0 %v3079
    %3395 = vmatpush.msra.mxu0 %v3075
    %3396 = vmatpush.msra.mxu0 %v3071
    %3397 = vmatpush.msra.mxu0 %v3067
    %3398 = vmatpush.msra.mxu0 %v3063
    %3399 = vmatpush.msra.mxu0 %v3059
    %3400 = vmatpush.msra.mxu0 %v3055
    %3401 = vmatpush.msra.mxu0 %v3051
    %3402 = vmatpush.msra.mxu0 %v3047
    %3403 = vmatpush.msra.mxu0 %v3043
    %3404 = vmatmul.f32.gmra.mxu0 %v3038
    %v3405 = vpop.f32.mrf.mxu0
    %v3406 = vadd.f32 %v3301, %v3405
    %3407 = vdwg.mxu0
    %3408 = vmatpush.msra.mxu0 %v3167
    %3409 = vmatpush.msra.mxu0 %v3163
    %3410 = vmatpush.msra.mxu0 %v3159
    %3411 = vmatpush.msra.mxu0 %v3155
    %3412 = vmatpush.msra.mxu0 %v3151
    %3413 = vmatpush.msra.mxu0 %v3147
    %3414 = vmatpush.msra.mxu0 %v3143
    %3415 = vmatpush.msra.mxu0 %v3139
    %3416 = vmatpush.msra.mxu0 %v3135
    %3417 = vmatpush.msra.mxu0 %v3131
    %3418 = vmatpush.msra.mxu0 %v3127
    %3419 = vmatpush.msra.mxu0 %v3123
    %3420 = vmatpush.msra.mxu0 %v3119
    %3421 = vmatpush.msra.mxu0 %v3115
    %3422 = vmatpush.msra.mxu0 %v3111
    %3423 = vmatpush.msra.mxu0 %v3107
    %3424 = vmatmul.f32.gmra.mxu0 %v3039
    %v3425 = vpop.f32.mrf.mxu0
    %v3426 = vadd.f32 %v3406, %v3425
    %3427 = vdwg.mxu0
    %3428 = vmatpush.msra.mxu0 %v3231
    %3429 = vmatpush.msra.mxu0 %v3227
    %3430 = vmatpush.msra.mxu0 %v3223
    %3431 = vmatpush.msra.mxu0 %v3219
    %3432 = vmatpush.msra.mxu0 %v3215
    %3433 = vmatpush.msra.mxu0 %v3211
    %3434 = vmatpush.msra.mxu0 %v3207
    %3435 = vmatpush.msra.mxu0 %v3203
    %3436 = vmatpush.msra.mxu0 %v3199
    %3437 = vmatpush.msra.mxu0 %v3195
    %3438 = vmatpush.msra.mxu0 %v3191
    %3439 = vmatpush.msra.mxu0 %v3187
    %3440 = vmatpush.msra.mxu0 %v3183
    %3441 = vmatpush.msra.mxu0 %v3179
    %3442 = vmatpush.msra.mxu0 %v3175
    %3443 = vmatpush.msra.mxu0 %v3171
    %3444 = vmatmul.f32.gmra.mxu0 %v3040
    %v3445 = vpop.f32.mrf.mxu0
    %v3446 = vadd.f32 %v3426, %v3445
    %3447 = vdwg.mxu0
    %3448 = vmatpush.msra.mxu0 %v3295
    %3449 = vmatpush.msra.mxu0 %v3291
    %3450 = vmatpush.msra.mxu0 %v3287
    %3451 = vmatpush.msra.mxu0 %v3283
    %3452 = vmatpush.msra.mxu0 %v3279
    %3453 = vmatpush.msra.mxu0 %v3275
    %3454 = vmatpush.msra.mxu0 %v3271
    %3455 = vmatpush.msra.mxu0 %v3267
    %3456 = vmatpush.msra.mxu0 %v3263
    %3457 = vmatpush.msra.mxu0 %v3259
    %3458 = vmatpush.msra.mxu0 %v3255
    %3459 = vmatpush.msra.mxu0 %v3251
    %3460 = vmatpush.msra.mxu0 %v3247
    %3461 = vmatpush.msra.mxu0 %v3243
    %3462 = vmatpush.msra.mxu0 %v3239
    %3463 = vmatpush.msra.mxu0 %v3235
    %3464 = vmatmul.f32.gmra.mxu0 %v3041
    %v3465 = vpop.f32.mrf.mxu0
    %v3466 = vadd.f32 %v3446, %v3465
    %3467 = vdwg.mxu0
    %3468 = vmatpush.msra.mxu0 %v3104
    %3469 = vmatpush.msra.mxu0 %v3100
    %3470 = vmatpush.msra.mxu0 %v3096
    %3471 = vmatpush.msra.mxu0 %v3092
    %3472 = vmatpush.msra.mxu0 %v3088
    %3473 = vmatpush.msra.mxu0 %v3084
    %3474 = vmatpush.msra.mxu0 %v3080
    %3475 = vmatpush.msra.mxu0 %v3076
    %3476 = vmatpush.msra.mxu0 %v3072
    %3477 = vmatpush.msra.mxu0 %v3068
    %3478 = vmatpush.msra.mxu0 %v3064
    %3479 = vmatpush.msra.mxu0 %v3060
    %3480 = vmatpush.msra.mxu0 %v3056
    %3481 = vmatpush.msra.mxu0 %v3052
    %3482 = vmatpush.msra.mxu0 %v3048
    %3483 = vmatpush.msra.mxu0 %v3044
    %3484 = vmatmul.f32.gmra.mxu0 %v3038
    %v3485 = vpop.f32.mrf.mxu0
    %v3486 = vadd.f32 %v3302, %v3485
    %3487 = vdwg.mxu0
    %3488 = vmatpush.msra.mxu0 %v3168
    %3489 = vmatpush.msra.mxu0 %v3164
    %3490 = vmatpush.msra.mxu0 %v3160
    %3491 = vmatpush.msra.mxu0 %v3156
    %3492 = vmatpush.msra.mxu0 %v3152
    %3493 = vmatpush.msra.mxu0 %v3148
    %3494 = vmatpush.msra.mxu0 %v3144
    %3495 = vmatpush.msra.mxu0 %v3140
    %3496 = vmatpush.msra.mxu0 %v3136
    %3497 = vmatpush.msra.mxu0 %v3132
    %3498 = vmatpush.msra.mxu0 %v3128
    %3499 = vmatpush.msra.mxu0 %v3124
    %3500 = vmatpush.msra.mxu0 %v3120
    %3501 = vmatpush.msra.mxu0 %v3116
    %3502 = vmatpush.msra.mxu0 %v3112
    %3503 = vmatpush.msra.mxu0 %v3108
    %3504 = vmatmul.f32.gmra.mxu0 %v3039
    %v3505 = vpop.f32.mrf.mxu0
    %v3506 = vadd.f32 %v3486, %v3505
    %3507 = vdwg.mxu0
    %3508 = vmatpush.msra.mxu0 %v3232
    %3509 = vmatpush.msra.mxu0 %v3228
    %3510 = vmatpush.msra.mxu0 %v3224
    %3511 = vmatpush.msra.mxu0 %v3220
    %3512 = vmatpush.msra.mxu0 %v3216
    %3513 = vmatpush.msra.mxu0 %v3212
    %3514 = vmatpush.msra.mxu0 %v3208
    %3515 = vmatpush.msra.mxu0 %v3204
    %3516 = vmatpush.msra.mxu0 %v3200
    %3517 = vmatpush.msra.mxu0 %v3196
    %3518 = vmatpush.msra.mxu0 %v3192
    %3519 = vmatpush.msra.mxu0 %v3188
    %3520 = vmatpush.msra.mxu0 %v3184
    %3521 = vmatpush.msra.mxu0 %v3180
    %3522 = vmatpush.msra.mxu0 %v3176
    %3523 = vmatpush.msra.mxu0 %v3172
    %3524 = vmatmul.f32.gmra.mxu0 %v3040
    %v3525 = vpop.f32.mrf.mxu0
    %v3526 = vadd.f32 %v3506, %v3525
    %3527 = vdwg.mxu0
    %3528 = vmatpush.msra.mxu0 %v3296
    %3529 = vmatpush.msra.mxu0 %v3292
    %3530 = vmatpush.msra.mxu0 %v3288
    %3531 = vmatpush.msra.mxu0 %v3284
    %3532 = vmatpush.msra.mxu0 %v3280
    %3533 = vmatpush.msra.mxu0 %v3276
    %3534 = vmatpush.msra.mxu0 %v3272
    %3535 = vmatpush.msra.mxu0 %v3268
    %3536 = vmatpush.msra.mxu0 %v3264
    %3537 = vmatpush.msra.mxu0 %v3260
    %3538 = vmatpush.msra.mxu0 %v3256
    %3539 = vmatpush.msra.mxu0 %v3252
    %3540 = vmatpush.msra.mxu0 %v3248
    %3541 = vmatpush.msra.mxu0 %v3244
    %3542 = vmatpush.msra.mxu0 %v3240
    %3543 = vmatpush.msra.mxu0 %v3236
    %3544 = vmatmul.f32.gmra.mxu0 %v3041
    %v3545 = vpop.f32.mrf.mxu0
    %v3546 = vadd.f32 %v3526, %v3545
    %3547 = vdwg.mxu0
    %3548 = vmatpush.msra.mxu0 %v3105
    %3549 = vmatpush.msra.mxu0 %v3101
    %3550 = vmatpush.msra.mxu0 %v3097
    %3551 = vmatpush.msra.mxu0 %v3093
    %3552 = vmatpush.msra.mxu0 %v3089
    %3553 = vmatpush.msra.mxu0 %v3085
    %3554 = vmatpush.msra.mxu0 %v3081
    %3555 = vmatpush.msra.mxu0 %v3077
    %3556 = vmatpush.msra.mxu0 %v3073
    %3557 = vmatpush.msra.mxu0 %v3069
    %3558 = vmatpush.msra.mxu0 %v3065
    %3559 = vmatpush.msra.mxu0 %v3061
    %3560 = vmatpush.msra.mxu0 %v3057
    %3561 = vmatpush.msra.mxu0 %v3053
    %3562 = vmatpush.msra.mxu0 %v3049
    %3563 = vmatpush.msra.mxu0 %v3045
    %3564 = vmatmul.f32.gmra.mxu0 %v3038
    %v3565 = vpop.f32.mrf.mxu0
    %v3566 = vadd.f32 %v3303, %v3565
    %3567 = vdwg.mxu0
    %3568 = vmatpush.msra.mxu0 %v3169
    %3569 = vmatpush.msra.mxu0 %v3165
    %3570 = vmatpush.msra.mxu0 %v3161
    %3571 = vmatpush.msra.mxu0 %v3157
    %3572 = vmatpush.msra.mxu0 %v3153
    %3573 = vmatpush.msra.mxu0 %v3149
    %3574 = vmatpush.msra.mxu0 %v3145
    %3575 = vmatpush.msra.mxu0 %v3141
    %3576 = vmatpush.msra.mxu0 %v3137
    %3577 = vmatpush.msra.mxu0 %v3133
    %3578 = vmatpush.msra.mxu0 %v3129
    %3579 = vmatpush.msra.mxu0 %v3125
    %3580 = vmatpush.msra.mxu0 %v3121
    %3581 = vmatpush.msra.mxu0 %v3117
    %3582 = vmatpush.msra.mxu0 %v3113
    %3583 = vmatpush.msra.mxu0 %v3109
    %3584 = vmatmul.f32.gmra.mxu0 %v3039
    %v3585 = vpop.f32.mrf.mxu0
    %v3586 = vadd.f32 %v3566, %v3585
    %3587 = vdwg.mxu0
    %3588 = vmatpush.msra.mxu0 %v3233
    %3589 = vmatpush.msra.mxu0 %v3229
    %3590 = vmatpush.msra.mxu0 %v3225
    %3591 = vmatpush.msra.mxu0 %v3221
    %3592 = vmatpush.msra.mxu0 %v3217
    %3593 = vmatpush.msra.mxu0 %v3213
    %3594 = vmatpush.msra.mxu0 %v3209
    %3595 = vmatpush.msra.mxu0 %v3205
    %3596 = vmatpush.msra.mxu0 %v3201
    %3597 = vmatpush.msra.mxu0 %v3197
    %3598 = vmatpush.msra.mxu0 %v3193
    %3599 = vmatpush.msra.mxu0 %v3189
    %3600 = vmatpush.msra.mxu0 %v3185
    %3601 = vmatpush.msra.mxu0 %v3181
    %3602 = vmatpush.msra.mxu0 %v3177
    %3603 = vmatpush.msra.mxu0 %v3173
    %3604 = vmatmul.f32.gmra.mxu0 %v3040
    %v3605 = vpop.f32.mrf.mxu0
    %v3606 = vadd.f32 %v3586, %v3605
    %3607 = vdwg.mxu0
    %3608 = vmatpush.msra.mxu0 %v3297
    %3609 = vmatpush.msra.mxu0 %v3293
    %3610 = vmatpush.msra.mxu0 %v3289
    %3611 = vmatpush.msra.mxu0 %v3285
    %3612 = vmatpush.msra.mxu0 %v3281
    %3613 = vmatpush.msra.mxu0 %v3277
    %3614 = vmatpush.msra.mxu0 %v3273
    %3615 = vmatpush.msra.mxu0 %v3269
    %3616 = vmatpush.msra.mxu0 %v3265
    %3617 = vmatpush.msra.mxu0 %v3261
    %3618 = vmatpush.msra.mxu0 %v3257
    %3619 = vmatpush.msra.mxu0 %v3253
    %3620 = vmatpush.msra.mxu0 %v3249
    %3621 = vmatpush.msra.mxu0 %v3245
    %3622 = vmatpush.msra.mxu0 %v3241
    %3623 = vmatpush.msra.mxu0 %v3237
    %3624 = vmatmul.f32.gmra.mxu0 %v3041
    %v3625 = vpop.f32.mrf.mxu0
    %v3626 = vadd.f32 %v3606, %v3625
    %3627 = vdwg.mxu0
    %v3628 = vmax.f32 %v3386, 0.0
    %v3629 = vmax.f32 %v3466, 0.0
    %v3630 = vmax.f32 %v3546, 0.0
    %v3631 = vmax.f32 %v3626, 0.0
    %v3632 = vld [vmem:[#allocation7] sm:$0xff]
    %v3633 = vld [vmem:[#allocation7 + $0x8] sm:$0xff]
    %v3634 = vld [vmem:[#allocation7 + $0x10] sm:$0xff]
    %v3635 = vld [vmem:[#allocation7 + $0x18] sm:$0xff]
    %v3636 = vld [vmem:[#allocation7 + $0x20] sm:$0xff]
    %v3637 = vld [vmem:[#allocation7 + $0x28] sm:$0xff]
    %v3638 = vld [vmem:[#allocation7 + $0x30] sm:$0xff]
    %v3639 = vld [vmem:[#allocation7 + $0x38] sm:$0xff]
    %v3640 = vld [vmem:[#allocation7 + $0x40] sm:$0xff]
    %v3641 = vld [vmem:[#allocation7 + $0x48] sm:$0xff]
    %v3642 = vld [vmem:[#allocation7 + $0x50] sm:$0xff]
    %v3643 = vld [vmem:[#allocation7 + $0x58] sm:$0xff]
    %v3644 = vld [vmem:[#allocation7 + $0x60] sm:$0xff]
    %v3645 = vld [vmem:[#allocation7 + $0x68] sm:$0xff]
    %v3646 = vld [vmem:[#allocation7 + $0x70] sm:$0xff]
    %v3647 = vld [vmem:[#allocation7 + $0x78] sm:$0xff]
    %v3648 = vld [vmem:[#allocation7 + $0x80] sm:$0xff]
    %v3649 = vld [vmem:[#allocation7 + $0x88] sm:$0xff]
    %v3650 = vld [vmem:[#allocation7 + $0x90] sm:$0xff]
    %v3651 = vld [vmem:[#allocation7 + $0x98] sm:$0xff]
    %v3652 = vld [vmem:[#allocation7 + $0xa0] sm:$0xff]
    %v3653 = vld [vmem:[#allocation7 + $0xa8] sm:$0xff]
    %v3654 = vld [vmem:[#allocation7 + $0xb0] sm:$0xff]
    %v3655 = vld [vmem:[#allocation7 + $0xb8] sm:$0xff]
    %v3656 = vld [vmem:[#allocation7 + $0xc0] sm:$0xff]
    %v3657 = vld [vmem:[#allocation7 + $0xc8] sm:$0xff]
    %v3658 = vld [vmem:[#allocation7 + $0xd0] sm:$0xff]
    %v3659 = vld [vmem:[#allocation7 + $0xd8] sm:$0xff]
    %v3660 = vld [vmem:[#allocation7 + $0xe0] sm:$0xff]
    %v3661 = vld [vmem:[#allocation7 + $0xe8] sm:$0xff]
    %v3662 = vld [vmem:[#allocation7 + $0xf0] sm:$0xff]
    %v3663 = vld [vmem:[#allocation7 + $0xf8] sm:$0xff]
    %v3664 = vld [vmem:[#allocation7 + $0x100] sm:$0xff]
    %v3665 = vld [vmem:[#allocation7 + $0x108] sm:$0xff]
    %v3666 = vld [vmem:[#allocation7 + $0x110] sm:$0xff]
    %v3667 = vld [vmem:[#allocation7 + $0x118] sm:$0xff]
    %v3668 = vld [vmem:[#allocation7 + $0x120] sm:$0xff]
    %v3669 = vld [vmem:[#allocation7 + $0x128] sm:$0xff]
    %v3670 = vld [vmem:[#allocation7 + $0x130] sm:$0xff]
    %v3671 = vld [vmem:[#allocation7 + $0x138] sm:$0xff]
    %v3672 = vld [vmem:[#allocation7 + $0x140] sm:$0xff]
    %v3673 = vld [vmem:[#allocation7 + $0x148] sm:$0xff]
    %v3674 = vld [vmem:[#allocation7 + $0x150] sm:$0xff]
    %v3675 = vld [vmem:[#allocation7 + $0x158] sm:$0xff]
    %v3676 = vld [vmem:[#allocation7 + $0x160] sm:$0xff]
    %v3677 = vld [vmem:[#allocation7 + $0x168] sm:$0xff]
    %v3678 = vld [vmem:[#allocation7 + $0x170] sm:$0xff]
    %v3679 = vld [vmem:[#allocation7 + $0x178] sm:$0xff]
    %v3680 = vld [vmem:[#allocation7 + $0x180] sm:$0xff]
    %v3681 = vld [vmem:[#allocation7 + $0x188] sm:$0xff]
    %v3682 = vld [vmem:[#allocation7 + $0x190] sm:$0xff]
    %v3683 = vld [vmem:[#allocation7 + $0x198] sm:$0xff]
    %v3684 = vld [vmem:[#allocation7 + $0x1a0] sm:$0xff]
    %v3685 = vld [vmem:[#allocation7 + $0x1a8] sm:$0xff]
    %v3686 = vld [vmem:[#allocation7 + $0x1b0] sm:$0xff]
    %v3687 = vld [vmem:[#allocation7 + $0x1b8] sm:$0xff]
    %v3688 = vld [vmem:[#allocation7 + $0x1c0] sm:$0xff]
    %v3689 = vld [vmem:[#allocation7 + $0x1c8] sm:$0xff]
    %v3690 = vld [vmem:[#allocation7 + $0x1d0] sm:$0xff]
    %v3691 = vld [vmem:[#allocation7 + $0x1d8] sm:$0xff]
    %v3692 = vld [vmem:[#allocation7 + $0x1e0] sm:$0xff]
    %v3693 = vld [vmem:[#allocation7 + $0x1e8] sm:$0xff]
    %v3694 = vld [vmem:[#allocation7 + $0x1f0] sm:$0xff]
    %v3695 = vld [vmem:[#allocation7 + $0x1f8] sm:$0xff]
    %v3696 = vld [vmem:[#allocation7 + $0x200] sm:$0xff]
    %v3697 = vld [vmem:[#allocation7 + $0x208] sm:$0xff]
    %v3698 = vld [vmem:[#allocation7 + $0x210] sm:$0xff]
    %v3699 = vld [vmem:[#allocation7 + $0x218] sm:$0xff]
    %v3700 = vld [vmem:[#allocation7 + $0x220] sm:$0xff]
    %v3701 = vld [vmem:[#allocation7 + $0x228] sm:$0xff]
    %v3702 = vld [vmem:[#allocation7 + $0x230] sm:$0xff]
    %v3703 = vld [vmem:[#allocation7 + $0x238] sm:$0xff]
    %v3704 = vld [vmem:[#allocation7 + $0x240] sm:$0xff]
    %v3705 = vld [vmem:[#allocation7 + $0x248] sm:$0xff]
    %v3706 = vld [vmem:[#allocation7 + $0x250] sm:$0xff]
    %v3707 = vld [vmem:[#allocation7 + $0x258] sm:$0xff]
    %v3708 = vld [vmem:[#allocation7 + $0x260] sm:$0xff]
    %v3709 = vld [vmem:[#allocation7 + $0x268] sm:$0xff]
    %v3710 = vld [vmem:[#allocation7 + $0x270] sm:$0xff]
    %v3711 = vld [vmem:[#allocation7 + $0x278] sm:$0xff]
    %v3712 = vld [vmem:[#allocation7 + $0x280] sm:$0xff]
    %v3713 = vld [vmem:[#allocation7 + $0x288] sm:$0xff]
    %v3714 = vld [vmem:[#allocation7 + $0x290] sm:$0xff]
    %v3715 = vld [vmem:[#allocation7 + $0x298] sm:$0xff]
    %v3716 = vld [vmem:[#allocation7 + $0x2a0] sm:$0xff]
    %v3717 = vld [vmem:[#allocation7 + $0x2a8] sm:$0xff]
    %v3718 = vld [vmem:[#allocation7 + $0x2b0] sm:$0xff]
    %v3719 = vld [vmem:[#allocation7 + $0x2b8] sm:$0xff]
    %v3720 = vld [vmem:[#allocation7 + $0x2c0] sm:$0xff]
    %v3721 = vld [vmem:[#allocation7 + $0x2c8] sm:$0xff]
    %v3722 = vld [vmem:[#allocation7 + $0x2d0] sm:$0xff]
    %v3723 = vld [vmem:[#allocation7 + $0x2d8] sm:$0xff]
    %v3724 = vld [vmem:[#allocation7 + $0x2e0] sm:$0xff]
    %v3725 = vld [vmem:[#allocation7 + $0x2e8] sm:$0xff]
    %v3726 = vld [vmem:[#allocation7 + $0x2f0] sm:$0xff]
    %v3727 = vld [vmem:[#allocation7 + $0x2f8] sm:$0xff]
    %v3728 = vld [vmem:[#allocation7 + $0x300] sm:$0xff]
    %v3729 = vld [vmem:[#allocation7 + $0x308] sm:$0xff]
    %v3730 = vld [vmem:[#allocation7 + $0x310] sm:$0xff]
    %v3731 = vld [vmem:[#allocation7 + $0x318] sm:$0xff]
    %v3732 = vld [vmem:[#allocation7 + $0x320] sm:$0xff]
    %v3733 = vld [vmem:[#allocation7 + $0x328] sm:$0xff]
    %v3734 = vld [vmem:[#allocation7 + $0x330] sm:$0xff]
    %v3735 = vld [vmem:[#allocation7 + $0x338] sm:$0xff]
    %v3736 = vld [vmem:[#allocation7 + $0x340] sm:$0xff]
    %v3737 = vld [vmem:[#allocation7 + $0x348] sm:$0xff]
    %v3738 = vld [vmem:[#allocation7 + $0x350] sm:$0xff]
    %v3739 = vld [vmem:[#allocation7 + $0x358] sm:$0xff]
    %v3740 = vld [vmem:[#allocation7 + $0x360] sm:$0xff]
    %v3741 = vld [vmem:[#allocation7 + $0x368] sm:$0xff]
    %v3742 = vld [vmem:[#allocation7 + $0x370] sm:$0xff]
    %v3743 = vld [vmem:[#allocation7 + $0x378] sm:$0xff]
    %v3744 = vld [vmem:[#allocation7 + $0x380] sm:$0xff]
    %v3745 = vld [vmem:[#allocation7 + $0x388] sm:$0xff]
    %v3746 = vld [vmem:[#allocation7 + $0x390] sm:$0xff]
    %v3747 = vld [vmem:[#allocation7 + $0x398] sm:$0xff]
    %v3748 = vld [vmem:[#allocation7 + $0x3a0] sm:$0xff]
    %v3749 = vld [vmem:[#allocation7 + $0x3a8] sm:$0xff]
    %v3750 = vld [vmem:[#allocation7 + $0x3b0] sm:$0xff]
    %v3751 = vld [vmem:[#allocation7 + $0x3b8] sm:$0xff]
    %v3752 = vld [vmem:[#allocation7 + $0x3c0] sm:$0xff]
    %v3753 = vld [vmem:[#allocation7 + $0x3c8] sm:$0xff]
    %v3754 = vld [vmem:[#allocation7 + $0x3d0] sm:$0xff]
    %v3755 = vld [vmem:[#allocation7 + $0x3d8] sm:$0xff]
    %v3756 = vld [vmem:[#allocation7 + $0x3e0] sm:$0xff]
    %v3757 = vld [vmem:[#allocation7 + $0x3e8] sm:$0xff]
    %v3758 = vld [vmem:[#allocation7 + $0x3f0] sm:$0xff]
    %v3759 = vld [vmem:[#allocation7 + $0x3f8] sm:$0xff]
    %v3760 = vld [vmem:[#allocation7 + $0x400] sm:$0xff]
    %v3761 = vld [vmem:[#allocation7 + $0x408] sm:$0xff]
    %v3762 = vld [vmem:[#allocation7 + $0x410] sm:$0xff]
    %v3763 = vld [vmem:[#allocation7 + $0x418] sm:$0xff]
    %v3764 = vld [vmem:[#allocation7 + $0x420] sm:$0xff]
    %v3765 = vld [vmem:[#allocation7 + $0x428] sm:$0xff]
    %v3766 = vld [vmem:[#allocation7 + $0x430] sm:$0xff]
    %v3767 = vld [vmem:[#allocation7 + $0x438] sm:$0xff]
    %v3768 = vld [vmem:[#allocation7 + $0x440] sm:$0xff]
    %v3769 = vld [vmem:[#allocation7 + $0x448] sm:$0xff]
    %v3770 = vld [vmem:[#allocation7 + $0x450] sm:$0xff]
    %v3771 = vld [vmem:[#allocation7 + $0x458] sm:$0xff]
    %v3772 = vld [vmem:[#allocation7 + $0x460] sm:$0xff]
    %v3773 = vld [vmem:[#allocation7 + $0x468] sm:$0xff]
    %v3774 = vld [vmem:[#allocation7 + $0x470] sm:$0xff]
    %v3775 = vld [vmem:[#allocation7 + $0x478] sm:$0xff]
    %v3776 = vld [vmem:[#allocation7 + $0x480] sm:$0xff]
    %v3777 = vld [vmem:[#allocation7 + $0x488] sm:$0xff]
    %v3778 = vld [vmem:[#allocation7 + $0x490] sm:$0xff]
    %v3779 = vld [vmem:[#allocation7 + $0x498] sm:$0xff]
    %v3780 = vld [vmem:[#allocation7 + $0x4a0] sm:$0xff]
    %v3781 = vld [vmem:[#allocation7 + $0x4a8] sm:$0xff]
    %v3782 = vld [vmem:[#allocation7 + $0x4b0] sm:$0xff]
    %v3783 = vld [vmem:[#allocation7 + $0x4b8] sm:$0xff]
    %v3784 = vld [vmem:[#allocation7 + $0x4c0] sm:$0xff]
    %v3785 = vld [vmem:[#allocation7 + $0x4c8] sm:$0xff]
    %v3786 = vld [vmem:[#allocation7 + $0x4d0] sm:$0xff]
    %v3787 = vld [vmem:[#allocation7 + $0x4d8] sm:$0xff]
    %v3788 = vld [vmem:[#allocation7 + $0x4e0] sm:$0xff]
    %v3789 = vld [vmem:[#allocation7 + $0x4e8] sm:$0xff]
    %v3790 = vld [vmem:[#allocation7 + $0x4f0] sm:$0xff]
    %v3791 = vld [vmem:[#allocation7 + $0x4f8] sm:$0xff]
    %v3792 = vld [vmem:[#allocation7 + $0x500] sm:$0xff]
    %v3793 = vld [vmem:[#allocation7 + $0x508] sm:$0xff]
    %v3794 = vld [vmem:[#allocation7 + $0x510] sm:$0xff]
    %v3795 = vld [vmem:[#allocation7 + $0x518] sm:$0xff]
    %v3796 = vld [vmem:[#allocation7 + $0x520] sm:$0xff]
    %v3797 = vld [vmem:[#allocation7 + $0x528] sm:$0xff]
    %v3798 = vld [vmem:[#allocation7 + $0x530] sm:$0xff]
    %v3799 = vld [vmem:[#allocation7 + $0x538] sm:$0xff]
    %v3800 = vld [vmem:[#allocation7 + $0x540] sm:$0xff]
    %v3801 = vld [vmem:[#allocation7 + $0x548] sm:$0xff]
    %v3802 = vld [vmem:[#allocation7 + $0x550] sm:$0xff]
    %v3803 = vld [vmem:[#allocation7 + $0x558] sm:$0xff]
    %v3804 = vld [vmem:[#allocation7 + $0x560] sm:$0xff]
    %v3805 = vld [vmem:[#allocation7 + $0x568] sm:$0xff]
    %v3806 = vld [vmem:[#allocation7 + $0x570] sm:$0xff]
    %v3807 = vld [vmem:[#allocation7 + $0x578] sm:$0xff]
    %v3808 = vld [vmem:[#allocation7 + $0x580] sm:$0xff]
    %v3809 = vld [vmem:[#allocation7 + $0x588] sm:$0xff]
    %v3810 = vld [vmem:[#allocation7 + $0x590] sm:$0xff]
    %v3811 = vld [vmem:[#allocation7 + $0x598] sm:$0xff]
    %v3812 = vld [vmem:[#allocation7 + $0x5a0] sm:$0xff]
    %v3813 = vld [vmem:[#allocation7 + $0x5a8] sm:$0xff]
    %v3814 = vld [vmem:[#allocation7 + $0x5b0] sm:$0xff]
    %v3815 = vld [vmem:[#allocation7 + $0x5b8] sm:$0xff]
    %v3816 = vld [vmem:[#allocation7 + $0x5c0] sm:$0xff]
    %v3817 = vld [vmem:[#allocation7 + $0x5c8] sm:$0xff]
    %v3818 = vld [vmem:[#allocation7 + $0x5d0] sm:$0xff]
    %v3819 = vld [vmem:[#allocation7 + $0x5d8] sm:$0xff]
    %v3820 = vld [vmem:[#allocation7 + $0x5e0] sm:$0xff]
    %v3821 = vld [vmem:[#allocation7 + $0x5e8] sm:$0xff]
    %v3822 = vld [vmem:[#allocation7 + $0x5f0] sm:$0xff]
    %v3823 = vld [vmem:[#allocation7 + $0x5f8] sm:$0xff]
    %v3824 = vld [vmem:[#allocation7 + $0x600] sm:$0xff]
    %v3825 = vld [vmem:[#allocation7 + $0x608] sm:$0xff]
    %v3826 = vld [vmem:[#allocation7 + $0x610] sm:$0xff]
    %v3827 = vld [vmem:[#allocation7 + $0x618] sm:$0xff]
    %v3828 = vld [vmem:[#allocation7 + $0x620] sm:$0xff]
    %v3829 = vld [vmem:[#allocation7 + $0x628] sm:$0xff]
    %v3830 = vld [vmem:[#allocation7 + $0x630] sm:$0xff]
    %v3831 = vld [vmem:[#allocation7 + $0x638] sm:$0xff]
    %v3832 = vld [vmem:[#allocation7 + $0x640] sm:$0xff]
    %v3833 = vld [vmem:[#allocation7 + $0x648] sm:$0xff]
    %v3834 = vld [vmem:[#allocation7 + $0x650] sm:$0xff]
    %v3835 = vld [vmem:[#allocation7 + $0x658] sm:$0xff]
    %v3836 = vld [vmem:[#allocation7 + $0x660] sm:$0xff]
    %v3837 = vld [vmem:[#allocation7 + $0x668] sm:$0xff]
    %v3838 = vld [vmem:[#allocation7 + $0x670] sm:$0xff]
    %v3839 = vld [vmem:[#allocation7 + $0x678] sm:$0xff]
    %v3840 = vld [vmem:[#allocation7 + $0x680] sm:$0xff]
    %v3841 = vld [vmem:[#allocation7 + $0x688] sm:$0xff]
    %v3842 = vld [vmem:[#allocation7 + $0x690] sm:$0xff]
    %v3843 = vld [vmem:[#allocation7 + $0x698] sm:$0xff]
    %v3844 = vld [vmem:[#allocation7 + $0x6a0] sm:$0xff]
    %v3845 = vld [vmem:[#allocation7 + $0x6a8] sm:$0xff]
    %v3846 = vld [vmem:[#allocation7 + $0x6b0] sm:$0xff]
    %v3847 = vld [vmem:[#allocation7 + $0x6b8] sm:$0xff]
    %v3848 = vld [vmem:[#allocation7 + $0x6c0] sm:$0xff]
    %v3849 = vld [vmem:[#allocation7 + $0x6c8] sm:$0xff]
    %v3850 = vld [vmem:[#allocation7 + $0x6d0] sm:$0xff]
    %v3851 = vld [vmem:[#allocation7 + $0x6d8] sm:$0xff]
    %v3852 = vld [vmem:[#allocation7 + $0x6e0] sm:$0xff]
    %v3853 = vld [vmem:[#allocation7 + $0x6e8] sm:$0xff]
    %v3854 = vld [vmem:[#allocation7 + $0x6f0] sm:$0xff]
    %v3855 = vld [vmem:[#allocation7 + $0x6f8] sm:$0xff]
    %v3856 = vld [vmem:[#allocation7 + $0x700] sm:$0xff]
    %v3857 = vld [vmem:[#allocation7 + $0x708] sm:$0xff]
    %v3858 = vld [vmem:[#allocation7 + $0x710] sm:$0xff]
    %v3859 = vld [vmem:[#allocation7 + $0x718] sm:$0xff]
    %v3860 = vld [vmem:[#allocation7 + $0x720] sm:$0xff]
    %v3861 = vld [vmem:[#allocation7 + $0x728] sm:$0xff]
    %v3862 = vld [vmem:[#allocation7 + $0x730] sm:$0xff]
    %v3863 = vld [vmem:[#allocation7 + $0x738] sm:$0xff]
    %v3864 = vld [vmem:[#allocation7 + $0x740] sm:$0xff]
    %v3865 = vld [vmem:[#allocation7 + $0x748] sm:$0xff]
    %v3866 = vld [vmem:[#allocation7 + $0x750] sm:$0xff]
    %v3867 = vld [vmem:[#allocation7 + $0x758] sm:$0xff]
    %v3868 = vld [vmem:[#allocation7 + $0x760] sm:$0xff]
    %v3869 = vld [vmem:[#allocation7 + $0x768] sm:$0xff]
    %v3870 = vld [vmem:[#allocation7 + $0x770] sm:$0xff]
    %v3871 = vld [vmem:[#allocation7 + $0x778] sm:$0xff]
    %v3872 = vld [vmem:[#allocation7 + $0x780] sm:$0xff]
    %v3873 = vld [vmem:[#allocation7 + $0x788] sm:$0xff]
    %v3874 = vld [vmem:[#allocation7 + $0x790] sm:$0xff]
    %v3875 = vld [vmem:[#allocation7 + $0x798] sm:$0xff]
    %v3876 = vld [vmem:[#allocation7 + $0x7a0] sm:$0xff]
    %v3877 = vld [vmem:[#allocation7 + $0x7a8] sm:$0xff]
    %v3878 = vld [vmem:[#allocation7 + $0x7b0] sm:$0xff]
    %v3879 = vld [vmem:[#allocation7 + $0x7b8] sm:$0xff]
    %v3880 = vld [vmem:[#allocation7 + $0x7c0] sm:$0xff]
    %v3881 = vld [vmem:[#allocation7 + $0x7c8] sm:$0xff]
    %v3882 = vld [vmem:[#allocation7 + $0x7d0] sm:$0xff]
    %v3883 = vld [vmem:[#allocation7 + $0x7d8] sm:$0xff]
    %v3884 = vld [vmem:[#allocation7 + $0x7e0] sm:$0xff]
    %v3885 = vld [vmem:[#allocation7 + $0x7e8] sm:$0xff]
    %v3886 = vld [vmem:[#allocation7 + $0x7f0] sm:$0xff]
    %v3887 = vld [vmem:[#allocation7 + $0x7f8] sm:$0xff]
    %v3888 = vld [vmem:[%s10] sm:$0xf]
    %v3890 = vperm.slane %v3888, 0
    %v3891 = vperm.slane %v3888, 1
    %v3892 = vperm.slane %v3888, 2
    %v3893 = vperm.slane %v3888, 3
    %3898 = vmatpush.msra.mxu0 %v3692
    %3899 = vmatpush.msra.mxu0 %v3688
    %3900 = vmatpush.msra.mxu0 %v3684
    %3901 = vmatpush.msra.mxu0 %v3680
    %3902 = vmatpush.msra.mxu0 %v3676
    %3903 = vmatpush.msra.mxu0 %v3672
    %3904 = vmatpush.msra.mxu0 %v3668
    %3905 = vmatpush.msra.mxu0 %v3664
    %3906 = vmatpush.msra.mxu0 %v3660
    %3907 = vmatpush.msra.mxu0 %v3656
    %3908 = vmatpush.msra.mxu0 %v3652
    %3909 = vmatpush.msra.mxu0 %v3648
    %3910 = vmatpush.msra.mxu0 %v3644
    %3911 = vmatpush.msra.mxu0 %v3640
    %3912 = vmatpush.msra.mxu0 %v3636
    %3913 = vmatpush.msra.mxu0 %v3632
    %3914 = vmatmul.f32.gmra.mxu0 %v3628
    %v3915 = vpop.f32.mrf.mxu0
    %v3916 = vadd.f32 %v3890, %v3915
    %3917 = vdwg.mxu0
    %3918 = vmatpush.msra.mxu0 %v3756
    %3919 = vmatpush.msra.mxu0 %v3752
    %3920 = vmatpush.msra.mxu0 %v3748
    %3921 = vmatpush.msra.mxu0 %v3744
    %3922 = vmatpush.msra.mxu0 %v3740
    %3923 = vmatpush.msra.mxu0 %v3736
    %3924 = vmatpush.msra.mxu0 %v3732
    %3925 = vmatpush.msra.mxu0 %v3728
    %3926 = vmatpush.msra.mxu0 %v3724
    %3927 = vmatpush.msra.mxu0 %v3720
    %3928 = vmatpush.msra.mxu0 %v3716
    %3929 = vmatpush.msra.mxu0 %v3712
    %3930 = vmatpush.msra.mxu0 %v3708
    %3931 = vmatpush.msra.mxu0 %v3704
    %3932 = vmatpush.msra.mxu0 %v3700
    %3933 = vmatpush.msra.mxu0 %v3696
    %3934 = vmatmul.f32.gmra.mxu0 %v3629
    %v3935 = vpop.f32.mrf.mxu0
    %v3936 = vadd.f32 %v3916, %v3935
    %3937 = vdwg.mxu0
    %3938 = vmatpush.msra.mxu0 %v3820
    %3939 = vmatpush.msra.mxu0 %v3816
    %3940 = vmatpush.msra.mxu0 %v3812
    %3941 = vmatpush.msra.mxu0 %v3808
    %3942 = vmatpush.msra.mxu0 %v3804
    %3943 = vmatpush.msra.mxu0 %v3800
    %3944 = vmatpush.msra.mxu0 %v3796
    %3945 = vmatpush.msra.mxu0 %v3792
    %3946 = vmatpush.msra.mxu0 %v3788
    %3947 = vmatpush.msra.mxu0 %v3784
    %3948 = vmatpush.msra.mxu0 %v3780
    %3949 = vmatpush.msra.mxu0 %v3776
    %3950 = vmatpush.msra.mxu0 %v3772
    %3951 = vmatpush.msra.mxu0 %v3768
    %3952 = vmatpush.msra.mxu0 %v3764
    %3953 = vmatpush.msra.mxu0 %v3760
    %3954 = vmatmul.f32.gmra.mxu0 %v3630
    %v3955 = vpop.f32.mrf.mxu0
    %v3956 = vadd.f32 %v3936, %v3955
    %3957 = vdwg.mxu0
    %3958 = vmatpush.msra.mxu0 %v3884
    %3959 = vmatpush.msra.mxu0 %v3880
    %3960 = vmatpush.msra.mxu0 %v3876
    %3961 = vmatpush.msra.mxu0 %v3872
    %3962 = vmatpush.msra.mxu0 %v3868
    %3963 = vmatpush.msra.mxu0 %v3864
    %3964 = vmatpush.msra.mxu0 %v3860
    %3965 = vmatpush.msra.mxu0 %v3856
    %3966 = vmatpush.msra.mxu0 %v3852
    %3967 = vmatpush.msra.mxu0 %v3848
    %3968 = vmatpush.msra.mxu0 %v3844
    %3969 = vmatpush.msra.mxu0 %v3840
    %3970 = vmatpush.msra.mxu0 %v3836
    %3971 = vmatpush.msra.mxu0 %v3832
    %3972 = vmatpush.msra.mxu0 %v3828
    %3973 = vmatpush.msra.mxu0 %v3824
    %3974 = vmatmul.f32.gmra.mxu0 %v3631
    %v3975 = vpop.f32.mrf.mxu0
    %v3976 = vadd.f32 %v3956, %v3975
    %3977 = vdwg.mxu0
    %3978 = vmatpush.msra.mxu0 %v3693
    %3979 = vmatpush.msra.mxu0 %v3689
    %3980 = vmatpush.msra.mxu0 %v3685
    %3981 = vmatpush.msra.mxu0 %v3681
    %3982 = vmatpush.msra.mxu0 %v3677
    %3983 = vmatpush.msra.mxu0 %v3673
    %3984 = vmatpush.msra.mxu0 %v3669
    %3985 = vmatpush.msra.mxu0 %v3665
    %3986 = vmatpush.msra.mxu0 %v3661
    %3987 = vmatpush.msra.mxu0 %v3657
    %3988 = vmatpush.msra.mxu0 %v3653
    %3989 = vmatpush.msra.mxu0 %v3649
    %3990 = vmatpush.msra.mxu0 %v3645
    %3991 = vmatpush.msra.mxu0 %v3641
    %3992 = vmatpush.msra.mxu0 %v3637
    %3993 = vmatpush.msra.mxu0 %v3633
    %3994 = vmatmul.f32.gmra.mxu0 %v3628
    %v3995 = vpop.f32.mrf.mxu0
    %v3996 = vadd.f32 %v3891, %v3995
    %3997 = vdwg.mxu0
    %3998 = vmatpush.msra.mxu0 %v3757
    %3999 = vmatpush.msra.mxu0 %v3753
    %4000 = vmatpush.msra.mxu0 %v3749
    %4001 = vmatpush.msra.mxu0 %v3745
    %4002 = vmatpush.msra.mxu0 %v3741
    %4003 = vmatpush.msra.mxu0 %v3737
    %4004 = vmatpush.msra.mxu0 %v3733
    %4005 = vmatpush.msra.mxu0 %v3729
    %4006 = vmatpush.msra.mxu0 %v3725
    %4007 = vmatpush.msra.mxu0 %v3721
    %4008 = vmatpush.msra.mxu0 %v3717
    %4009 = vmatpush.msra.mxu0 %v3713
    %4010 = vmatpush.msra.mxu0 %v3709
    %4011 = vmatpush.msra.mxu0 %v3705
    %4012 = vmatpush.msra.mxu0 %v3701
    %4013 = vmatpush.msra.mxu0 %v3697
    %4014 = vmatmul.f32.gmra.mxu0 %v3629
    %v4015 = vpop.f32.mrf.mxu0
    %v4016 = vadd.f32 %v3996, %v4015
    %4017 = vdwg.mxu0
    %4018 = vmatpush.msra.mxu0 %v3821
    %4019 = vmatpush.msra.mxu0 %v3817
    %4020 = vmatpush.msra.mxu0 %v3813
    %4021 = vmatpush.msra.mxu0 %v3809
    %4022 = vmatpush.msra.mxu0 %v3805
    %4023 = vmatpush.msra.mxu0 %v3801
    %4024 = vmatpush.msra.mxu0 %v3797
    %4025 = vmatpush.msra.mxu0 %v3793
    %4026 = vmatpush.msra.mxu0 %v3789
    %4027 = vmatpush.msra.mxu0 %v3785
    %4028 = vmatpush.msra.mxu0 %v3781
    %4029 = vmatpush.msra.mxu0 %v3777
    %4030 = vmatpush.msra.mxu0 %v3773
    %4031 = vmatpush.msra.mxu0 %v3769
    %4032 = vmatpush.msra.mxu0 %v3765
    %4033 = vmatpush.msra.mxu0 %v3761
    %4034 = vmatmul.f32.gmra.mxu0 %v3630
    %v4035 = vpop.f32.mrf.mxu0
    %v4036 = vadd.f32 %v4016, %v4035
    %4037 = vdwg.mxu0
    %4038 = vmatpush.msra.mxu0 %v3885
    %4039 = vmatpush.msra.mxu0 %v3881
    %4040 = vmatpush.msra.mxu0 %v3877
    %4041 = vmatpush.msra.mxu0 %v3873
    %4042 = vmatpush.msra.mxu0 %v3869
    %4043 = vmatpush.msra.mxu0 %v3865
    %4044 = vmatpush.msra.mxu0 %v3861
    %4045 = vmatpush.msra.mxu0 %v3857
    %4046 = vmatpush.msra.mxu0 %v3853
    %4047 = vmatpush.msra.mxu0 %v3849
    %4048 = vmatpush.msra.mxu0 %v3845
    %4049 = vmatpush.msra.mxu0 %v3841
    %4050 = vmatpush.msra.mxu0 %v3837
    %4051 = vmatpush.msra.mxu0 %v3833
    %4052 = vmatpush.msra.mxu0 %v3829
    %4053 = vmatpush.msra.mxu0 %v3825
    %4054 = vmatmul.f32.gmra.mxu0 %v3631
    %v4055 = vpop.f32.mrf.mxu0
    %v4056 = vadd.f32 %v4036, %v4055
    %4057 = vdwg.mxu0
    %4058 = vmatpush.msra.mxu0 %v3694
    %4059 = vmatpush.msra.mxu0 %v3690
    %4060 = vmatpush.msra.mxu0 %v3686
    %4061 = vmatpush.msra.mxu0 %v3682
    %4062 = vmatpush.msra.mxu0 %v3678
    %4063 = vmatpush.msra.mxu0 %v3674
    %4064 = vmatpush.msra.mxu0 %v3670
    %4065 = vmatpush.msra.mxu0 %v3666
    %4066 = vmatpush.msra.mxu0 %v3662
    %4067 = vmatpush.msra.mxu0 %v3658
    %4068 = vmatpush.msra.mxu0 %v3654
    %4069 = vmatpush.msra.mxu0 %v3650
    %4070 = vmatpush.msra.mxu0 %v3646
    %4071 = vmatpush.msra.mxu0 %v3642
    %4072 = vmatpush.msra.mxu0 %v3638
    %4073 = vmatpush.msra.mxu0 %v3634
    %4074 = vmatmul.f32.gmra.mxu0 %v3628
    %v4075 = vpop.f32.mrf.mxu0
    %v4076 = vadd.f32 %v3892, %v4075
    %4077 = vdwg.mxu0
    %4078 = vmatpush.msra.mxu0 %v3758
    %4079 = vmatpush.msra.mxu0 %v3754
    %4080 = vmatpush.msra.mxu0 %v3750
    %4081 = vmatpush.msra.mxu0 %v3746
    %4082 = vmatpush.msra.mxu0 %v3742
    %4083 = vmatpush.msra.mxu0 %v3738
    %4084 = vmatpush.msra.mxu0 %v3734
    %4085 = vmatpush.msra.mxu0 %v3730
    %4086 = vmatpush.msra.mxu0 %v3726
    %4087 = vmatpush.msra.mxu0 %v3722
    %4088 = vmatpush.msra.mxu0 %v3718
    %4089 = vmatpush.msra.mxu0 %v3714
    %4090 = vmatpush.msra.mxu0 %v3710
    %4091 = vmatpush.msra.mxu0 %v3706
    %4092 = vmatpush.msra.mxu0 %v3702
    %4093 = vmatpush.msra.mxu0 %v3698
    %4094 = vmatmul.f32.gmra.mxu0 %v3629
    %v4095 = vpop.f32.mrf.mxu0
    %v4096 = vadd.f32 %v4076, %v4095
    %4097 = vdwg.mxu0
    %4098 = vmatpush.msra.mxu0 %v3822
    %4099 = vmatpush.msra.mxu0 %v3818
    %4100 = vmatpush.msra.mxu0 %v3814
    %4101 = vmatpush.msra.mxu0 %v3810
    %4102 = vmatpush.msra.mxu0 %v3806
    %4103 = vmatpush.msra.mxu0 %v3802
    %4104 = vmatpush.msra.mxu0 %v3798
    %4105 = vmatpush.msra.mxu0 %v3794
    %4106 = vmatpush.msra.mxu0 %v3790
    %4107 = vmatpush.msra.mxu0 %v3786
    %4108 = vmatpush.msra.mxu0 %v3782
    %4109 = vmatpush.msra.mxu0 %v3778
    %4110 = vmatpush.msra.mxu0 %v3774
    %4111 = vmatpush.msra.mxu0 %v3770
    %4112 = vmatpush.msra.mxu0 %v3766
    %4113 = vmatpush.msra.mxu0 %v3762
    %4114 = vmatmul.f32.gmra.mxu0 %v3630
    %v4115 = vpop.f32.mrf.mxu0
    %v4116 = vadd.f32 %v4096, %v4115
    %4117 = vdwg.mxu0
    %4118 = vmatpush.msra.mxu0 %v3886
    %4119 = vmatpush.msra.mxu0 %v3882
    %4120 = vmatpush.msra.mxu0 %v3878
    %4121 = vmatpush.msra.mxu0 %v3874
    %4122 = vmatpush.msra.mxu0 %v3870
    %4123 = vmatpush.msra.mxu0 %v3866
    %4124 = vmatpush.msra.mxu0 %v3862
    %4125 = vmatpush.msra.mxu0 %v3858
    %4126 = vmatpush.msra.mxu0 %v3854
    %4127 = vmatpush.msra.mxu0 %v3850
    %4128 = vmatpush.msra.mxu0 %v3846
    %4129 = vmatpush.msra.mxu0 %v3842
    %4130 = vmatpush.msra.mxu0 %v3838
    %4131 = vmatpush.msra.mxu0 %v3834
    %4132 = vmatpush.msra.mxu0 %v3830
    %4133 = vmatpush.msra.mxu0 %v3826
    %4134 = vmatmul.f32.gmra.mxu0 %v3631
    %v4135 = vpop.f32.mrf.mxu0
    %v4136 = vadd.f32 %v4116, %v4135
    %4137 = vdwg.mxu0
    %4138 = vmatpush.msra.mxu0 %v3695
    %4139 = vmatpush.msra.mxu0 %v3691
    %4140 = vmatpush.msra.mxu0 %v3687
    %4141 = vmatpush.msra.mxu0 %v3683
    %4142 = vmatpush.msra.mxu0 %v3679
    %4143 = vmatpush.msra.mxu0 %v3675
    %4144 = vmatpush.msra.mxu0 %v3671
    %4145 = vmatpush.msra.mxu0 %v3667
    %4146 = vmatpush.msra.mxu0 %v3663
    %4147 = vmatpush.msra.mxu0 %v3659
    %4148 = vmatpush.msra.mxu0 %v3655
    %4149 = vmatpush.msra.mxu0 %v3651
    %4150 = vmatpush.msra.mxu0 %v3647
    %4151 = vmatpush.msra.mxu0 %v3643
    %4152 = vmatpush.msra.mxu0 %v3639
    %4153 = vmatpush.msra.mxu0 %v3635
    %4154 = vmatmul.f32.gmra.mxu0 %v3628
    %v4155 = vpop.f32.mrf.mxu0
    %v4156 = vadd.f32 %v3893, %v4155
    %4157 = vdwg.mxu0
    %4158 = vmatpush.msra.mxu0 %v3759
    %4159 = vmatpush.msra.mxu0 %v3755
    %4160 = vmatpush.msra.mxu0 %v3751
    %4161 = vmatpush.msra.mxu0 %v3747
    %4162 = vmatpush.msra.mxu0 %v3743
    %4163 = vmatpush.msra.mxu0 %v3739
    %4164 = vmatpush.msra.mxu0 %v3735
    %4165 = vmatpush.msra.mxu0 %v3731
    %4166 = vmatpush.msra.mxu0 %v3727
    %4167 = vmatpush.msra.mxu0 %v3723
    %4168 = vmatpush.msra.mxu0 %v3719
    %4169 = vmatpush.msra.mxu0 %v3715
    %4170 = vmatpush.msra.mxu0 %v3711
    %4171 = vmatpush.msra.mxu0 %v3707
    %4172 = vmatpush.msra.mxu0 %v3703
    %4173 = vmatpush.msra.mxu0 %v3699
    %4174 = vmatmul.f32.gmra.mxu0 %v3629
    %v4175 = vpop.f32.mrf.mxu0
    %v4176 = vadd.f32 %v4156, %v4175
    %4177 = vdwg.mxu0
    %4178 = vmatpush.msra.mxu0 %v3823
    %4179 = vmatpush.msra.mxu0 %v3819
    %4180 = vmatpush.msra.mxu0 %v3815
    %4181 = vmatpush.msra.mxu0 %v3811
    %4182 = vmatpush.msra.mxu0 %v3807
    %4183 = vmatpush.msra.mxu0 %v3803
    %4184 = vmatpush.msra.mxu0 %v3799
    %4185 = vmatpush.msra.mxu0 %v3795
    %4186 = vmatpush.msra.mxu0 %v3791
    %4187 = vmatpush.msra.mxu0 %v3787
    %4188 = vmatpush.msra.mxu0 %v3783
    %4189 = vmatpush.msra.mxu0 %v3779
    %4190 = vmatpush.msra.mxu0 %v3775
    %4191 = vmatpush.msra.mxu0 %v3771
    %4192 = vmatpush.msra.mxu0 %v3767
    %4193 = vmatpush.msra.mxu0 %v3763
    %4194 = vmatmul.f32.gmra.mxu0 %v3630
    %v4195 = vpop.f32.mrf.mxu0
    %v4196 = vadd.f32 %v4176, %v4195
    %4197 = vdwg.mxu0
    %4198 = vmatpush.msra.mxu0 %v3887
    %4199 = vmatpush.msra.mxu0 %v3883
    %4200 = vmatpush.msra.mxu0 %v3879
    %4201 = vmatpush.msra.mxu0 %v3875
    %4202 = vmatpush.msra.mxu0 %v3871
    %4203 = vmatpush.msra.mxu0 %v3867
    %4204 = vmatpush.msra.mxu0 %v3863
    %4205 = vmatpush.msra.mxu0 %v3859
    %4206 = vmatpush.msra.mxu0 %v3855
    %4207 = vmatpush.msra.mxu0 %v3851
    %4208 = vmatpush.msra.mxu0 %v3847
    %4209 = vmatpush.msra.mxu0 %v3843
    %4210 = vmatpush.msra.mxu0 %v3839
    %4211 = vmatpush.msra.mxu0 %v3835
    %4212 = vmatpush.msra.mxu0 %v3831
    %4213 = vmatpush.msra.mxu0 %v3827
    %4214 = vmatmul.f32.gmra.mxu0 %v3631
    %v4215 = vpop.f32.mrf.mxu0
    %v4216 = vadd.f32 %v4196, %v4215
    %4217 = vdwg.mxu0
    %v4218 = vmax.f32 %v3976, 0.0
    %v4219 = vmax.f32 %v4056, 0.0
    %v4220 = vmax.f32 %v4136, 0.0
    %v4221 = vmax.f32 %v4216, 0.0
    %v4222 = vld [vmem:[%s11] sm:$0xff]
    %v4223 = vld [vmem:[%s11 + $0x8] sm:$0xff]
    %v4224 = vld [vmem:[%s11 + $0x10] sm:$0xff]
    %v4225 = vld [vmem:[%s11 + $0x18] sm:$0xff]
    %v4226 = vld [vmem:[%s11 + $0x20] sm:$0xff]
    %v4227 = vld [vmem:[%s11 + $0x28] sm:$0xff]
    %v4228 = vld [vmem:[%s11 + $0x30] sm:$0xff]
    %v4229 = vld [vmem:[%s11 + $0x38] sm:$0xff]
    %v4230 = vld [vmem:[%s11 + $0x40] sm:$0xff]
    %v4231 = vld [vmem:[%s11 + $0x48] sm:$0xff]
    %v4232 = vld [vmem:[%s11 + $0x50] sm:$0xff]
    %v4233 = vld [vmem:[%s11 + $0x58] sm:$0xff]
    %v4234 = vld [vmem:[%s11 + $0x60] sm:$0xff]
    %v4235 = vld [vmem:[%s11 + $0x68] sm:$0xff]
    %v4236 = vld [vmem:[%s11 + $0x70] sm:$0xff]
    %v4237 = vld [vmem:[%s11 + $0x78] sm:$0xff]
    %v4238 = vld [vmem:[%s11 + $0x80] sm:$0xff]
    %v4239 = vld [vmem:[%s11 + $0x88] sm:$0xff]
    %v4240 = vld [vmem:[%s11 + $0x90] sm:$0xff]
    %v4241 = vld [vmem:[%s11 + $0x98] sm:$0xff]
    %v4242 = vld [vmem:[%s11 + $0xa0] sm:$0xff]
    %v4243 = vld [vmem:[%s11 + $0xa8] sm:$0xff]
    %v4244 = vld [vmem:[%s11 + $0xb0] sm:$0xff]
    %v4245 = vld [vmem:[%s11 + $0xb8] sm:$0xff]
    %v4246 = vld [vmem:[%s11 + $0xc0] sm:$0xff]
    %v4247 = vld [vmem:[%s11 + $0xc8] sm:$0xff]
    %v4248 = vld [vmem:[%s11 + $0xd0] sm:$0xff]
    %v4249 = vld [vmem:[%s11 + $0xd8] sm:$0xff]
    %v4250 = vld [vmem:[%s11 + $0xe0] sm:$0xff]
    %v4251 = vld [vmem:[%s11 + $0xe8] sm:$0xff]
    %v4252 = vld [vmem:[%s11 + $0xf0] sm:$0xff]
    %v4253 = vld [vmem:[%s11 + $0xf8] sm:$0xff]
    %v4254 = vld [vmem:[%s11 + $0x100] sm:$0xff]
    %v4255 = vld [vmem:[%s11 + $0x108] sm:$0xff]
    %v4256 = vld [vmem:[%s11 + $0x110] sm:$0xff]
    %v4257 = vld [vmem:[%s11 + $0x118] sm:$0xff]
    %v4258 = vld [vmem:[%s11 + $0x120] sm:$0xff]
    %v4259 = vld [vmem:[%s11 + $0x128] sm:$0xff]
    %v4260 = vld [vmem:[%s11 + $0x130] sm:$0xff]
    %v4261 = vld [vmem:[%s11 + $0x138] sm:$0xff]
    %v4262 = vld [vmem:[%s11 + $0x140] sm:$0xff]
    %v4263 = vld [vmem:[%s11 + $0x148] sm:$0xff]
    %v4264 = vld [vmem:[%s11 + $0x150] sm:$0xff]
    %v4265 = vld [vmem:[%s11 + $0x158] sm:$0xff]
    %v4266 = vld [vmem:[%s11 + $0x160] sm:$0xff]
    %v4267 = vld [vmem:[%s11 + $0x168] sm:$0xff]
    %v4268 = vld [vmem:[%s11 + $0x170] sm:$0xff]
    %v4269 = vld [vmem:[%s11 + $0x178] sm:$0xff]
    %v4270 = vld [vmem:[%s11 + $0x180] sm:$0xff]
    %v4271 = vld [vmem:[%s11 + $0x188] sm:$0xff]
    %v4272 = vld [vmem:[%s11 + $0x190] sm:$0xff]
    %v4273 = vld [vmem:[%s11 + $0x198] sm:$0xff]
    %v4274 = vld [vmem:[%s11 + $0x1a0] sm:$0xff]
    %v4275 = vld [vmem:[%s11 + $0x1a8] sm:$0xff]
    %v4276 = vld [vmem:[%s11 + $0x1b0] sm:$0xff]
    %v4277 = vld [vmem:[%s11 + $0x1b8] sm:$0xff]
    %v4278 = vld [vmem:[%s11 + $0x1c0] sm:$0xff]
    %v4279 = vld [vmem:[%s11 + $0x1c8] sm:$0xff]
    %v4280 = vld [vmem:[%s11 + $0x1d0] sm:$0xff]
    %v4281 = vld [vmem:[%s11 + $0x1d8] sm:$0xff]
    %v4282 = vld [vmem:[%s11 + $0x1e0] sm:$0xff]
    %v4283 = vld [vmem:[%s11 + $0x1e8] sm:$0xff]
    %v4284 = vld [vmem:[%s11 + $0x1f0] sm:$0xff]
    %v4285 = vld [vmem:[%s11 + $0x1f8] sm:$0xff]
    %v4286 = vld [vmem:[%s12] sm:$0x1]
    %v4288 = vperm.slane %v4286, 0
    %4290 = vmatpush.msra.mxu0 %v4237
    %4291 = vmatpush.msra.mxu0 %v4236
    %4292 = vmatpush.msra.mxu0 %v4235
    %4293 = vmatpush.msra.mxu0 %v4234
    %4294 = vmatpush.msra.mxu0 %v4233
    %4295 = vmatpush.msra.mxu0 %v4232
    %4296 = vmatpush.msra.mxu0 %v4231
    %4297 = vmatpush.msra.mxu0 %v4230
    %4298 = vmatpush.msra.mxu0 %v4229
    %4299 = vmatpush.msra.mxu0 %v4228
    %4300 = vmatpush.msra.mxu0 %v4227
    %4301 = vmatpush.msra.mxu0 %v4226
    %4302 = vmatpush.msra.mxu0 %v4225
    %4303 = vmatpush.msra.mxu0 %v4224
    %4304 = vmatpush.msra.mxu0 %v4223
    %4305 = vmatpush.msra.mxu0 %v4222
    %4306 = vmatmul.f32.gmra.mxu0 %v4218
    %v4307 = vpop.f32.mrf.mxu0
    %v4308 = vadd.f32 %v4288, %v4307
    %4309 = vdwg.mxu0
    %4310 = vmatpush.msra.mxu0 %v4253
    %4311 = vmatpush.msra.mxu0 %v4252
    %4312 = vmatpush.msra.mxu0 %v4251
    %4313 = vmatpush.msra.mxu0 %v4250
    %4314 = vmatpush.msra.mxu0 %v4249
    %4315 = vmatpush.msra.mxu0 %v4248
    %4316 = vmatpush.msra.mxu0 %v4247
    %4317 = vmatpush.msra.mxu0 %v4246
    %4318 = vmatpush.msra.mxu0 %v4245
    %4319 = vmatpush.msra.mxu0 %v4244
    %4320 = vmatpush.msra.mxu0 %v4243
    %4321 = vmatpush.msra.mxu0 %v4242
    %4322 = vmatpush.msra.mxu0 %v4241
    %4323 = vmatpush.msra.mxu0 %v4240
    %4324 = vmatpush.msra.mxu0 %v4239
    %4325 = vmatpush.msra.mxu0 %v4238
    %4326 = vmatmul.f32.gmra.mxu0 %v4219
    %v4327 = vpop.f32.mrf.mxu0
    %v4328 = vadd.f32 %v4308, %v4327
    %4329 = vdwg.mxu0
    %4330 = vmatpush.msra.mxu0 %v4269
    %4331 = vmatpush.msra.mxu0 %v4268
    %4332 = vmatpush.msra.mxu0 %v4267
    %4333 = vmatpush.msra.mxu0 %v4266
    %4334 = vmatpush.msra.mxu0 %v4265
    %4335 = vmatpush.msra.mxu0 %v4264
    %4336 = vmatpush.msra.mxu0 %v4263
    %4337 = vmatpush.msra.mxu0 %v4262
    %4338 = vmatpush.msra.mxu0 %v4261
    %4339 = vmatpush.msra.mxu0 %v4260
    %4340 = vmatpush.msra.mxu0 %v4259
    %4341 = vmatpush.msra.mxu0 %v4258
    %4342 = vmatpush.msra.mxu0 %v4257
    %4343 = vmatpush.msra.mxu0 %v4256
    %4344 = vmatpush.msra.mxu0 %v4255
    %4345 = vmatpush.msra.mxu0 %v4254
    %4346 = vmatmul.f32.gmra.mxu0 %v4220
    %v4347 = vpop.f32.mrf.mxu0
    %v4348 = vadd.f32 %v4328, %v4347
    %4349 = vdwg.mxu0
    %4350 = vmatpush.msra.mxu0 %v4285
    %4351 = vmatpush.msra.mxu0 %v4284
    %4352 = vmatpush.msra.mxu0 %v4283
    %4353 = vmatpush.msra.mxu0 %v4282
    %4354 = vmatpush.msra.mxu0 %v4281
    %4355 = vmatpush.msra.mxu0 %v4280
    %4356 = vmatpush.msra.mxu0 %v4279
    %4357 = vmatpush.msra.mxu0 %v4278
    %4358 = vmatpush.msra.mxu0 %v4277
    %4359 = vmatpush.msra.mxu0 %v4276
    %4360 = vmatpush.msra.mxu0 %v4275
    %4361 = vmatpush.msra.mxu0 %v4274
    %4362 = vmatpush.msra.mxu0 %v4273
    %4363 = vmatpush.msra.mxu0 %v4272
    %4364 = vmatpush.msra.mxu0 %v4271
    %4365 = vmatpush.msra.mxu0 %v4270
    %4366 = vmatmul.f32.gmra.mxu0 %v4221
    %v4367 = vpop.f32.mrf.mxu0
    %v4368 = vadd.f32 %v4348, %v4367
    %4369 = vdwg.mxu0
    %vm4370 = vcmask 146432
    %4371 = vst.msk [vmem:[#allocation8] sm:$0xff] %vm4370, %v4368
    // Predicated region
    $region66: #{tpu_custom_call.1} parent=1 // pred_check
      _
    $region67: #{tpu_custom_call.1} parent=1 // pred_check_branch
      %4373 = sbr.rel (0) target = $region69
    $region68: #{tpu_custom_call.1} parent=1 // pred_region
      %4375 = vsyncadd [#allocation4], 0
      %s4377 = sshll.u32 [#allocation8], 4
      %s4378 = int_to_ptr.vmem [resolvable:$true] %s4377
      %s4379 = sshll.u32 %s13, 4
      %s4380 = int_to_ptr.hbm [resolvable:$true] %s4379
      %4382 = dma.vmem_to_hbm [thread:$0]  %s4378, 128, %s4380, [#allocation4]
    $region69: #{tpu_custom_call.1} parent=1 // pred_fallthru
      _
    // Predicated region
    $region70: #{tpu_custom_call.1} parent=1 // pred_check
      _
    $region71: #{tpu_custom_call.1} parent=1 // pred_check_branch
      %4384 = sbr.rel (0) target = $region73
    $region72: #{tpu_custom_call.1} parent=1 // pred_region
      %4386 = dma.done [#allocation4], 128
    $region73: #{tpu_custom_call.1} parent=1 // pred_fallthru
      _
    %4387 = vsyncpa [#allocation3], 1
    %4388 = vsyncpa [#allocation6], 1
    %4389 = vsyncpa [#allocation4], 1

</llo_original>
